<compile_context>
chip_gen: v7x
topology: tpu7x:2x2x1
jax: 0.10.0
libtpu: 0.0.40
codegen_flags: <defaults>
</compile_context>

<pallas_src>
import functools

import jax
import jax.numpy as jnp
import numpy as np
from jax.experimental import pallas as pl
from jax.experimental.pallas import tpu as pltpu


def _wolo_kernel(t0_ref, x_ref, zext_ref, w2t_ref, b2_ref, red_ref,
                 woutT_ref, bout_ref, o_ref, y_ref,
                 *, k, pad, seq_len, dim, ext):
    """One (batch, L-tile, N-tile) grid step."""
    ni = pl.program_id(2)
    k2 = k * k

    # ---- stage 1: everything before the output projection, computed once per
    # (batch, L-tile) and cached in the persistent VMEM scratch y_ref. ---------
    @pl.when(ni == 0)
    def _():
        x = x_ref[0]                                       # (TL, D) matmul dtype
        tl = x.shape[0]

        # linear2 (+bias) on a 128-lane padded slab.  Column k2 of W2^T / b2
        # holds the pre-summed bias projection, so the whole "attention_bise"
        # reduction is a free extra MXU column.
        att = jnp.dot(x, w2t_ref[...],
                      preferred_element_type=jnp.float32) + b2_ref[...]  # (TL, KP) f32

        # sin on the whole slab (EUP slot); lanes >= k2 never reach the output
        # because the matching rows of the reduction matrix are zero, and the
        # bias term is read from the *pre-sin* att, so no select is needed.
        satt = jnp.sin(att)

        # grouped reduction over j: red[:, i] = sum_j sin(att[:, i*k + j]), i<k.
        # red is lane-dense (TL, 128); columns >= k are zero.
        red = jnp.dot(satt, red_ref[...], preferred_element_type=jnp.float32)
        bias = att[:, k2:k2 + 1]                           # (TL, 1) pre-sin bias term

        # t = (global flat index) mod L, for the zero-padding boundary masks of
        # the torch unfold.  Hoisted out of the tap loop.
        if k > 1:
            t = t0_ref[...] + jax.lax.broadcasted_iota(jnp.int32, (tl, dim), 1)
            for _ in range((dim - 1 + seq_len - 1) // seq_len):
                t = jnp.where(t >= seq_len, t - seq_len, t)

        # Windowed weighting: k masked FMAs on flat shifts of the scrambled
        # base.  zext rows are [z(D) | right halo(p) | 0 | left halo(p)] padded
        # to a 128-multiple, so every tap is an XLU lane-roll + aligned slice.
        zv = zext_ref[0]                                   # (TL, EXT) stored dtype
        acc = jnp.zeros((tl, dim), jnp.float32)
        for i in range(k):
            delta = i - pad
            rolled = zv if delta == 0 else pltpu.roll(zv, shift=(-delta) % ext, axis=1)
            xi = rolled[:, :dim].astype(jnp.float32)
            # one comparison per tap: delta>0 only needs an upper bound,
            # delta<0 only a lower bound, delta==0 needs no mask at all.
            if delta > 0:
                xi = jnp.where(t < (seq_len - delta), xi, 0.0)
            elif delta < 0:
                xi = jnp.where(t >= (-delta), xi, 0.0)
            acc = acc + xi * red[:, i:i + 1]
        y_ref[...] = (acc + bias).astype(y_ref.dtype)

    # ---- stage 2: output projection for this N-tile -------------------------
    out = jnp.dot(y_ref[...], woutT_ref[...], preferred_element_type=jnp.float32)
    o_ref[0] = (out + bout_ref[...]).astype(o_ref.dtype)


def _round_up(n, m):
    return ((n + m - 1) // m) * m


def _tile_candidates(n, cap, align):
    """Divisors of n, <= cap, aligned to `align` (or the full dim), descending."""
    cap = max(1, min(cap, n))
    cands = [c for c in range(cap, 0, -1)
             if n % c == 0 and (c % align == 0 or c == n)]
    return cands or [n]


@functools.partial(jax.jit, static_argnames=("kernel_size", "padding", "block_l",
                                             "block_dout", "matmul_dtype"))
def wolo_attention_pallas(x, w2, b2, wout, bout, *, kernel_size, padding,
                          block_l=1024, block_dout=1024,
                          matmul_dtype=jnp.bfloat16):
    b, l, d = x.shape
    k, p = kernel_size, padding
    k2 = k * k
    assert k == 2 * p + 1, (
        "reshape(b, l, d, k) in the reference module requires "
        "kernel_size == 2*padding + 1")

    out_dtype = x.dtype
    f32 = jnp.float32
    mm_bytes = np.dtype(matmul_dtype).itemsize
    out_bytes = np.dtype(out_dtype).itemsize

    # ---- host-side staging (inside jit: fused, constants baked once) --------
    # Cast BEFORE the relayout so the transpose/pad/concat stream is half-width.
    x_mm = x.astype(matmul_dtype)

    # Scrambled base: exactly the module's transpose + flat reshape.
    z = jnp.transpose(x_mm, (0, 2, 1)).reshape(b, l, d)
    # Row layout [z(D) | right halo(p) | zeros | left halo(p)], padded to a
    # multiple of 128 lanes: full-width DMAs, roll + aligned slice in-kernel.
    # (Cache zext across calls if the same x is reused by several layers.)
    ext = _round_up(d + 2 * p, 128)
    if p > 0:
        right = jnp.pad(z[:, 1:, :p], ((0, 0), (0, 1), (0, 0)))      # next row's first p
        left = jnp.pad(z[:, :-1, d - p:], ((0, 0), (1, 0), (0, 0)))  # prev row's last p
        pieces = [z, right]
        gap = ext - d - 2 * p
        if gap:
            pieces.append(jnp.zeros((b, l, gap), z.dtype))
        pieces.append(left)
        zext = jnp.concatenate(pieces, axis=-1)
    else:
        zext = z if ext == d else jnp.pad(z, ((0, 0), (0, 0), (0, ext - d)))

    # Per-row (row*d) mod l — lets the kernel build the boundary masks cheaply.
    t0 = np.reshape((np.arange(l, dtype=np.int64) * d) % l, (l, 1)).astype(np.int32)

    # linear2 padded to a 128-lane slab; column k2 = pre-summed bias projection.
    kp = max(128, _round_up(k2 + 1, 128))
    w2_f = w2.astype(f32)
    w2t = jnp.zeros((d, kp), f32)
    w2t = w2t.at[:, :k2].set(jnp.transpose(w2_f[:k2, :]))
    w2t = w2t.at[:, k2].set(jnp.sum(w2_f[k2:, :], axis=0))
    w2t = w2t.astype(matmul_dtype)

    b2_f = b2.astype(f32)
    b2p = jnp.zeros((1, kp), f32)
    b2p = b2p.at[0, :k2].set(b2_f[:k2])
    b2p = b2p.at[0, k2].set(jnp.sum(b2_f[k2:]))

    # Lane-dense constant reduction matrix: red[:, i] groups sum-over-j for tap i.
    kr = 128
    red = np.zeros((kp, kr), np.float32)
    for i in range(k):
        red[i * k:(i + 1) * k, i] = 1.0

    woutT = jnp.transpose(wout).astype(matmul_dtype)
    bout2 = bout.reshape(1, d).astype(f32)

    # ---- tile selection under an explicit VMEM budget ------------------------
    def vmem_estimate(tl, tn):
        est = 0
        est += 2 * tl * 128 * 4                 # t0 block (lane-padded)
        est += 2 * tl * d * mm_bytes            # x block
        est += 2 * tl * ext * mm_bytes          # zext block
        est += 2 * d * kp * mm_bytes            # W2^T slab
        est += 2 * 8 * kp * 4                   # b2 row
        est += 2 * kp * kr * 4                  # reduction matrix
        est += 2 * d * tn * mm_bytes            # Wout^T tile
        est += 2 * 8 * tn * 4                   # bout tile
        est += 2 * tl * tn * out_bytes          # output tile
        est += tl * d * mm_bytes                # y scratch (single copy)
        return est

    budget = 28 * 1024 * 1024                   # headroom under v7x's 64 MiB VMEM
    l_cap = block_l
    if b == 1 and l % 2 == 0:
        l_cap = min(block_l, l // 2)            # keep >= 2 L-tiles for megacore
    tl = tn = None
    for tl_c in _tile_candidates(l, l_cap, 8):          # prefer the biggest L-tile
        for tn_c in _tile_candidates(d, block_dout, 128):
            if vmem_estimate(tl_c, tn_c) <= budget:
                tl, tn = tl_c, tn_c
                break
        if tl is not None:
            break
    if tl is None:                                      # pathological shapes
        tl = _tile_candidates(l, 8, 8)[-1]
        tn = _tile_candidates(d, 128, 128)[-1]

    vmem_limit = int(min(max(2 * vmem_estimate(tl, tn), 32 * 1024 * 1024),
                         64 * 1024 * 1024))

    kernel = functools.partial(_wolo_kernel, k=k, pad=p, seq_len=l, dim=d, ext=ext)

    return pl.pallas_call(
        kernel,
        out_shape=jax.ShapeDtypeStruct((b, l, d), out_dtype),
        grid=(b, l // tl, d // tn),
        in_specs=[
            pl.BlockSpec((tl, 1), lambda bi, li, ni: (li, 0)),            # t0
            pl.BlockSpec((1, tl, d), lambda bi, li, ni: (bi, li, 0)),     # x
            pl.BlockSpec((1, tl, ext), lambda bi, li, ni: (bi, li, 0)),   # zext
            pl.BlockSpec((d, kp), lambda bi, li, ni: (0, 0)),             # W2^T (padded)
            pl.BlockSpec((1, kp), lambda bi, li, ni: (0, 0)),             # b2 (padded)
            pl.BlockSpec((kp, kr), lambda bi, li, ni: (0, 0)),            # reduction mat
            pl.BlockSpec((d, tn), lambda bi, li, ni: (0, ni)),            # Wout^T tile
            pl.BlockSpec((1, tn), lambda bi, li, ni: (0, ni)),            # bout tile
        ],
        out_specs=pl.BlockSpec((1, tl, tn), lambda bi, li, ni: (bi, li, ni)),
        scratch_shapes=[pltpu.VMEM((tl, d), matmul_dtype)],               # y cache
        compiler_params=pltpu.CompilerParams(
            dimension_semantics=("parallel", "parallel", "arbitrary"),
            vmem_limit_bytes=vmem_limit),
    )(t0, x_mm, zext, w2t, b2p, red, woutT, bout2)


def wolo_attention_ref(x, w2, b2, wout, bout, *, kernel_size, padding):
    """Pure-JAX mirror of the PyTorch forward (for correctness check)."""
    b, l, d = x.shape
    k = kernel_size
    att = x @ w2.T + b2
    aw, ab = att[..., :k * k], att[..., k * k:]
    aw = jnp.sin(aw).reshape(b, l, k, k)
    xt = jnp.transpose(x, (0, 2, 1))
    xp = jnp.pad(xt, ((0, 0), (0, 0), (padding, padding)))
    l_out = l + 2 * padding - k + 1
    unf = jnp.stack([xp[:, :, j:j + l_out] for j in range(k)], axis=-1)
    x1 = unf.reshape(b, l, d, k)                     # flat reshape, same as torch
    x1 = jnp.einsum('blci,blij->blcj', x1, aw) + ab[:, :, None, :]
    y = jnp.sum(x1, axis=-1)
    return y @ wout.T + bout


def _check_scramble_algebra(x, k, p):
    """Exact host-side check that the flat-shift + mod-L-mask formulation used by
    the kernel reproduces torch's pad+unfold+flat-reshape bit-for-bit, including
    the first/last flat positions of every scrambled row (halo boundaries)."""
    b, l, d = x.shape
    xt = np.transpose(x, (0, 2, 1))                                   # (b, d, l)
    xp = np.pad(xt, ((0, 0), (0, 0), (p, p)))
    unf = np.stack([xp[:, :, j:j + l] for j in range(k)], axis=-1)    # (b, d, l, k)
    x1 = unf.reshape(b, l, d, k)
    zflat = xt.reshape(b, l * d)
    t = np.arange(l * d) % l
    for j in range(k):
        delta = j - p
        src = np.arange(l * d) + delta
        shifted = np.where((src >= 0) & (src < l * d),
                           zflat[:, np.clip(src, 0, l * d - 1)], 0.0)
        valid = (t + delta >= 0) & (t + delta < l)
        got = np.where(valid[None, :], shifted, 0.0).reshape(b, l, d)
        np.testing.assert_array_equal(got, x1[..., j])


if __name__ == "__main__":
    # Small but TPU-friendly shapes: x is (batch, seq, dim) with lane-dense dim.
    B, L, D = 2, 256, 128
    KERNEL_SIZE, PADDING = 3, 1
    K2K = KERNEL_SIZE ** 2 + KERNEL_SIZE

    key = jax.random.PRNGKey(0)
    kx, kw2, kb2, kwo, kbo = jax.random.split(key, 5)

    x = jax.random.normal(kx, (B, L, D), dtype=jnp.float32)
    # nn.Linear-shaped parameters: (out, in) weight + (out,) bias
    w2 = jax.random.normal(kw2, (K2K, D), dtype=jnp.float32) * (1.0 / np.sqrt(D))
    b2 = jax.random.normal(kb2, (K2K,), dtype=jnp.float32) * 0.1
    wout = jax.random.normal(kwo, (D, D), dtype=jnp.float32) * (1.0 / np.sqrt(D))
    bout = jax.random.normal(kbo, (D,), dtype=jnp.float32) * 0.1

    with jax.default_matmul_precision("float32"):
        ref = jax.block_until_ready(wolo_attention_ref(
            x, w2, b2, wout, bout, kernel_size=KERNEL_SIZE, padding=PADDING))

    # Targeted exact check of the scramble/halo/shift/mask algebra the kernel uses.
    _check_scramble_algebra(np.asarray(x), KERNEL_SIZE, PADDING)

    # Strict-semantics check: f32 matmul path.  An indexing / halo / mask bug
    # perturbs output elements by O(0.1-1), far above this tolerance (which only
    # absorbs MXU matmul rounding vs. the HIGHEST-precision XLA reference).
    out_f32 = wolo_attention_pallas(
        x, w2, b2, wout, bout, kernel_size=KERNEL_SIZE, padding=PADDING,
        matmul_dtype=jnp.float32)
    out_f32 = jax.block_until_ready(out_f32)
    np.testing.assert_allclose(np.asarray(out_f32), np.asarray(ref),
                               rtol=2e-2, atol=2e-2)

    # Performance path: bf16 MXU operands / streamed activations, f32 accumulation.
    out_bf16 = wolo_attention_pallas(
        x, w2, b2, wout, bout, kernel_size=KERNEL_SIZE, padding=PADDING,
        matmul_dtype=jnp.bfloat16)
    out_bf16 = jax.block_until_ready(out_bf16)
    np.testing.assert_allclose(np.asarray(out_bf16), np.asarray(ref),
                               rtol=1e-1, atol=1e-1)

    print("KERNEL_OK")
</pallas_src>

<mosaic_0001>
module attributes {stable_mosaic.version = 11 : i64} {
  func.func @_wolo_kernel(%arg0: i32, %arg1: i32, %arg2: i32, %arg3: memref<256x1xi32, #tpu.memory_space<vmem>>, %arg4: memref<1x256x128xf32, #tpu.memory_space<vmem>>, %arg5: memref<1x256x256xf32, #tpu.memory_space<vmem>>, %arg6: memref<128x128xf32, #tpu.memory_space<vmem>>, %arg7: memref<1x128xf32, #tpu.memory_space<vmem>>, %arg8: memref<128x128xf32, #tpu.memory_space<vmem>>, %arg9: memref<128x128xf32, #tpu.memory_space<vmem>>, %arg10: memref<1x128xf32, #tpu.memory_space<vmem>>, %arg11: memref<1x256x128xf32, #tpu.memory_space<vmem>>, %arg12: memref<256x128xf32, #tpu.memory_space<vmem>>) attributes {dimension_semantics = [#tpu.dimension_semantics<parallel>, #tpu.dimension_semantics<parallel>, #tpu.dimension_semantics<arbitrary>], iteration_bounds = array<i64: 2, 1, 1>, scalar_prefetch = 0 : i64, scratch_operands = 1 : i64, tpu.core_type = #tpu.core_type<tc>, window_params = [{transform_indices = @transform_0, window_bounds = array<i64: 256, 1>}, {transform_indices = @transform_1, window_bounds = array<i64: 1, 256, 128>}, {transform_indices = @transform_2, window_bounds = array<i64: 1, 256, 256>}, {pipeline_mode = #tpu.pipeline_mode<synchronous>, transform_indices = @transform_3, window_bounds = array<i64: 128, 128>}, {pipeline_mode = #tpu.pipeline_mode<synchronous>, transform_indices = @transform_4, window_bounds = array<i64: 1, 128>}, {pipeline_mode = #tpu.pipeline_mode<synchronous>, transform_indices = @transform_5, window_bounds = array<i64: 128, 128>}, {transform_indices = @transform_6, window_bounds = array<i64: 128, 128>}, {transform_indices = @transform_7, window_bounds = array<i64: 1, 128>}, {transform_indices = @transform_8, window_bounds = array<i64: 1, 256, 128>}]} {
    %c0_i32 = arith.constant 0 : i32
    %0 = arith.cmpi eq, %arg2, %c0_i32 : i32
    %1 = arith.extui %0 : i1 to i32
    %c0_i32_0 = arith.constant 0 : i32
    %2 = arith.cmpi ne, %1, %c0_i32_0 : i32
    scf.if %2 {
      %c0_9 = arith.constant 0 : index
      %c0_10 = arith.constant 0 : index
      %c0_11 = arith.constant 0 : index
      %12 = vector.load %arg4[%c0_9, %c0_10, %c0_11] : memref<1x256x128xf32, #tpu.memory_space<vmem>>, vector<1x256x128xf32>
      %13 = vector.shape_cast %12 : vector<1x256x128xf32> to vector<256x128xf32>
      %c0_12 = arith.constant 0 : index
      %c0_13 = arith.constant 0 : index
      %14 = vector.load %arg6[%c0_12, %c0_13] : memref<128x128xf32, #tpu.memory_space<vmem>>, vector<128x128xf32>
      %cst_14 = arith.constant dense<0.000000e+00> : vector<256x128xf32>
      %15 = tpu.matmul %13, %14, %cst_14 {dimension_numbers = #tpu.dot_dimension_numbers<[1], [0], [0], [1], [0, 0, 1, 1], [], []>} : vector<256x128xf32>, vector<128x128xf32>, vector<256x128xf32> -> vector<256x128xf32>
      %c0_15 = arith.constant 0 : index
      %c0_16 = arith.constant 0 : index
      %16 = vector.load %arg7[%c0_15, %c0_16] : memref<1x128xf32, #tpu.memory_space<vmem>>, vector<1x128xf32>
      %17 = vector.broadcast %16 : vector<1x128xf32> to vector<256x128xf32>
      %18 = arith.addf %15, %17 : vector<256x128xf32>
      %19 = math.sin %18 : vector<256x128xf32>
      %c0_17 = arith.constant 0 : index
      %c0_18 = arith.constant 0 : index
      %20 = vector.load %arg8[%c0_17, %c0_18] : memref<128x128xf32, #tpu.memory_space<vmem>>, vector<128x128xf32>
      %cst_19 = arith.constant dense<0.000000e+00> : vector<256x128xf32>
      %21 = tpu.matmul %19, %20, %cst_19 {dimension_numbers = #tpu.dot_dimension_numbers<[1], [0], [0], [1], [0, 0, 1, 1], [], []>} : vector<256x128xf32>, vector<128x128xf32>, vector<256x128xf32> -> vector<256x128xf32>
      %22 = vector.extract_strided_slice %18 {offsets = [0, 9], sizes = [256, 1], strides = [1, 1]} : vector<256x128xf32> to vector<256x1xf32>
      %c0_20 = arith.constant 0 : index
      %c0_21 = arith.constant 0 : index
      %23 = vector.load %arg3[%c0_20, %c0_21] : memref<256x1xi32, #tpu.memory_space<vmem>>, vector<256x1xi32>
      %24 = tpu.iota {dimensions = array<i32: 1>} : vector<256x128xi32>
      %25 = vector.broadcast %23 : vector<256x1xi32> to vector<256x128xi32>
      %26 = arith.addi %25, %24 : vector<256x128xi32>
      %c256_i32 = arith.constant 256 : i32
      %27 = vector.broadcast %c256_i32 : i32 to vector<256x128xi32>
      %28 = arith.cmpi sge, %26, %27 : vector<256x128xi32>
      %c256_i32_22 = arith.constant 256 : i32
      %29 = vector.broadcast %c256_i32_22 : i32 to vector<256x128xi32>
      %30 = arith.subi %26, %29 : vector<256x128xi32>
      %31 = arith.select %28, %30, %26 : vector<256x128xi1>, vector<256x128xi32>
      %c0_23 = arith.constant 0 : index
      %c0_24 = arith.constant 0 : index
      %c0_25 = arith.constant 0 : index
      %32 = vector.load %arg5[%c0_23, %c0_24, %c0_25] : memref<1x256x256xf32, #tpu.memory_space<vmem>>, vector<1x256x256xf32>
      %33 = vector.shape_cast %32 : vector<1x256x256xf32> to vector<256x256xf32>
      %cst_26 = arith.constant 0.000000e+00 : f32
      %34 = vector.broadcast %cst_26 : f32 to vector<256x128xf32>
      %c1_i32 = arith.constant 1 : i32
      %35 = tpu.dynamic_rotate %33 by %c1_i32 dim 1 : vector<256x256xf32>, i32 -> vector<256x256xf32>
      %36 = vector.extract_strided_slice %35 {offsets = [0, 0], sizes = [256, 128], strides = [1, 1]} : vector<256x256xf32> to vector<256x128xf32>
      %c1_i32_27 = arith.constant 1 : i32
      %37 = vector.broadcast %c1_i32_27 : i32 to vector<256x128xi32>
      %38 = arith.cmpi sge, %31, %37 : vector<256x128xi32>
      %cst_28 = arith.constant 0.000000e+00 : f32
      %39 = vector.broadcast %cst_28 : f32 to vector<256x128xf32>
      %40 = arith.select %38, %36, %39 : vector<256x128xi1>, vector<256x128xf32>
      %41 = vector.extract_strided_slice %21 {offsets = [0, 0], sizes = [256, 1], strides = [1, 1]} : vector<256x128xf32> to vector<256x1xf32>
      %42 = vector.broadcast %41 : vector<256x1xf32> to vector<256x128xf32>
      %43 = arith.mulf %40, %42 : vector<256x128xf32>
      %44 = arith.addf %34, %43 : vector<256x128xf32>
      %45 = vector.extract_strided_slice %33 {offsets = [0, 0], sizes = [256, 128], strides = [1, 1]} : vector<256x256xf32> to vector<256x128xf32>
      %46 = vector.extract_strided_slice %21 {offsets = [0, 1], sizes = [256, 1], strides = [1, 1]} : vector<256x128xf32> to vector<256x1xf32>
      %47 = vector.broadcast %46 : vector<256x1xf32> to vector<256x128xf32>
      %48 = arith.mulf %45, %47 : vector<256x128xf32>
      %49 = arith.addf %44, %48 : vector<256x128xf32>
      %c255_i32 = arith.constant 255 : i32
      %50 = tpu.dynamic_rotate %33 by %c255_i32 dim 1 : vector<256x256xf32>, i32 -> vector<256x256xf32>
      %51 = vector.extract_strided_slice %50 {offsets = [0, 0], sizes = [256, 128], strides = [1, 1]} : vector<256x256xf32> to vector<256x128xf32>
      %c255_i32_29 = arith.constant 255 : i32
      %52 = vector.broadcast %c255_i32_29 : i32 to vector<256x128xi32>
      %53 = arith.cmpi slt, %31, %52 : vector<256x128xi32>
      %cst_30 = arith.constant 0.000000e+00 : f32
      %54 = vector.broadcast %cst_30 : f32 to vector<256x128xf32>
      %55 = arith.select %53, %51, %54 : vector<256x128xi1>, vector<256x128xf32>
      %56 = vector.extract_strided_slice %21 {offsets = [0, 2], sizes = [256, 1], strides = [1, 1]} : vector<256x128xf32> to vector<256x1xf32>
      %57 = vector.broadcast %56 : vector<256x1xf32> to vector<256x128xf32>
      %58 = arith.mulf %55, %57 : vector<256x128xf32>
      %59 = arith.addf %49, %58 : vector<256x128xf32>
      %60 = vector.broadcast %22 : vector<256x1xf32> to vector<256x128xf32>
      %61 = arith.addf %59, %60 : vector<256x128xf32>
      %c0_31 = arith.constant 0 : index
      %c0_32 = arith.constant 0 : index
      %62 = vector.load %arg12[%c0_31, %c0_32] : memref<256x128xf32, #tpu.memory_space<vmem>>, vector<256x128xf32>
      tpu.vector_store %arg12[%c0_31, %c0_32], %61 {strides = array<i32>} : memref<256x128xf32, #tpu.memory_space<vmem>>, vector<256x128xf32>,
    } else {
    }
    %c0 = arith.constant 0 : index
    %c0_1 = arith.constant 0 : index
    %3 = vector.load %arg12[%c0, %c0_1] : memref<256x128xf32, #tpu.memory_space<vmem>>, vector<256x128xf32>
    %c0_2 = arith.constant 0 : index
    %c0_3 = arith.constant 0 : index
    %4 = vector.load %arg9[%c0_2, %c0_3] : memref<128x128xf32, #tpu.memory_space<vmem>>, vector<128x128xf32>
    %cst = arith.constant dense<0.000000e+00> : vector<256x128xf32>
    %5 = tpu.matmul %3, %4, %cst {dimension_numbers = #tpu.dot_dimension_numbers<[1], [0], [0], [1], [0, 0, 1, 1], [], []>} : vector<256x128xf32>, vector<128x128xf32>, vector<256x128xf32> -> vector<256x128xf32>
    %c0_4 = arith.constant 0 : index
    %c0_5 = arith.constant 0 : index
    %6 = vector.load %arg10[%c0_4, %c0_5] : memref<1x128xf32, #tpu.memory_space<vmem>>, vector<1x128xf32>
    %7 = vector.broadcast %6 : vector<1x128xf32> to vector<256x128xf32>
    %8 = arith.addf %5, %7 : vector<256x128xf32>
    %c0_6 = arith.constant 0 : index
    %c0_7 = arith.constant 0 : index
    %c0_8 = arith.constant 0 : index
    %9 = vector.load %arg11[%c0_6, %c0_7, %c0_8] : memref<1x256x128xf32, #tpu.memory_space<vmem>>, vector<1x256x128xf32>
    %10 = vector.shape_cast %9 : vector<1x256x128xf32> to vector<256x128xf32>
    %11 = vector.shape_cast %8 : vector<256x128xf32> to vector<1x256x128xf32>
    tpu.vector_store %arg11[%c0_6, %c0_7, %c0_8], %11 {strides = array<i32>} : memref<1x256x128xf32, #tpu.memory_space<vmem>>, vector<1x256x128xf32>,
    return
  }
  func.func @transform_0(%arg0: i32, %arg1: i32, %arg2: i32) -> (i32, i32) {
    %c0_i32 = arith.constant 0 : i32
    %c0_i32_0 = arith.constant 0 : i32
    return %arg1, %c0_i32 : i32, i32
  }
  func.func @transform_1(%arg0: i32, %arg1: i32, %arg2: i32) -> (i32, i32, i32) {
    %c0_i32 = arith.constant 0 : i32
    %c0_i32_0 = arith.constant 0 : i32
    return %arg0, %arg1, %c0_i32 : i32, i32, i32
  }
  func.func @transform_2(%arg0: i32, %arg1: i32, %arg2: i32) -> (i32, i32, i32) {
    %c0_i32 = arith.constant 0 : i32
    %c0_i32_0 = arith.constant 0 : i32
    return %arg0, %arg1, %c0_i32 : i32, i32, i32
  }
  func.func @transform_3(%arg0: i32, %arg1: i32, %arg2: i32) -> (i32, i32) {
    %c0_i32 = arith.constant 0 : i32
    %c0_i32_0 = arith.constant 0 : i32
    %c0_i32_1 = arith.constant 0 : i32
    return %c0_i32, %c0_i32_0 : i32, i32
  }
  func.func @transform_4(%arg0: i32, %arg1: i32, %arg2: i32) -> (i32, i32) {
    %c0_i32 = arith.constant 0 : i32
    %c0_i32_0 = arith.constant 0 : i32
    %c0_i32_1 = arith.constant 0 : i32
    return %c0_i32, %c0_i32_0 : i32, i32
  }
  func.func @transform_5(%arg0: i32, %arg1: i32, %arg2: i32) -> (i32, i32) {
    %c0_i32 = arith.constant 0 : i32
    %c0_i32_0 = arith.constant 0 : i32
    %c0_i32_1 = arith.constant 0 : i32
    return %c0_i32, %c0_i32_0 : i32, i32
  }
  func.func @transform_6(%arg0: i32, %arg1: i32, %arg2: i32) -> (i32, i32) {
    %c0_i32 = arith.constant 0 : i32
    %c0_i32_0 = arith.constant 0 : i32
    return %c0_i32, %arg2 : i32, i32
  }
  func.func @transform_7(%arg0: i32, %arg1: i32, %arg2: i32) -> (i32, i32) {
    %c0_i32 = arith.constant 0 : i32
    %c0_i32_0 = arith.constant 0 : i32
    return %c0_i32, %arg2 : i32, i32
  }
  func.func @transform_8(%arg0: i32, %arg1: i32, %arg2: i32) -> (i32, i32, i32) {
    %c0_i32 = arith.constant 0 : i32
    return %arg0, %arg1, %arg2 : i32, i32, i32
  }
}

</mosaic_0001>

<llo_original>
// kernel: wolo_attention_pallas.1
$region0: #{wolo_attention_pallas.1}
  #allocation0 [shape = 'u32[]', space=smem, size = 0x4, offset = 0x4, fixed_abs, tag = 'smem constant byte address 0x4 - core index']
  #allocation1 [shape = 'u32[144,128]{1,0:T(1,128)}', space=vmem, size = 0x12000, scoped, tag = 'internal scratch']
  #allocation2 [shape = 'f32[256,128]{1,0:T(8,128)}', space=vmem, size = 0x20000, scoped, tag = 'scratch operand']
  %s0 = inlined_call_operand.vmem [shape: s32[256,1], index: 0, kind: input, shape index: {}]
  %s1 = inlined_call_operand.vmem [shape: f32[2,256,128], index: 1, kind: input, shape index: {}]
  %s2 = inlined_call_operand.vmem [shape: f32[2,256,256], index: 2, kind: input, shape index: {}]
  %s3 = inlined_call_operand.vmem [shape: f32[128,128], index: 3, kind: input, shape index: {}]
  %s4 = inlined_call_operand.vmem [shape: f32[1,128], index: 4, kind: input, shape index: {}]
  %s5 = inlined_call_operand.vmem [shape: f32[128,128], index: 5, kind: input, shape index: {}]
  %s6 = inlined_call_operand.vmem [shape: f32[128,128], index: 6, kind: input, shape index: {}]
  %s7 = inlined_call_operand.vmem [shape: f32[1,128], index: 7, kind: input, shape index: {}]
  %s8 = inlined_call_operand.hbm [shape: f32[2,256,128], index: 8, kind: output, shape index: {}]
  %s9 = sld [smem:[#allocation0]]
  $region69: #{wolo_attention_pallas.1} parent=0
    _
  %s11 = ssub.s32 1, %s9
  %s12 = scalar_select 0, %s11, %s9
  $region1: #{wolo_attention_pallas.1} parent=0
    #allocation3 [shape = 'u8[262144]{0}', space=vmem, size = 0x40000, scoped, tag = 'output window, operand 0']
    #allocation4 [shape = 's32[2]{0}', space=sflag, size = 0x8, scoped, tag = 'scoped memory for wolo_attention_pallas.1']
    %13 = vsyncpa [#allocation4], 0
    %s14 = scalar_lea.sflag [#allocation4], 1
    %15 = vsyncpa %s14, 0
    loop: start=0, step=1, limit=4
    $region2: #{wolo_attention_pallas.1} parent=1 // loop_pre_header
      _
    $region3: #{wolo_attention_pallas.1} parent=1 // loop_header
      %s17 = sphi 0, %s21
      %p18 = scmp.ge.s32.totalorder %s17, 4
      %s24 = sphi 0, %s43
      %s25 = sphi 0, %s39
      %s26 = sphi 0, %s35
      %s27 = sphi 0, %s24
      %s28 = sphi 0, %s25
      %s29 = sphi 0, %s26
      %s30 = sphi 0, %s27
      %s31 = sphi 0, %s28
      %s32 = sphi 0, %s29
      %s46 = sphi 0, %s48
      %s49 = sphi 0, %s46
      %s50 = sphi 0, %s49
      %s66 = sphi 0, %s50
      %s74 = sphi 0, %s76
      %s77 = sphi 0, %s74
      %s78 = sphi 0, %s77
      %s94 = sphi 0, %s78
      %s102 = sphi 0, %s104
      %s105 = sphi 0, %s102
      %s106 = sphi 0, %s105
      %s122 = sphi 0, %s106
      %s126 = sphi 0, %s126
      %s128 = sphi 0, %s126
      %s129 = sphi 0, %s128
      %s143 = sphi 0, %s129
      %s147 = sphi 0, %s147
      %s149 = sphi 0, %s147
      %s150 = sphi 0, %s149
      %s164 = sphi 0, %s150
      %s168 = sphi 0, %s168
      %s170 = sphi 0, %s168
      %s171 = sphi 0, %s170
      %s185 = sphi 0, %s171
      %s191 = sphi 0, %s193
      %s194 = sphi 0, %s191
      %s195 = sphi 0, %s194
      %s211 = sphi 0, %s195
      %s217 = sphi 0, %s219
      %s220 = sphi 0, %s217
      %s221 = sphi 0, %s220
      %s237 = sphi 0, %s221
      %s247 = sphi 0, %s249
      %s250 = sphi 0, %s247
      %s251 = sphi 0, %s250
      %s267 = sphi 0, %s251
    $region4: #{wolo_attention_pallas.1} parent=1 // loop_header_branch
      %20 = sbr.rel (%p18) target = $region8
    $region5: #{wolo_attention_pallas.1} parent=1 // loop_body
      %s22 = ssub.s32 %s17, 1
      %s23 = ssub.s32 %s17, 2
      %s33 = sadd.s32 1, %s26
      %p34 = scmp.ge.s32.totalorder %s33, 1
      %s35 = scalar_select %p34, 0, %s33
      %s36 = sadd.s32 1, %s25
      %s37 = scalar_select %p34, %s36, %s25
      %p38 = scmp.ge.s32.totalorder %s37, 1
      %s39 = scalar_select %p38, 0, %s37
      %s40 = sadd.s32 1, %s24
      %s41 = scalar_select %p38, %s40, %s24
      %p42 = scmp.ge.s32.totalorder %s41, 2
      %s43 = scalar_select %p42, 0, %s41
      %s44 = ssub.s32 %s25, %s39
      %p45 = scmp.eq.s32.totalorder %s44, 0
      %s47 = sadd.s32 %s46, 1
      %s48 = scalar_select %p45, %s46, %s47
      %p51 = pneg %p45
      %p52 = scmp.eq.s32.totalorder %s17, 1
      %p53 = por %p51, %p52
      %p54 = scmp.ne.s32.totalorder %s46, %s49
      %p55 = scmp.eq.s32.totalorder %s17, 0
      %p56 = por %p54, %p55
      %p57 = scmp.ne.s32.totalorder %s46, %s49
      %p58 = scmp.eq.s32.totalorder %s22, 1
      %p59 = por %p57, %p58
      %p60 = scmp.ne.s32.totalorder %s49, %s50
      %p61 = scmp.eq.s32.totalorder %s22, 0
      %p62 = por %p60, %p61
      %p63 = scmp.ne.s32.totalorder %s49, %s50
      %p64 = scmp.eq.s32.totalorder %s23, 1
      %p65 = por %p63, %p64
      %p67 = scmp.ne.s32.totalorder %s50, %s66
      %p68 = scmp.eq.s32.totalorder %s23, 0
      %p69 = por %p67, %p68
      %s70 = ssub.s32 %s24, %s43
      %s71 = ssub.s32 %s25, %s39
      %s72 = sor.u32 %s70, %s71
      %p73 = scmp.eq.s32.totalorder %s72, 0
      %s75 = sadd.s32 %s74, 1
      %s76 = scalar_select %p73, %s74, %s75
      %p79 = pneg %p73
      %p80 = scmp.eq.s32.totalorder %s17, 1
      %p81 = por %p79, %p80
      %p82 = scmp.ne.s32.totalorder %s74, %s77
      %p83 = scmp.eq.s32.totalorder %s17, 0
      %p84 = por %p82, %p83
      %p85 = scmp.ne.s32.totalorder %s74, %s77
      %p86 = scmp.eq.s32.totalorder %s22, 1
      %p87 = por %p85, %p86
      %p88 = scmp.ne.s32.totalorder %s77, %s78
      %p89 = scmp.eq.s32.totalorder %s22, 0
      %p90 = por %p88, %p89
      %p91 = scmp.ne.s32.totalorder %s77, %s78
      %p92 = scmp.eq.s32.totalorder %s23, 1
      %p93 = por %p91, %p92
      %p95 = scmp.ne.s32.totalorder %s78, %s94
      %p96 = scmp.eq.s32.totalorder %s23, 0
      %p97 = por %p95, %p96
      %s98 = ssub.s32 %s24, %s43
      %s99 = ssub.s32 %s25, %s39
      %s100 = sor.u32 %s98, %s99
      %p101 = scmp.eq.s32.totalorder %s100, 0
      %s103 = sadd.s32 %s102, 1
      %s104 = scalar_select %p101, %s102, %s103
      %p107 = pneg %p101
      %p108 = scmp.eq.s32.totalorder %s17, 1
      %p109 = por %p107, %p108
      %p110 = scmp.ne.s32.totalorder %s102, %s105
      %p111 = scmp.eq.s32.totalorder %s17, 0
      %p112 = por %p110, %p111
      %p113 = scmp.ne.s32.totalorder %s102, %s105
      %p114 = scmp.eq.s32.totalorder %s22, 1
      %p115 = por %p113, %p114
      %p116 = scmp.ne.s32.totalorder %s105, %s106
      %p117 = scmp.eq.s32.totalorder %s22, 0
      %p118 = por %p116, %p117
      %p119 = scmp.ne.s32.totalorder %s105, %s106
      %p120 = scmp.eq.s32.totalorder %s23, 1
      %p121 = por %p119, %p120
      %p123 = scmp.ne.s32.totalorder %s106, %s122
      %p124 = scmp.eq.s32.totalorder %s23, 0
      %p125 = por %p123, %p124
      %s127 = sadd.s32 %s126, 1
      %p130 = scmp.eq.s32.totalorder %s17, 1
      %p131 = scmp.ne.s32.totalorder %s126, %s128
      %p132 = scmp.eq.s32.totalorder %s17, 0
      %p133 = por %p131, %p132
      %p134 = scmp.ne.s32.totalorder %s126, %s128
      %p135 = scmp.eq.s32.totalorder %s22, 1
      %p136 = por %p134, %p135
      %p137 = scmp.ne.s32.totalorder %s128, %s129
      %p138 = scmp.eq.s32.totalorder %s22, 0
      %p139 = por %p137, %p138
      %p140 = scmp.ne.s32.totalorder %s128, %s129
      %p141 = scmp.eq.s32.totalorder %s23, 1
      %p142 = por %p140, %p141
      %p144 = scmp.ne.s32.totalorder %s129, %s143
      %p145 = scmp.eq.s32.totalorder %s23, 0
      %p146 = por %p144, %p145
      %s148 = sadd.s32 %s147, 1
      %p151 = scmp.eq.s32.totalorder %s17, 1
      %p152 = scmp.ne.s32.totalorder %s147, %s149
      %p153 = scmp.eq.s32.totalorder %s17, 0
      %p154 = por %p152, %p153
      %p155 = scmp.ne.s32.totalorder %s147, %s149
      %p156 = scmp.eq.s32.totalorder %s22, 1
      %p157 = por %p155, %p156
      %p158 = scmp.ne.s32.totalorder %s149, %s150
      %p159 = scmp.eq.s32.totalorder %s22, 0
      %p160 = por %p158, %p159
      %p161 = scmp.ne.s32.totalorder %s149, %s150
      %p162 = scmp.eq.s32.totalorder %s23, 1
      %p163 = por %p161, %p162
      %p165 = scmp.ne.s32.totalorder %s150, %s164
      %p166 = scmp.eq.s32.totalorder %s23, 0
      %p167 = por %p165, %p166
      %s169 = sadd.s32 %s168, 1
      %p172 = scmp.eq.s32.totalorder %s17, 1
      %p173 = scmp.ne.s32.totalorder %s168, %s170
      %p174 = scmp.eq.s32.totalorder %s17, 0
      %p175 = por %p173, %p174
      %p176 = scmp.ne.s32.totalorder %s168, %s170
      %p177 = scmp.eq.s32.totalorder %s22, 1
      %p178 = por %p176, %p177
      %p179 = scmp.ne.s32.totalorder %s170, %s171
      %p180 = scmp.eq.s32.totalorder %s22, 0
      %p181 = por %p179, %p180
      %p182 = scmp.ne.s32.totalorder %s170, %s171
      %p183 = scmp.eq.s32.totalorder %s23, 1
      %p184 = por %p182, %p183
      %p186 = scmp.ne.s32.totalorder %s171, %s185
      %p187 = scmp.eq.s32.totalorder %s23, 0
      %p188 = por %p186, %p187
      %s189 = ssub.s32 %s26, %s35
      %p190 = scmp.eq.s32.totalorder %s189, 0
      %s192 = sadd.s32 %s191, 1
      %s193 = scalar_select %p190, %s191, %s192
      %p196 = pneg %p190
      %p197 = scmp.eq.s32.totalorder %s17, 1
      %p198 = por %p196, %p197
      %p199 = scmp.ne.s32.totalorder %s191, %s194
      %p200 = scmp.eq.s32.totalorder %s17, 0
      %p201 = por %p199, %p200
      %p202 = scmp.ne.s32.totalorder %s191, %s194
      %p203 = scmp.eq.s32.totalorder %s22, 1
      %p204 = por %p202, %p203
      %p205 = scmp.ne.s32.totalorder %s194, %s195
      %p206 = scmp.eq.s32.totalorder %s22, 0
      %p207 = por %p205, %p206
      %p208 = scmp.ne.s32.totalorder %s194, %s195
      %p209 = scmp.eq.s32.totalorder %s23, 1
      %p210 = por %p208, %p209
      %p212 = scmp.ne.s32.totalorder %s195, %s211
      %p213 = scmp.eq.s32.totalorder %s23, 0
      %p214 = por %p212, %p213
      %s215 = ssub.s32 %s26, %s35
      %p216 = scmp.eq.s32.totalorder %s215, 0
      %s218 = sadd.s32 %s217, 1
      %s219 = scalar_select %p216, %s217, %s218
      %p222 = pneg %p216
      %p223 = scmp.eq.s32.totalorder %s17, 1
      %p224 = por %p222, %p223
      %p225 = scmp.ne.s32.totalorder %s217, %s220
      %p226 = scmp.eq.s32.totalorder %s17, 0
      %p227 = por %p225, %p226
      %p228 = scmp.ne.s32.totalorder %s217, %s220
      %p229 = scmp.eq.s32.totalorder %s22, 1
      %p230 = por %p228, %p229
      %p231 = scmp.ne.s32.totalorder %s220, %s221
      %p232 = scmp.eq.s32.totalorder %s22, 0
      %p233 = por %p231, %p232
      %p234 = scmp.ne.s32.totalorder %s220, %s221
      %p235 = scmp.eq.s32.totalorder %s23, 1
      %p236 = por %p234, %p235
      %p238 = scmp.ne.s32.totalorder %s221, %s237
      %p239 = scmp.eq.s32.totalorder %s23, 0
      %p240 = por %p238, %p239
      %s241 = ssub.s32 %s24, %s43
      %s242 = ssub.s32 %s25, %s39
      %s243 = sor.u32 %s241, %s242
      %s244 = ssub.s32 %s26, %s35
      %s245 = sor.u32 %s243, %s244
      %p246 = scmp.eq.s32.totalorder %s245, 0
      %s248 = sadd.s32 %s247, 1
      %s249 = scalar_select %p246, %s247, %s248
      %p252 = pneg %p246
      %p253 = scmp.eq.s32.totalorder %s17, 1
      %p254 = por %p252, %p253
      %p255 = scmp.ne.s32.totalorder %s247, %s250
      %p256 = scmp.eq.s32.totalorder %s17, 0
      %p257 = por %p255, %p256
      %p258 = scmp.ne.s32.totalorder %s247, %s250
      %p259 = scmp.eq.s32.totalorder %s22, 1
      %p260 = por %p258, %p259
      %p261 = scmp.ne.s32.totalorder %s250, %s251
      %p262 = scmp.eq.s32.totalorder %s22, 0
      %p263 = por %p261, %p262
      %p264 = scmp.ne.s32.totalorder %s250, %s251
      %p265 = scmp.eq.s32.totalorder %s23, 1
      %p266 = por %p264, %p265
      %p268 = scmp.ne.s32.totalorder %s251, %s267
      %p269 = scmp.eq.s32.totalorder %s23, 0
      %p270 = por %p268, %p269
      %p271 = scmp.le.s32.totalorder 1, %s17
      %p272 = scmp.lt.s32.totalorder %s17, 3
      %p273 = pnand %p271, %p272
      %p274 = pneg %p273
      // Predicated region
      $region9: #{wolo_attention_pallas.1} parent=5 // pred_check
        _
      $region10: #{wolo_attention_pallas.1} parent=5 // pred_check_branch
        %276 = sbr.rel (%p273) target = $region12
      $region11: #{wolo_attention_pallas.1} parent=5 // pred_region
        %s277 = ssub.s32 %s17, 1
        // Predicated region
        $region13: #{wolo_attention_pallas.1} parent=11 // pred_check
          %p278 = pneg %p62
        $region14: #{wolo_attention_pallas.1} parent=11 // pred_check_branch
          %280 = sbr.rel (%p278) target = $region16
        $region15: #{wolo_attention_pallas.1} parent=11 // pred_region
          %s281 = smul.u32 32, %s28
          %p282 = scmp.lt.s32.totalorder %s281, 31
          %s283 = scalar_select %p282, %s281, 31
          %s284 = smul.addr %s283, 8
          %s285 = scalar_lea.vmem %s0, %s284
          %s286 = smul.u32 32, %s28
        $region16: #{wolo_attention_pallas.1} parent=11 // pred_fallthru
          _
        // Predicated region
        $region17: #{wolo_attention_pallas.1} parent=11 // pred_check
          %p287 = pneg %p139
        $region18: #{wolo_attention_pallas.1} parent=11 // pred_check_branch
          %289 = sbr.rel (%p287) target = $region20
        $region19: #{wolo_attention_pallas.1} parent=11 // pred_region
          _
        $region20: #{wolo_attention_pallas.1} parent=11 // pred_fallthru
          _
        // Predicated region
        $region21: #{wolo_attention_pallas.1} parent=11 // pred_check
          %p290 = pneg %p160
        $region22: #{wolo_attention_pallas.1} parent=11 // pred_check_branch
          %292 = sbr.rel (%p290) target = $region24
        $region23: #{wolo_attention_pallas.1} parent=11 // pred_region
          _
        $region24: #{wolo_attention_pallas.1} parent=11 // pred_fallthru
          _
        // Predicated region
        $region25: #{wolo_attention_pallas.1} parent=11 // pred_check
          %p293 = pneg %p181
        $region26: #{wolo_attention_pallas.1} parent=11 // pred_check_branch
          %295 = sbr.rel (%p293) target = $region28
        $region27: #{wolo_attention_pallas.1} parent=11 // pred_region
          _
        $region28: #{wolo_attention_pallas.1} parent=11 // pred_fallthru
          _
        // Predicated region
        $region29: #{wolo_attention_pallas.1} parent=11 // pred_check
          %p296 = pneg %p207
        $region30: #{wolo_attention_pallas.1} parent=11 // pred_check_branch
          %298 = sbr.rel (%p296) target = $region32
        $region31: #{wolo_attention_pallas.1} parent=11 // pred_region
          %p299 = scmp.lt.s32.totalorder %s29, 0
          %s300 = scalar_select %p299, %s29, 0
          %s301 = smul.addr %s300, 8
          %s302 = scalar_lea.vmem %s6, %s301
        $region32: #{wolo_attention_pallas.1} parent=11 // pred_fallthru
          _
        // Predicated region
        $region33: #{wolo_attention_pallas.1} parent=11 // pred_check
          %p303 = pneg %p233
        $region34: #{wolo_attention_pallas.1} parent=11 // pred_check_branch
          %305 = sbr.rel (%p303) target = $region36
        $region35: #{wolo_attention_pallas.1} parent=11 // pred_region
          %p306 = scmp.lt.s32.totalorder %s29, 0
          %s307 = scalar_select %p306, %s29, 0
          %s308 = scalar_lea.vmem %s7, %s307
        $region36: #{wolo_attention_pallas.1} parent=11 // pred_fallthru
          _
      $region12: #{wolo_attention_pallas.1} parent=5 // pred_fallthru
        _
      %p309 = scmp.lt.s32.totalorder %s17, 2
      // Predicated region
      $region37: #{wolo_attention_pallas.1} parent=5 // pred_check
        %p310 = pneg %p309
      $region38: #{wolo_attention_pallas.1} parent=5 // pred_check_branch
        %312 = sbr.rel (%p310) target = $region40
      $region39: #{wolo_attention_pallas.1} parent=5 // pred_region
        // Predicated region
        $region41: #{wolo_attention_pallas.1} parent=39 // pred_check
          %p313 = pneg %p84
        $region42: #{wolo_attention_pallas.1} parent=39 // pred_check_branch
          %315 = sbr.rel (%p313) target = $region44
        $region43: #{wolo_attention_pallas.1} parent=39 // pred_region
          %s316 = smul.u32 32, %s25
          %p317 = scmp.lt.s32.totalorder %s24, 1
          %s318 = scalar_select %p317, %s24, 1
          %p319 = scmp.lt.s32.totalorder %s316, 31
          %s320 = scalar_select %p319, %s316, 31
          %s321 = smul.addr %s318, 32
          %s322 = sadd.s32 %s320, %s321
          %s323 = smul.addr %s322, 8
          %s324 = scalar_lea.vmem %s1, %s323
          %s325 = smul.u32 32, %s25
        $region44: #{wolo_attention_pallas.1} parent=39 // pred_fallthru
          _
        // Predicated region
        $region45: #{wolo_attention_pallas.1} parent=39 // pred_check
          %p326 = pneg %p112
        $region46: #{wolo_attention_pallas.1} parent=39 // pred_check_branch
          %328 = sbr.rel (%p326) target = $region48
        $region47: #{wolo_attention_pallas.1} parent=39 // pred_region
          %s329 = smul.u32 32, %s25
          %p330 = scmp.lt.s32.totalorder %s24, 1
          %s331 = scalar_select %p330, %s24, 1
          %p332 = scmp.lt.s32.totalorder %s329, 31
          %s333 = scalar_select %p332, %s329, 31
          %s334 = smul.addr %s333, 2
          %s335 = smul.addr %s331, 64
          %s336 = sadd.s32 %s334, %s335
          %s337 = smul.addr %s336, 8
          %s338 = scalar_lea.vmem %s2, %s337
          %s339 = smul.u32 32, %s25
        $region48: #{wolo_attention_pallas.1} parent=39 // pred_fallthru
          _
      $region40: #{wolo_attention_pallas.1} parent=5 // pred_fallthru
        _
      %p340 = scmp.le.s32.totalorder 1, %s17
      %p341 = scmp.lt.s32.totalorder %s17, 3
      %p342 = pnand %p340, %p341
      %p343 = pneg %p342
      // Predicated region
      $region49: #{wolo_attention_pallas.1} parent=5 // pred_check
        _
      $region50: #{wolo_attention_pallas.1} parent=5 // pred_check_branch
        %345 = sbr.rel (%p342) target = $region52
      $region51: #{wolo_attention_pallas.1} parent=5 // pred_region
        %s346 = ssub.s32 %s17, 1
        %s347 = smul.u32 32, %s28
        %p348 = scmp.lt.s32.totalorder %s347, 31
        %s349 = scalar_select %p348, %s347, 31
        %s350 = smul.addr %s349, 8
        %s351 = scalar_lea.vmem %s0, %s350
        %p352 = pneg %p62
        %p353 = pneg %p59
        %s354 = smul.u32 32, %s28
        %p355 = scmp.lt.s32.totalorder %s27, 1
        %s356 = scalar_select %p355, %s27, 1
        %p357 = scmp.lt.s32.totalorder %s354, 31
        %s358 = scalar_select %p357, %s354, 31
        %s359 = smul.addr %s356, 32
        %s360 = sadd.s32 %s358, %s359
        %s361 = smul.addr %s360, 8
        %s362 = scalar_lea.vmem %s1, %s361
        %p363 = pneg %p90
        %p364 = pneg %p87
        %s365 = smul.u32 32, %s28
        %p366 = scmp.lt.s32.totalorder %s27, 1
        %s367 = scalar_select %p366, %s27, 1
        %p368 = scmp.lt.s32.totalorder %s365, 31
        %s369 = scalar_select %p368, %s365, 31
        %s370 = smul.addr %s369, 2
        %s371 = smul.addr %s367, 64
        %s372 = sadd.s32 %s370, %s371
        %s373 = smul.addr %s372, 8
        %s374 = scalar_lea.vmem %s2, %s373
        %p375 = pneg %p118
        %p376 = pneg %p115
        %p377 = pneg %p139
        %p378 = pneg %p136
        %p379 = pneg %p160
        %p380 = pneg %p157
        %p381 = pneg %p181
        %p382 = pneg %p178
        %p383 = scmp.lt.s32.totalorder %s29, 0
        %s384 = scalar_select %p383, %s29, 0
        %s385 = smul.addr %s384, 8
        %s386 = scalar_lea.vmem %s6, %s385
        %p387 = pneg %p207
        %p388 = pneg %p204
        %p389 = scmp.lt.s32.totalorder %s29, 0
        %s390 = scalar_select %p389, %s29, 0
        %s391 = scalar_lea.vmem %s7, %s390
        %p392 = pneg %p233
        %p393 = pneg %p230
        %p394 = pneg %p263
        %p395 = pneg %p260
        %s396 = sand.u32 %s250, 1
        %s397 = scalar_lea.sflag [#allocation4], %s396
        %s398 = sand.u32 %s250, 1
        %s399 = smul.addr %s398, 256
        %s400 = scalar_lea.vmem [#allocation3], %s399
        %s401 = smul.u32 32, %s28
        %p402 = scmp.lt.s32.totalorder %s401, 31
        %s403 = scalar_select %p402, %s401, 31
        %s404 = smul.addr %s403, 8
        %s405 = scalar_lea.vmem %s0, %s404
        %s406 = smul.u32 32, %s28
        %s407 = smul.u32 32, %s28
        %p408 = scmp.lt.s32.totalorder %s27, 1
        %s409 = scalar_select %p408, %s27, 1
        %p410 = scmp.lt.s32.totalorder %s407, 31
        %s411 = scalar_select %p410, %s407, 31
        %s412 = smul.addr %s409, 32
        %s413 = sadd.s32 %s411, %s412
        %s414 = smul.addr %s413, 8
        %s415 = scalar_lea.vmem %s1, %s414
        %s416 = smul.u32 32, %s28
        %s417 = smul.u32 32, %s28
        %p418 = scmp.lt.s32.totalorder %s27, 1
        %s419 = scalar_select %p418, %s27, 1
        %p420 = scmp.lt.s32.totalorder %s417, 31
        %s421 = scalar_select %p420, %s417, 31
        %s422 = smul.addr %s421, 2
        %s423 = smul.addr %s419, 64
        %s424 = sadd.s32 %s422, %s423
        %s425 = smul.addr %s424, 8
        %s426 = scalar_lea.vmem %s2, %s425
        %s427 = smul.u32 32, %s28
        %p428 = scmp.lt.s32.totalorder %s29, 0
        %s429 = scalar_select %p428, %s29, 0
        %s430 = smul.addr %s429, 8
        %s431 = scalar_lea.vmem %s6, %s430
        %p432 = scmp.lt.s32.totalorder %s29, 0
        %s433 = scalar_select %p432, %s29, 0
        %s434 = scalar_lea.vmem %s7, %s433
        %s435 = smul.u32 32, %s28
        %p436 = scmp.eq.s32.totalorder %s29, 0
        // Predicated region
        $region53: #{wolo_attention_pallas.1} parent=51 // pred_check
          %p437 = pneg %p436
        $region54: #{wolo_attention_pallas.1} parent=51 // pred_check_branch
          %439 = sbr.rel (%p437) target = $region56
        $region55: #{wolo_attention_pallas.1} parent=51 // pred_region
          %v440 = vld [vmem:[%s415] sm:$0xff]
          %v441 = vld [vmem:[%s415 + $0x8] sm:$0xff]
          %v442 = vld [vmem:[%s415 + $0x10] sm:$0xff]
          %v443 = vld [vmem:[%s415 + $0x18] sm:$0xff]
          %v444 = vld [vmem:[%s415 + $0x20] sm:$0xff]
          %v445 = vld [vmem:[%s415 + $0x28] sm:$0xff]
          %v446 = vld [vmem:[%s415 + $0x30] sm:$0xff]
          %v447 = vld [vmem:[%s415 + $0x38] sm:$0xff]
          %v448 = vld [vmem:[%s415 + $0x40] sm:$0xff]
          %v449 = vld [vmem:[%s415 + $0x48] sm:$0xff]
          %v450 = vld [vmem:[%s415 + $0x50] sm:$0xff]
          %v451 = vld [vmem:[%s415 + $0x58] sm:$0xff]
          %v452 = vld [vmem:[%s415 + $0x60] sm:$0xff]
          %v453 = vld [vmem:[%s415 + $0x68] sm:$0xff]
          %v454 = vld [vmem:[%s415 + $0x70] sm:$0xff]
          %v455 = vld [vmem:[%s415 + $0x78] sm:$0xff]
          %v456 = vld [vmem:[%s415 + $0x80] sm:$0xff]
          %v457 = vld [vmem:[%s415 + $0x88] sm:$0xff]
          %v458 = vld [vmem:[%s415 + $0x90] sm:$0xff]
          %v459 = vld [vmem:[%s415 + $0x98] sm:$0xff]
          %v460 = vld [vmem:[%s415 + $0xa0] sm:$0xff]
          %v461 = vld [vmem:[%s415 + $0xa8] sm:$0xff]
          %v462 = vld [vmem:[%s415 + $0xb0] sm:$0xff]
          %v463 = vld [vmem:[%s415 + $0xb8] sm:$0xff]
          %v464 = vld [vmem:[%s415 + $0xc0] sm:$0xff]
          %v465 = vld [vmem:[%s415 + $0xc8] sm:$0xff]
          %v466 = vld [vmem:[%s415 + $0xd0] sm:$0xff]
          %v467 = vld [vmem:[%s415 + $0xd8] sm:$0xff]
          %v468 = vld [vmem:[%s415 + $0xe0] sm:$0xff]
          %v469 = vld [vmem:[%s415 + $0xe8] sm:$0xff]
          %v470 = vld [vmem:[%s415 + $0xf0] sm:$0xff]
          %v471 = vld [vmem:[%s415 + $0xf8] sm:$0xff]
          %v472 = vld [vmem:[%s3] sm:$0xff]
          %v473 = vld [vmem:[%s3 + $0x8] sm:$0xff]
          %v474 = vld [vmem:[%s3 + $0x10] sm:$0xff]
          %v475 = vld [vmem:[%s3 + $0x18] sm:$0xff]
          %v476 = vld [vmem:[%s3 + $0x20] sm:$0xff]
          %v477 = vld [vmem:[%s3 + $0x28] sm:$0xff]
          %v478 = vld [vmem:[%s3 + $0x30] sm:$0xff]
          %v479 = vld [vmem:[%s3 + $0x38] sm:$0xff]
          %v480 = vld [vmem:[%s3 + $0x40] sm:$0xff]
          %v481 = vld [vmem:[%s3 + $0x48] sm:$0xff]
          %v482 = vld [vmem:[%s3 + $0x50] sm:$0xff]
          %v483 = vld [vmem:[%s3 + $0x58] sm:$0xff]
          %v484 = vld [vmem:[%s3 + $0x60] sm:$0xff]
          %v485 = vld [vmem:[%s3 + $0x68] sm:$0xff]
          %v486 = vld [vmem:[%s3 + $0x70] sm:$0xff]
          %v487 = vld [vmem:[%s3 + $0x78] sm:$0xff]
          %v488 = vld [vmem:[%s4] sm:$0x1]
          %v490 = vlaneseq
          %v491 = vshrl.u32 %v490, 7
          %v492 = vsub.s32 0, %v491
          %v493 = vrot.slane %v488, %v492
          %495 = vmatprep.subr.mxu0 0.0
          %496 = vmatpush1.msra.mxu0 %v472
          %497 = vmatprep.subr.mxu0 0.0
          %498 = vmatpush1.msra.mxu0 %v473
          %499 = vmatprep.subr.mxu0 0.0
          %500 = vmatpush1.msra.mxu0 %v474
          %501 = vmatprep.subr.mxu0 0.0
          %502 = vmatpush1.msra.mxu0 %v475
          %503 = vmatprep.subr.mxu0 0.0
          %504 = vmatpush1.msra.mxu0 %v476
          %505 = vmatprep.subr.mxu0 0.0
          %506 = vmatpush1.msra.mxu0 %v477
          %507 = vmatprep.subr.mxu0 0.0
          %508 = vmatpush1.msra.mxu0 %v478
          %509 = vmatprep.subr.mxu0 0.0
          %510 = vmatpush1.msra.mxu0 %v479
          %511 = vmatprep.subr.mxu0 0.0
          %512 = vmatpush1.msra.mxu0 %v480
          %513 = vmatprep.subr.mxu0 0.0
          %514 = vmatpush1.msra.mxu0 %v481
          %515 = vmatprep.subr.mxu0 0.0
          %516 = vmatpush1.msra.mxu0 %v482
          %517 = vmatprep.subr.mxu0 0.0
          %518 = vmatpush1.msra.mxu0 %v483
          %519 = vmatprep.subr.mxu0 0.0
          %520 = vmatpush1.msra.mxu0 %v484
          %521 = vmatprep.subr.mxu0 0.0
          %522 = vmatpush1.msra.mxu0 %v485
          %523 = vmatprep.subr.mxu0 0.0
          %524 = vmatpush1.msra.mxu0 %v486
          %525 = vmatprep.subr.mxu0 0.0
          %526 = vmatpush1.msra.mxu0 %v487
          %527 = vmatprep.subr.mxu0 0.0
          %528 = vmatpush1.msra.mxu0 0.0
          %529 = vmatprep.subr.mxu0 0.0
          %530 = vmatpush1.msra.mxu0 0.0
          %531 = vmatprep.subr.mxu0 0.0
          %532 = vmatpush1.msra.mxu0 0.0
          %533 = vmatprep.subr.mxu0 0.0
          %534 = vmatpush1.msra.mxu0 0.0
          %535 = vmatprep.subr.mxu0 0.0
          %536 = vmatpush1.msra.mxu0 0.0
          %537 = vmatprep.subr.mxu0 0.0
          %538 = vmatpush1.msra.mxu0 0.0
          %539 = vmatprep.subr.mxu0 0.0
          %540 = vmatpush1.msra.mxu0 0.0
          %541 = vmatprep.subr.mxu0 0.0
          %542 = vmatpush1.msra.mxu0 0.0
          %543 = vmatprep.subr.mxu0 0.0
          %544 = vmatpush1.msra.mxu0 0.0
          %545 = vmatprep.subr.mxu0 0.0
          %546 = vmatpush1.msra.mxu0 0.0
          %547 = vmatprep.subr.mxu0 0.0
          %548 = vmatpush1.msra.mxu0 0.0
          %549 = vmatprep.subr.mxu0 0.0
          %550 = vmatpush1.msra.mxu0 0.0
          %551 = vmatprep.subr.mxu0 0.0
          %552 = vmatpush1.msra.mxu0 0.0
          %553 = vmatprep.subr.mxu0 0.0
          %554 = vmatpush1.msra.mxu0 0.0
          %555 = vmatprep.subr.mxu0 0.0
          %556 = vmatpush1.msra.mxu0 0.0
          %557 = vmatprep.subr.mxu0 0.0
          %558 = vmatpush1.msra.mxu0 0.0
          %559 = vmatprep.mubr.f32.mxu0 0.0
          %560 = vmatmul.mubr.f32.gmra.mrb[0].mxu0 %v440
          %v561 = vpop.f32.mrb[0].mxu0
          %v562 = vadd.f32 %v493, %v561
          %v563 = vpop.f32.mrb[0].mxu0
          %564 = vmatprep.mubr.f32.mxu0 0.0
          %565 = vmatmul.mubr.f32.gmra.mrb[0].mxu0 %v441
          %v566 = vpop.f32.mrb[0].mxu0
          %v567 = vadd.f32 %v493, %v566
          %v568 = vpop.f32.mrb[0].mxu0
          %569 = vmatprep.mubr.f32.mxu0 0.0
          %570 = vmatmul.mubr.f32.gmra.mrb[0].mxu0 %v442
          %v571 = vpop.f32.mrb[0].mxu0
          %v572 = vadd.f32 %v493, %v571
          %v573 = vpop.f32.mrb[0].mxu0
          %574 = vmatprep.mubr.f32.mxu0 0.0
          %575 = vmatmul.mubr.f32.gmra.mrb[0].mxu0 %v443
          %v576 = vpop.f32.mrb[0].mxu0
          %v577 = vadd.f32 %v493, %v576
          %v578 = vpop.f32.mrb[0].mxu0
          %579 = vmatprep.mubr.f32.mxu0 0.0
          %580 = vmatmul.mubr.f32.gmra.mrb[0].mxu0 %v444
          %v581 = vpop.f32.mrb[0].mxu0
          %v582 = vadd.f32 %v493, %v581
          %v583 = vpop.f32.mrb[0].mxu0
          %584 = vmatprep.mubr.f32.mxu0 0.0
          %585 = vmatmul.mubr.f32.gmra.mrb[0].mxu0 %v445
          %v586 = vpop.f32.mrb[0].mxu0
          %v587 = vadd.f32 %v493, %v586
          %v588 = vpop.f32.mrb[0].mxu0
          %589 = vmatprep.mubr.f32.mxu0 0.0
          %590 = vmatmul.mubr.f32.gmra.mrb[0].mxu0 %v446
          %v591 = vpop.f32.mrb[0].mxu0
          %v592 = vadd.f32 %v493, %v591
          %v593 = vpop.f32.mrb[0].mxu0
          %594 = vmatprep.mubr.f32.mxu0 0.0
          %595 = vmatmul.mubr.f32.gmra.mrb[0].mxu0 %v447
          %v596 = vpop.f32.mrb[0].mxu0
          %v597 = vadd.f32 %v493, %v596
          %v598 = vpop.f32.mrb[0].mxu0
          %599 = vmatprep.mubr.f32.mxu0 0.0
          %600 = vmatmul.mubr.f32.gmra.mrb[0].mxu0 %v448
          %v601 = vpop.f32.mrb[0].mxu0
          %v602 = vadd.f32 %v493, %v601
          %v603 = vpop.f32.mrb[0].mxu0
          %604 = vmatprep.mubr.f32.mxu0 0.0
          %605 = vmatmul.mubr.f32.gmra.mrb[0].mxu0 %v449
          %v606 = vpop.f32.mrb[0].mxu0
          %v607 = vadd.f32 %v493, %v606
          %v608 = vpop.f32.mrb[0].mxu0
          %609 = vmatprep.mubr.f32.mxu0 0.0
          %610 = vmatmul.mubr.f32.gmra.mrb[0].mxu0 %v450
          %v611 = vpop.f32.mrb[0].mxu0
          %v612 = vadd.f32 %v493, %v611
          %v613 = vpop.f32.mrb[0].mxu0
          %614 = vmatprep.mubr.f32.mxu0 0.0
          %615 = vmatmul.mubr.f32.gmra.mrb[0].mxu0 %v451
          %v616 = vpop.f32.mrb[0].mxu0
          %v617 = vadd.f32 %v493, %v616
          %v618 = vpop.f32.mrb[0].mxu0
          %619 = vmatprep.mubr.f32.mxu0 0.0
          %620 = vmatmul.mubr.f32.gmra.mrb[0].mxu0 %v452
          %v621 = vpop.f32.mrb[0].mxu0
          %v622 = vadd.f32 %v493, %v621
          %v623 = vpop.f32.mrb[0].mxu0
          %624 = vmatprep.mubr.f32.mxu0 0.0
          %625 = vmatmul.mubr.f32.gmra.mrb[0].mxu0 %v453
          %v626 = vpop.f32.mrb[0].mxu0
          %v627 = vadd.f32 %v493, %v626
          %v628 = vpop.f32.mrb[0].mxu0
          %629 = vmatprep.mubr.f32.mxu0 0.0
          %630 = vmatmul.mubr.f32.gmra.mrb[0].mxu0 %v454
          %v631 = vpop.f32.mrb[0].mxu0
          %v632 = vadd.f32 %v493, %v631
          %v633 = vpop.f32.mrb[0].mxu0
          %634 = vmatprep.mubr.f32.mxu0 0.0
          %635 = vmatmul.mubr.f32.gmra.mrb[0].mxu0 %v455
          %v636 = vpop.f32.mrb[0].mxu0
          %v637 = vadd.f32 %v493, %v636
          %v638 = vpop.f32.mrb[0].mxu0
          %639 = vmatprep.mubr.f32.mxu0 0.0
          %640 = vmatmul.mubr.f32.gmra.mrb[0].mxu0 %v456
          %v641 = vpop.f32.mrb[0].mxu0
          %v642 = vadd.f32 %v493, %v641
          %v643 = vpop.f32.mrb[0].mxu0
          %644 = vmatprep.mubr.f32.mxu0 0.0
          %645 = vmatmul.mubr.f32.gmra.mrb[0].mxu0 %v457
          %v646 = vpop.f32.mrb[0].mxu0
          %v647 = vadd.f32 %v493, %v646
          %v648 = vpop.f32.mrb[0].mxu0
          %649 = vmatprep.mubr.f32.mxu0 0.0
          %650 = vmatmul.mubr.f32.gmra.mrb[0].mxu0 %v458
          %v651 = vpop.f32.mrb[0].mxu0
          %v652 = vadd.f32 %v493, %v651
          %v653 = vpop.f32.mrb[0].mxu0
          %654 = vmatprep.mubr.f32.mxu0 0.0
          %655 = vmatmul.mubr.f32.gmra.mrb[0].mxu0 %v459
          %v656 = vpop.f32.mrb[0].mxu0
          %v657 = vadd.f32 %v493, %v656
          %v658 = vpop.f32.mrb[0].mxu0
          %659 = vmatprep.mubr.f32.mxu0 0.0
          %660 = vmatmul.mubr.f32.gmra.mrb[0].mxu0 %v460
          %v661 = vpop.f32.mrb[0].mxu0
          %v662 = vadd.f32 %v493, %v661
          %v663 = vpop.f32.mrb[0].mxu0
          %664 = vmatprep.mubr.f32.mxu0 0.0
          %665 = vmatmul.mubr.f32.gmra.mrb[0].mxu0 %v461
          %v666 = vpop.f32.mrb[0].mxu0
          %v667 = vadd.f32 %v493, %v666
          %v668 = vpop.f32.mrb[0].mxu0
          %669 = vmatprep.mubr.f32.mxu0 0.0
          %670 = vmatmul.mubr.f32.gmra.mrb[0].mxu0 %v462
          %v671 = vpop.f32.mrb[0].mxu0
          %v672 = vadd.f32 %v493, %v671
          %v673 = vpop.f32.mrb[0].mxu0
          %674 = vmatprep.mubr.f32.mxu0 0.0
          %675 = vmatmul.mubr.f32.gmra.mrb[0].mxu0 %v463
          %v676 = vpop.f32.mrb[0].mxu0
          %v677 = vadd.f32 %v493, %v676
          %v678 = vpop.f32.mrb[0].mxu0
          %679 = vmatprep.mubr.f32.mxu0 0.0
          %680 = vmatmul.mubr.f32.gmra.mrb[0].mxu0 %v464
          %v681 = vpop.f32.mrb[0].mxu0
          %v682 = vadd.f32 %v493, %v681
          %v683 = vpop.f32.mrb[0].mxu0
          %684 = vmatprep.mubr.f32.mxu0 0.0
          %685 = vmatmul.mubr.f32.gmra.mrb[0].mxu0 %v465
          %v686 = vpop.f32.mrb[0].mxu0
          %v687 = vadd.f32 %v493, %v686
          %v688 = vpop.f32.mrb[0].mxu0
          %689 = vmatprep.mubr.f32.mxu0 0.0
          %690 = vmatmul.mubr.f32.gmra.mrb[0].mxu0 %v466
          %v691 = vpop.f32.mrb[0].mxu0
          %v692 = vadd.f32 %v493, %v691
          %v693 = vpop.f32.mrb[0].mxu0
          %694 = vmatprep.mubr.f32.mxu0 0.0
          %695 = vmatmul.mubr.f32.gmra.mrb[0].mxu0 %v467
          %v696 = vpop.f32.mrb[0].mxu0
          %v697 = vadd.f32 %v493, %v696
          %v698 = vpop.f32.mrb[0].mxu0
          %699 = vmatprep.mubr.f32.mxu0 0.0
          %700 = vmatmul.mubr.f32.gmra.mrb[0].mxu0 %v468
          %v701 = vpop.f32.mrb[0].mxu0
          %v702 = vadd.f32 %v493, %v701
          %v703 = vpop.f32.mrb[0].mxu0
          %704 = vmatprep.mubr.f32.mxu0 0.0
          %705 = vmatmul.mubr.f32.gmra.mrb[0].mxu0 %v469
          %v706 = vpop.f32.mrb[0].mxu0
          %v707 = vadd.f32 %v493, %v706
          %v708 = vpop.f32.mrb[0].mxu0
          %709 = vmatprep.mubr.f32.mxu0 0.0
          %710 = vmatmul.mubr.f32.gmra.mrb[0].mxu0 %v470
          %v711 = vpop.f32.mrb[0].mxu0
          %v712 = vadd.f32 %v493, %v711
          %v713 = vpop.f32.mrb[0].mxu0
          %714 = vmatprep.mubr.f32.mxu0 0.0
          %715 = vmatmul.mubr.f32.gmra.mrb[0].mxu0 %v471
          %v716 = vpop.f32.mrb[0].mxu0
          %v717 = vadd.f32 %v493, %v716
          %v718 = vpop.f32.mrb[0].mxu0
          %719 = vdwg.mxu0
          %v720 = vand.u32 2147483647, %v562
          %vm721 = vcmp.le.f32.partialorder %v720, 0.7853982
          %vm722 = vcmp.lt.s32.totalorder %v562, 0
          %v723 = vand.u32 %v562, 2139095040
          %v724 = vshrl.u32 %v723, 23
          %v725 = vsub.s32 %v724, 127
          %v726 = vand.u32 2147483647, %v562
          %v727 = vand.u32 %v726, 8388607
          %v728 = vor.u32 %v727, 8388608
          %v729 = vsub.s32 0, %v728
          %v730 = vadd.s32 %v725, 1
          %vm731 = vcmp.gt.s32.totalorder %v730, 0
          %v732 = vsel %vm731, %v730, 0
          %v733 = vshrl.u32 %v732, 5
          %v734 = vand.u32 %v732, 31
          %v735 = vsub.s32 32, %v734
          %v736 = vshrl.u32 683565275, %v735
          %v737 = vshll.u32 683565275, %v734
          %v738 = vshrl.u32 2475754826, %v735
          %v739 = vor.u32 %v737, %v738
          %v740 = vshll.u32 2475754826, %v734
          %v741 = vshrl.u32 2131351028, %v735
          %v742 = vor.u32 %v740, %v741
          %v743 = vshll.u32 2131351028, %v734
          %v744 = vshrl.u32 2102212464, %v735
          %v745 = vor.u32 %v743, %v744
          %v746 = vshll.u32 2102212464, %v734
          %v747 = vshrl.u32 920167782, %v735
          %v748 = vor.u32 %v746, %v747
          %v749 = vshll.u32 920167782, %v734
          %v750 = vshrl.u32 1326507024, %v735
          %v751 = vor.u32 %v749, %v750
          %vm752 = vcmp.lt.s32.totalorder %v733, 1
          %vm753 = vcmp.lt.s32.totalorder %v733, 2
          %vm754 = vcmp.lt.s32.totalorder %v733, 3
          %vm755 = vcmp.lt.s32.totalorder %v733, 4
          %v756 = vsel %vm752, %v736, %v739
          %v757 = vsel %vm755, %v745, 2102212464
          %v758 = vsel %vm754, %v742, %v757
          %v759 = vsel %vm753, %v756, %v758
          %v760 = vsel %vm752, %v739, %v742
          %v761 = vsel %vm755, %v748, 920167782
          %v762 = vsel %vm754, %v745, %v761
          %v763 = vsel %vm753, %v760, %v762
          %v764 = vsel %vm752, %v742, %v745
          %v765 = vsel %vm755, %v751, 1326507024
          %v766 = vsel %vm754, %v748, %v765
          %v767 = vsel %vm753, %v764, %v766
          %v768 = vshll.u32 %v728, 8
          %v769 = vmul.u32.u64.compose %v768, %v767
          %v770 = vextract.low.u32 %v769
          %v771 = vextract.high.u32 %v769
          %v772 = vmul.u32.u64.compose %v768, %v763
          %v773 = vextract.low.u32 %v772
          %v774 = vextract.high.u32 %v772
          %v775 = vmul.u32 %v768, %v759
          %v776 = vadd.s32 %v771, %v773
          %vm777 = vc.u32 %v771, %v773
          %v778 = vadd.s32 %v774, 1
          %v779 = vsel %vm777, %v778, %v774
          %v780 = vadd.s32 %v775, %v779
          %v781 = vadd.s32 %v780, 536870912
          %v782 = vshrl.u32 %v781, 30
          %v783 = vshll.u32 %v782, 30
          %v784 = vsub.s32 %v780, %v783
          %vm785 = vcmp.lt.s32.totalorder %v784, 0
          %v786 = vsub.s32 0, %v784
          %v787 = vsel %vm785, %v786, %v784
          %v788 = vclz %v787
          %v789 = vsub.s32 %v788, 2
          %vm790 = vcmp.gt.s32.totalorder 0, %v789
          %v791 = vsel %vm790, 0, %v789
          %v792 = vsub.s32 32, %v791
          %v793 = vshll.u32 %v784, %v791
          %v794 = vshrl.u32 %v776, %v792
          %v795 = vor.u32 %v793, %v794
          %v796 = vsub.s32 4294967266, %v791
          %v797 = vadd.s32 %v796, 127
          %v798 = vshll.u32 %v797, 23
          %v799 = vor.u32 4788187, %v798
          %v800 = vand.u32 2147483647, %v799
          %v802 = vcvt.s32.f32 %v795
          %v803 = vmul.f32 %v802, %v800
          %v804 = vxor.u32 %v803, 2147483648
          %v805 = vsel %vm722, %v804, %v803
          %v806 = vsub.s32 4, %v782
          %v807 = vsel %vm722, %v806, %v782
          %v808 = vsel %vm721, %v562, %v805
          %v809 = vsel %vm721, 0, %v807
          %v810 = vcosq.f32.pop %v808
          %v811 = vsinq.f32.pop %v808
          %vm812 = vweird.f32 %v562
          %v813 = vadd.s32 %v809, 3
          %v814 = vand.u32 %v813, 3
          %vm815 = vcmp.lt.s32.totalorder %v814, 2
          %vm816 = vcmp.eq.s32.totalorder %v814, 0
          %v817 = vxor.u32 %v811, 2147483648
          %v818 = vsel %vm816, %v810, %v817
          %vm819 = vcmp.eq.s32.totalorder %v814, 2
          %v820 = vxor.u32 %v810, 2147483648
          %v821 = vsel %vm819, %v820, %v811
          %v822 = vsel %vm815, %v818, %v821
          %v823 = vsel %vm812, nan, %v822
          %v824 = vand.u32 2147483647, %v567
          %vm825 = vcmp.le.f32.partialorder %v824, 0.7853982
          %vm826 = vcmp.lt.s32.totalorder %v567, 0
          %v827 = vand.u32 %v567, 2139095040
          %v828 = vshrl.u32 %v827, 23
          %v829 = vsub.s32 %v828, 127
          %v830 = vand.u32 2147483647, %v567
          %v831 = vand.u32 %v830, 8388607
          %v832 = vor.u32 %v831, 8388608
          %v833 = vsub.s32 0, %v832
          %v834 = vadd.s32 %v829, 1
          %vm835 = vcmp.gt.s32.totalorder %v834, 0
          %v836 = vsel %vm835, %v834, 0
          %v837 = vshrl.u32 %v836, 5
          %v838 = vand.u32 %v836, 31
          %v839 = vsub.s32 32, %v838
          %v840 = vshrl.u32 683565275, %v839
          %v841 = vshll.u32 683565275, %v838
          %v842 = vshrl.u32 2475754826, %v839
          %v843 = vor.u32 %v841, %v842
          %v844 = vshll.u32 2475754826, %v838
          %v845 = vshrl.u32 2131351028, %v839
          %v846 = vor.u32 %v844, %v845
          %v847 = vshll.u32 2131351028, %v838
          %v848 = vshrl.u32 2102212464, %v839
          %v849 = vor.u32 %v847, %v848
          %v850 = vshll.u32 2102212464, %v838
          %v851 = vshrl.u32 920167782, %v839
          %v852 = vor.u32 %v850, %v851
          %v853 = vshll.u32 920167782, %v838
          %v854 = vshrl.u32 1326507024, %v839
          %v855 = vor.u32 %v853, %v854
          %vm856 = vcmp.lt.s32.totalorder %v837, 1
          %vm857 = vcmp.lt.s32.totalorder %v837, 2
          %vm858 = vcmp.lt.s32.totalorder %v837, 3
          %vm859 = vcmp.lt.s32.totalorder %v837, 4
          %v860 = vsel %vm856, %v840, %v843
          %v861 = vsel %vm859, %v849, 2102212464
          %v862 = vsel %vm858, %v846, %v861
          %v863 = vsel %vm857, %v860, %v862
          %v864 = vsel %vm856, %v843, %v846
          %v865 = vsel %vm859, %v852, 920167782
          %v866 = vsel %vm858, %v849, %v865
          %v867 = vsel %vm857, %v864, %v866
          %v868 = vsel %vm856, %v846, %v849
          %v869 = vsel %vm859, %v855, 1326507024
          %v870 = vsel %vm858, %v852, %v869
          %v871 = vsel %vm857, %v868, %v870
          %v872 = vshll.u32 %v832, 8
          %v873 = vmul.u32.u64.compose %v872, %v871
          %v874 = vextract.low.u32 %v873
          %v875 = vextract.high.u32 %v873
          %v876 = vmul.u32.u64.compose %v872, %v867
          %v877 = vextract.low.u32 %v876
          %v878 = vextract.high.u32 %v876
          %v879 = vmul.u32 %v872, %v863
          %v880 = vadd.s32 %v875, %v877
          %vm881 = vc.u32 %v875, %v877
          %v882 = vadd.s32 %v878, 1
          %v883 = vsel %vm881, %v882, %v878
          %v884 = vadd.s32 %v879, %v883
          %v885 = vadd.s32 %v884, 536870912
          %v886 = vshrl.u32 %v885, 30
          %v887 = vshll.u32 %v886, 30
          %v888 = vsub.s32 %v884, %v887
          %vm889 = vcmp.lt.s32.totalorder %v888, 0
          %v890 = vsub.s32 0, %v888
          %v891 = vsel %vm889, %v890, %v888
          %v892 = vclz %v891
          %v893 = vsub.s32 %v892, 2
          %vm894 = vcmp.gt.s32.totalorder 0, %v893
          %v895 = vsel %vm894, 0, %v893
          %v896 = vsub.s32 32, %v895
          %v897 = vshll.u32 %v888, %v895
          %v898 = vshrl.u32 %v880, %v896
          %v899 = vor.u32 %v897, %v898
          %v900 = vsub.s32 4294967266, %v895
          %v901 = vadd.s32 %v900, 127
          %v902 = vshll.u32 %v901, 23
          %v903 = vor.u32 4788187, %v902
          %v904 = vand.u32 2147483647, %v903
          %v906 = vcvt.s32.f32 %v899
          %v907 = vmul.f32 %v906, %v904
          %v908 = vxor.u32 %v907, 2147483648
          %v909 = vsel %vm826, %v908, %v907
          %v910 = vsub.s32 4, %v886
          %v911 = vsel %vm826, %v910, %v886
          %v912 = vsel %vm825, %v567, %v909
          %v913 = vsel %vm825, 0, %v911
          %v914 = vcosq.f32.pop %v912
          %v915 = vsinq.f32.pop %v912
          %vm916 = vweird.f32 %v567
          %v917 = vadd.s32 %v913, 3
          %v918 = vand.u32 %v917, 3
          %vm919 = vcmp.lt.s32.totalorder %v918, 2
          %vm920 = vcmp.eq.s32.totalorder %v918, 0
          %v921 = vxor.u32 %v915, 2147483648
          %v922 = vsel %vm920, %v914, %v921
          %vm923 = vcmp.eq.s32.totalorder %v918, 2
          %v924 = vxor.u32 %v914, 2147483648
          %v925 = vsel %vm923, %v924, %v915
          %v926 = vsel %vm919, %v922, %v925
          %v927 = vsel %vm916, nan, %v926
          %v928 = vand.u32 2147483647, %v572
          %vm929 = vcmp.le.f32.partialorder %v928, 0.7853982
          %vm930 = vcmp.lt.s32.totalorder %v572, 0
          %v931 = vand.u32 %v572, 2139095040
          %v932 = vshrl.u32 %v931, 23
          %v933 = vsub.s32 %v932, 127
          %v934 = vand.u32 2147483647, %v572
          %v935 = vand.u32 %v934, 8388607
          %v936 = vor.u32 %v935, 8388608
          %v937 = vsub.s32 0, %v936
          %v938 = vadd.s32 %v933, 1
          %vm939 = vcmp.gt.s32.totalorder %v938, 0
          %v940 = vsel %vm939, %v938, 0
          %v941 = vshrl.u32 %v940, 5
          %v942 = vand.u32 %v940, 31
          %v943 = vsub.s32 32, %v942
          %v944 = vshrl.u32 683565275, %v943
          %v945 = vshll.u32 683565275, %v942
          %v946 = vshrl.u32 2475754826, %v943
          %v947 = vor.u32 %v945, %v946
          %v948 = vshll.u32 2475754826, %v942
          %v949 = vshrl.u32 2131351028, %v943
          %v950 = vor.u32 %v948, %v949
          %v951 = vshll.u32 2131351028, %v942
          %v952 = vshrl.u32 2102212464, %v943
          %v953 = vor.u32 %v951, %v952
          %v954 = vshll.u32 2102212464, %v942
          %v955 = vshrl.u32 920167782, %v943
          %v956 = vor.u32 %v954, %v955
          %v957 = vshll.u32 920167782, %v942
          %v958 = vshrl.u32 1326507024, %v943
          %v959 = vor.u32 %v957, %v958
          %vm960 = vcmp.lt.s32.totalorder %v941, 1
          %vm961 = vcmp.lt.s32.totalorder %v941, 2
          %vm962 = vcmp.lt.s32.totalorder %v941, 3
          %vm963 = vcmp.lt.s32.totalorder %v941, 4
          %v964 = vsel %vm960, %v944, %v947
          %v965 = vsel %vm963, %v953, 2102212464
          %v966 = vsel %vm962, %v950, %v965
          %v967 = vsel %vm961, %v964, %v966
          %v968 = vsel %vm960, %v947, %v950
          %v969 = vsel %vm963, %v956, 920167782
          %v970 = vsel %vm962, %v953, %v969
          %v971 = vsel %vm961, %v968, %v970
          %v972 = vsel %vm960, %v950, %v953
          %v973 = vsel %vm963, %v959, 1326507024
          %v974 = vsel %vm962, %v956, %v973
          %v975 = vsel %vm961, %v972, %v974
          %v976 = vshll.u32 %v936, 8
          %v977 = vmul.u32.u64.compose %v976, %v975
          %v978 = vextract.low.u32 %v977
          %v979 = vextract.high.u32 %v977
          %v980 = vmul.u32.u64.compose %v976, %v971
          %v981 = vextract.low.u32 %v980
          %v982 = vextract.high.u32 %v980
          %v983 = vmul.u32 %v976, %v967
          %v984 = vadd.s32 %v979, %v981
          %vm985 = vc.u32 %v979, %v981
          %v986 = vadd.s32 %v982, 1
          %v987 = vsel %vm985, %v986, %v982
          %v988 = vadd.s32 %v983, %v987
          %v989 = vadd.s32 %v988, 536870912
          %v990 = vshrl.u32 %v989, 30
          %v991 = vshll.u32 %v990, 30
          %v992 = vsub.s32 %v988, %v991
          %vm993 = vcmp.lt.s32.totalorder %v992, 0
          %v994 = vsub.s32 0, %v992
          %v995 = vsel %vm993, %v994, %v992
          %v996 = vclz %v995
          %v997 = vsub.s32 %v996, 2
          %vm998 = vcmp.gt.s32.totalorder 0, %v997
          %v999 = vsel %vm998, 0, %v997
          %v1000 = vsub.s32 32, %v999
          %v1001 = vshll.u32 %v992, %v999
          %v1002 = vshrl.u32 %v984, %v1000
          %v1003 = vor.u32 %v1001, %v1002
          %v1004 = vsub.s32 4294967266, %v999
          %v1005 = vadd.s32 %v1004, 127
          %v1006 = vshll.u32 %v1005, 23
          %v1007 = vor.u32 4788187, %v1006
          %v1008 = vand.u32 2147483647, %v1007
          %v1010 = vcvt.s32.f32 %v1003
          %v1011 = vmul.f32 %v1010, %v1008
          %v1012 = vxor.u32 %v1011, 2147483648
          %v1013 = vsel %vm930, %v1012, %v1011
          %v1014 = vsub.s32 4, %v990
          %v1015 = vsel %vm930, %v1014, %v990
          %v1016 = vsel %vm929, %v572, %v1013
          %v1017 = vsel %vm929, 0, %v1015
          %v1018 = vcosq.f32.pop %v1016
          %v1019 = vsinq.f32.pop %v1016
          %vm1020 = vweird.f32 %v572
          %v1021 = vadd.s32 %v1017, 3
          %v1022 = vand.u32 %v1021, 3
          %vm1023 = vcmp.lt.s32.totalorder %v1022, 2
          %vm1024 = vcmp.eq.s32.totalorder %v1022, 0
          %v1025 = vxor.u32 %v1019, 2147483648
          %v1026 = vsel %vm1024, %v1018, %v1025
          %vm1027 = vcmp.eq.s32.totalorder %v1022, 2
          %v1028 = vxor.u32 %v1018, 2147483648
          %v1029 = vsel %vm1027, %v1028, %v1019
          %v1030 = vsel %vm1023, %v1026, %v1029
          %v1031 = vsel %vm1020, nan, %v1030
          %v1032 = vand.u32 2147483647, %v577
          %vm1033 = vcmp.le.f32.partialorder %v1032, 0.7853982
          %vm1034 = vcmp.lt.s32.totalorder %v577, 0
          %v1035 = vand.u32 %v577, 2139095040
          %v1036 = vshrl.u32 %v1035, 23
          %v1037 = vsub.s32 %v1036, 127
          %v1038 = vand.u32 2147483647, %v577
          %v1039 = vand.u32 %v1038, 8388607
          %v1040 = vor.u32 %v1039, 8388608
          %v1041 = vsub.s32 0, %v1040
          %v1042 = vadd.s32 %v1037, 1
          %vm1043 = vcmp.gt.s32.totalorder %v1042, 0
          %v1044 = vsel %vm1043, %v1042, 0
          %v1045 = vshrl.u32 %v1044, 5
          %v1046 = vand.u32 %v1044, 31
          %v1047 = vsub.s32 32, %v1046
          %v1048 = vshrl.u32 683565275, %v1047
          %v1049 = vshll.u32 683565275, %v1046
          %v1050 = vshrl.u32 2475754826, %v1047
          %v1051 = vor.u32 %v1049, %v1050
          %v1052 = vshll.u32 2475754826, %v1046
          %v1053 = vshrl.u32 2131351028, %v1047
          %v1054 = vor.u32 %v1052, %v1053
          %v1055 = vshll.u32 2131351028, %v1046
          %v1056 = vshrl.u32 2102212464, %v1047
          %v1057 = vor.u32 %v1055, %v1056
          %v1058 = vshll.u32 2102212464, %v1046
          %v1059 = vshrl.u32 920167782, %v1047
          %v1060 = vor.u32 %v1058, %v1059
          %v1061 = vshll.u32 920167782, %v1046
          %v1062 = vshrl.u32 1326507024, %v1047
          %v1063 = vor.u32 %v1061, %v1062
          %vm1064 = vcmp.lt.s32.totalorder %v1045, 1
          %vm1065 = vcmp.lt.s32.totalorder %v1045, 2
          %vm1066 = vcmp.lt.s32.totalorder %v1045, 3
          %vm1067 = vcmp.lt.s32.totalorder %v1045, 4
          %v1068 = vsel %vm1064, %v1048, %v1051
          %v1069 = vsel %vm1067, %v1057, 2102212464
          %v1070 = vsel %vm1066, %v1054, %v1069
          %v1071 = vsel %vm1065, %v1068, %v1070
          %v1072 = vsel %vm1064, %v1051, %v1054
          %v1073 = vsel %vm1067, %v1060, 920167782
          %v1074 = vsel %vm1066, %v1057, %v1073
          %v1075 = vsel %vm1065, %v1072, %v1074
          %v1076 = vsel %vm1064, %v1054, %v1057
          %v1077 = vsel %vm1067, %v1063, 1326507024
          %v1078 = vsel %vm1066, %v1060, %v1077
          %v1079 = vsel %vm1065, %v1076, %v1078
          %v1080 = vshll.u32 %v1040, 8
          %v1081 = vmul.u32.u64.compose %v1080, %v1079
          %v1082 = vextract.low.u32 %v1081
          %v1083 = vextract.high.u32 %v1081
          %v1084 = vmul.u32.u64.compose %v1080, %v1075
          %v1085 = vextract.low.u32 %v1084
          %v1086 = vextract.high.u32 %v1084
          %v1087 = vmul.u32 %v1080, %v1071
          %v1088 = vadd.s32 %v1083, %v1085
          %vm1089 = vc.u32 %v1083, %v1085
          %v1090 = vadd.s32 %v1086, 1
          %v1091 = vsel %vm1089, %v1090, %v1086
          %v1092 = vadd.s32 %v1087, %v1091
          %v1093 = vadd.s32 %v1092, 536870912
          %v1094 = vshrl.u32 %v1093, 30
          %v1095 = vshll.u32 %v1094, 30
          %v1096 = vsub.s32 %v1092, %v1095
          %vm1097 = vcmp.lt.s32.totalorder %v1096, 0
          %v1098 = vsub.s32 0, %v1096
          %v1099 = vsel %vm1097, %v1098, %v1096
          %v1100 = vclz %v1099
          %v1101 = vsub.s32 %v1100, 2
          %vm1102 = vcmp.gt.s32.totalorder 0, %v1101
          %v1103 = vsel %vm1102, 0, %v1101
          %v1104 = vsub.s32 32, %v1103
          %v1105 = vshll.u32 %v1096, %v1103
          %v1106 = vshrl.u32 %v1088, %v1104
          %v1107 = vor.u32 %v1105, %v1106
          %v1108 = vsub.s32 4294967266, %v1103
          %v1109 = vadd.s32 %v1108, 127
          %v1110 = vshll.u32 %v1109, 23
          %v1111 = vor.u32 4788187, %v1110
          %v1112 = vand.u32 2147483647, %v1111
          %v1114 = vcvt.s32.f32 %v1107
          %v1115 = vmul.f32 %v1114, %v1112
          %v1116 = vxor.u32 %v1115, 2147483648
          %v1117 = vsel %vm1034, %v1116, %v1115
          %v1118 = vsub.s32 4, %v1094
          %v1119 = vsel %vm1034, %v1118, %v1094
          %v1120 = vsel %vm1033, %v577, %v1117
          %v1121 = vsel %vm1033, 0, %v1119
          %v1122 = vcosq.f32.pop %v1120
          %v1123 = vsinq.f32.pop %v1120
          %vm1124 = vweird.f32 %v577
          %v1125 = vadd.s32 %v1121, 3
          %v1126 = vand.u32 %v1125, 3
          %vm1127 = vcmp.lt.s32.totalorder %v1126, 2
          %vm1128 = vcmp.eq.s32.totalorder %v1126, 0
          %v1129 = vxor.u32 %v1123, 2147483648
          %v1130 = vsel %vm1128, %v1122, %v1129
          %vm1131 = vcmp.eq.s32.totalorder %v1126, 2
          %v1132 = vxor.u32 %v1122, 2147483648
          %v1133 = vsel %vm1131, %v1132, %v1123
          %v1134 = vsel %vm1127, %v1130, %v1133
          %v1135 = vsel %vm1124, nan, %v1134
          %v1136 = vand.u32 2147483647, %v582
          %vm1137 = vcmp.le.f32.partialorder %v1136, 0.7853982
          %vm1138 = vcmp.lt.s32.totalorder %v582, 0
          %v1139 = vand.u32 %v582, 2139095040
          %v1140 = vshrl.u32 %v1139, 23
          %v1141 = vsub.s32 %v1140, 127
          %v1142 = vand.u32 2147483647, %v582
          %v1143 = vand.u32 %v1142, 8388607
          %v1144 = vor.u32 %v1143, 8388608
          %v1145 = vsub.s32 0, %v1144
          %v1146 = vadd.s32 %v1141, 1
          %vm1147 = vcmp.gt.s32.totalorder %v1146, 0
          %v1148 = vsel %vm1147, %v1146, 0
          %v1149 = vshrl.u32 %v1148, 5
          %v1150 = vand.u32 %v1148, 31
          %v1151 = vsub.s32 32, %v1150
          %v1152 = vshrl.u32 683565275, %v1151
          %v1153 = vshll.u32 683565275, %v1150
          %v1154 = vshrl.u32 2475754826, %v1151
          %v1155 = vor.u32 %v1153, %v1154
          %v1156 = vshll.u32 2475754826, %v1150
          %v1157 = vshrl.u32 2131351028, %v1151
          %v1158 = vor.u32 %v1156, %v1157
          %v1159 = vshll.u32 2131351028, %v1150
          %v1160 = vshrl.u32 2102212464, %v1151
          %v1161 = vor.u32 %v1159, %v1160
          %v1162 = vshll.u32 2102212464, %v1150
          %v1163 = vshrl.u32 920167782, %v1151
          %v1164 = vor.u32 %v1162, %v1163
          %v1165 = vshll.u32 920167782, %v1150
          %v1166 = vshrl.u32 1326507024, %v1151
          %v1167 = vor.u32 %v1165, %v1166
          %vm1168 = vcmp.lt.s32.totalorder %v1149, 1
          %vm1169 = vcmp.lt.s32.totalorder %v1149, 2
          %vm1170 = vcmp.lt.s32.totalorder %v1149, 3
          %vm1171 = vcmp.lt.s32.totalorder %v1149, 4
          %v1172 = vsel %vm1168, %v1152, %v1155
          %v1173 = vsel %vm1171, %v1161, 2102212464
          %v1174 = vsel %vm1170, %v1158, %v1173
          %v1175 = vsel %vm1169, %v1172, %v1174
          %v1176 = vsel %vm1168, %v1155, %v1158
          %v1177 = vsel %vm1171, %v1164, 920167782
          %v1178 = vsel %vm1170, %v1161, %v1177
          %v1179 = vsel %vm1169, %v1176, %v1178
          %v1180 = vsel %vm1168, %v1158, %v1161
          %v1181 = vsel %vm1171, %v1167, 1326507024
          %v1182 = vsel %vm1170, %v1164, %v1181
          %v1183 = vsel %vm1169, %v1180, %v1182
          %v1184 = vshll.u32 %v1144, 8
          %v1185 = vmul.u32.u64.compose %v1184, %v1183
          %v1186 = vextract.low.u32 %v1185
          %v1187 = vextract.high.u32 %v1185
          %v1188 = vmul.u32.u64.compose %v1184, %v1179
          %v1189 = vextract.low.u32 %v1188
          %v1190 = vextract.high.u32 %v1188
          %v1191 = vmul.u32 %v1184, %v1175
          %v1192 = vadd.s32 %v1187, %v1189
          %vm1193 = vc.u32 %v1187, %v1189
          %v1194 = vadd.s32 %v1190, 1
          %v1195 = vsel %vm1193, %v1194, %v1190
          %v1196 = vadd.s32 %v1191, %v1195
          %v1197 = vadd.s32 %v1196, 536870912
          %v1198 = vshrl.u32 %v1197, 30
          %v1199 = vshll.u32 %v1198, 30
          %v1200 = vsub.s32 %v1196, %v1199
          %vm1201 = vcmp.lt.s32.totalorder %v1200, 0
          %v1202 = vsub.s32 0, %v1200
          %v1203 = vsel %vm1201, %v1202, %v1200
          %v1204 = vclz %v1203
          %v1205 = vsub.s32 %v1204, 2
          %vm1206 = vcmp.gt.s32.totalorder 0, %v1205
          %v1207 = vsel %vm1206, 0, %v1205
          %v1208 = vsub.s32 32, %v1207
          %v1209 = vshll.u32 %v1200, %v1207
          %v1210 = vshrl.u32 %v1192, %v1208
          %v1211 = vor.u32 %v1209, %v1210
          %v1212 = vsub.s32 4294967266, %v1207
          %v1213 = vadd.s32 %v1212, 127
          %v1214 = vshll.u32 %v1213, 23
          %v1215 = vor.u32 4788187, %v1214
          %v1216 = vand.u32 2147483647, %v1215
          %v1218 = vcvt.s32.f32 %v1211
          %v1219 = vmul.f32 %v1218, %v1216
          %v1220 = vxor.u32 %v1219, 2147483648
          %v1221 = vsel %vm1138, %v1220, %v1219
          %v1222 = vsub.s32 4, %v1198
          %v1223 = vsel %vm1138, %v1222, %v1198
          %v1224 = vsel %vm1137, %v582, %v1221
          %v1225 = vsel %vm1137, 0, %v1223
          %v1226 = vcosq.f32.pop %v1224
          %v1227 = vsinq.f32.pop %v1224
          %vm1228 = vweird.f32 %v582
          %v1229 = vadd.s32 %v1225, 3
          %v1230 = vand.u32 %v1229, 3
          %vm1231 = vcmp.lt.s32.totalorder %v1230, 2
          %vm1232 = vcmp.eq.s32.totalorder %v1230, 0
          %v1233 = vxor.u32 %v1227, 2147483648
          %v1234 = vsel %vm1232, %v1226, %v1233
          %vm1235 = vcmp.eq.s32.totalorder %v1230, 2
          %v1236 = vxor.u32 %v1226, 2147483648
          %v1237 = vsel %vm1235, %v1236, %v1227
          %v1238 = vsel %vm1231, %v1234, %v1237
          %v1239 = vsel %vm1228, nan, %v1238
          %v1240 = vand.u32 2147483647, %v587
          %vm1241 = vcmp.le.f32.partialorder %v1240, 0.7853982
          %vm1242 = vcmp.lt.s32.totalorder %v587, 0
          %v1243 = vand.u32 %v587, 2139095040
          %v1244 = vshrl.u32 %v1243, 23
          %v1245 = vsub.s32 %v1244, 127
          %v1246 = vand.u32 2147483647, %v587
          %v1247 = vand.u32 %v1246, 8388607
          %v1248 = vor.u32 %v1247, 8388608
          %v1249 = vsub.s32 0, %v1248
          %v1250 = vadd.s32 %v1245, 1
          %vm1251 = vcmp.gt.s32.totalorder %v1250, 0
          %v1252 = vsel %vm1251, %v1250, 0
          %v1253 = vshrl.u32 %v1252, 5
          %v1254 = vand.u32 %v1252, 31
          %v1255 = vsub.s32 32, %v1254
          %v1256 = vshrl.u32 683565275, %v1255
          %v1257 = vshll.u32 683565275, %v1254
          %v1258 = vshrl.u32 2475754826, %v1255
          %v1259 = vor.u32 %v1257, %v1258
          %v1260 = vshll.u32 2475754826, %v1254
          %v1261 = vshrl.u32 2131351028, %v1255
          %v1262 = vor.u32 %v1260, %v1261
          %v1263 = vshll.u32 2131351028, %v1254
          %v1264 = vshrl.u32 2102212464, %v1255
          %v1265 = vor.u32 %v1263, %v1264
          %v1266 = vshll.u32 2102212464, %v1254
          %v1267 = vshrl.u32 920167782, %v1255
          %v1268 = vor.u32 %v1266, %v1267
          %v1269 = vshll.u32 920167782, %v1254
          %v1270 = vshrl.u32 1326507024, %v1255
          %v1271 = vor.u32 %v1269, %v1270
          %vm1272 = vcmp.lt.s32.totalorder %v1253, 1
          %vm1273 = vcmp.lt.s32.totalorder %v1253, 2
          %vm1274 = vcmp.lt.s32.totalorder %v1253, 3
          %vm1275 = vcmp.lt.s32.totalorder %v1253, 4
          %v1276 = vsel %vm1272, %v1256, %v1259
          %v1277 = vsel %vm1275, %v1265, 2102212464
          %v1278 = vsel %vm1274, %v1262, %v1277
          %v1279 = vsel %vm1273, %v1276, %v1278
          %v1280 = vsel %vm1272, %v1259, %v1262
          %v1281 = vsel %vm1275, %v1268, 920167782
          %v1282 = vsel %vm1274, %v1265, %v1281
          %v1283 = vsel %vm1273, %v1280, %v1282
          %v1284 = vsel %vm1272, %v1262, %v1265
          %v1285 = vsel %vm1275, %v1271, 1326507024
          %v1286 = vsel %vm1274, %v1268, %v1285
          %v1287 = vsel %vm1273, %v1284, %v1286
          %v1288 = vshll.u32 %v1248, 8
          %v1289 = vmul.u32.u64.compose %v1288, %v1287
          %v1290 = vextract.low.u32 %v1289
          %v1291 = vextract.high.u32 %v1289
          %v1292 = vmul.u32.u64.compose %v1288, %v1283
          %v1293 = vextract.low.u32 %v1292
          %v1294 = vextract.high.u32 %v1292
          %v1295 = vmul.u32 %v1288, %v1279
          %v1296 = vadd.s32 %v1291, %v1293
          %vm1297 = vc.u32 %v1291, %v1293
          %v1298 = vadd.s32 %v1294, 1
          %v1299 = vsel %vm1297, %v1298, %v1294
          %v1300 = vadd.s32 %v1295, %v1299
          %v1301 = vadd.s32 %v1300, 536870912
          %v1302 = vshrl.u32 %v1301, 30
          %v1303 = vshll.u32 %v1302, 30
          %v1304 = vsub.s32 %v1300, %v1303
          %vm1305 = vcmp.lt.s32.totalorder %v1304, 0
          %v1306 = vsub.s32 0, %v1304
          %v1307 = vsel %vm1305, %v1306, %v1304
          %v1308 = vclz %v1307
          %v1309 = vsub.s32 %v1308, 2
          %vm1310 = vcmp.gt.s32.totalorder 0, %v1309
          %v1311 = vsel %vm1310, 0, %v1309
          %v1312 = vsub.s32 32, %v1311
          %v1313 = vshll.u32 %v1304, %v1311
          %v1314 = vshrl.u32 %v1296, %v1312
          %v1315 = vor.u32 %v1313, %v1314
          %v1316 = vsub.s32 4294967266, %v1311
          %v1317 = vadd.s32 %v1316, 127
          %v1318 = vshll.u32 %v1317, 23
          %v1319 = vor.u32 4788187, %v1318
          %v1320 = vand.u32 2147483647, %v1319
          %v1322 = vcvt.s32.f32 %v1315
          %v1323 = vmul.f32 %v1322, %v1320
          %v1324 = vxor.u32 %v1323, 2147483648
          %v1325 = vsel %vm1242, %v1324, %v1323
          %v1326 = vsub.s32 4, %v1302
          %v1327 = vsel %vm1242, %v1326, %v1302
          %v1328 = vsel %vm1241, %v587, %v1325
          %v1329 = vsel %vm1241, 0, %v1327
          %v1330 = vcosq.f32.pop %v1328
          %v1331 = vsinq.f32.pop %v1328
          %vm1332 = vweird.f32 %v587
          %v1333 = vadd.s32 %v1329, 3
          %v1334 = vand.u32 %v1333, 3
          %vm1335 = vcmp.lt.s32.totalorder %v1334, 2
          %vm1336 = vcmp.eq.s32.totalorder %v1334, 0
          %v1337 = vxor.u32 %v1331, 2147483648
          %v1338 = vsel %vm1336, %v1330, %v1337
          %vm1339 = vcmp.eq.s32.totalorder %v1334, 2
          %v1340 = vxor.u32 %v1330, 2147483648
          %v1341 = vsel %vm1339, %v1340, %v1331
          %v1342 = vsel %vm1335, %v1338, %v1341
          %v1343 = vsel %vm1332, nan, %v1342
          %v1344 = vand.u32 2147483647, %v592
          %vm1345 = vcmp.le.f32.partialorder %v1344, 0.7853982
          %vm1346 = vcmp.lt.s32.totalorder %v592, 0
          %v1347 = vand.u32 %v592, 2139095040
          %v1348 = vshrl.u32 %v1347, 23
          %v1349 = vsub.s32 %v1348, 127
          %v1350 = vand.u32 2147483647, %v592
          %v1351 = vand.u32 %v1350, 8388607
          %v1352 = vor.u32 %v1351, 8388608
          %v1353 = vsub.s32 0, %v1352
          %v1354 = vadd.s32 %v1349, 1
          %vm1355 = vcmp.gt.s32.totalorder %v1354, 0
          %v1356 = vsel %vm1355, %v1354, 0
          %v1357 = vshrl.u32 %v1356, 5
          %v1358 = vand.u32 %v1356, 31
          %v1359 = vsub.s32 32, %v1358
          %v1360 = vshrl.u32 683565275, %v1359
          %v1361 = vshll.u32 683565275, %v1358
          %v1362 = vshrl.u32 2475754826, %v1359
          %v1363 = vor.u32 %v1361, %v1362
          %v1364 = vshll.u32 2475754826, %v1358
          %v1365 = vshrl.u32 2131351028, %v1359
          %v1366 = vor.u32 %v1364, %v1365
          %v1367 = vshll.u32 2131351028, %v1358
          %v1368 = vshrl.u32 2102212464, %v1359
          %v1369 = vor.u32 %v1367, %v1368
          %v1370 = vshll.u32 2102212464, %v1358
          %v1371 = vshrl.u32 920167782, %v1359
          %v1372 = vor.u32 %v1370, %v1371
          %v1373 = vshll.u32 920167782, %v1358
          %v1374 = vshrl.u32 1326507024, %v1359
          %v1375 = vor.u32 %v1373, %v1374
          %vm1376 = vcmp.lt.s32.totalorder %v1357, 1
          %vm1377 = vcmp.lt.s32.totalorder %v1357, 2
          %vm1378 = vcmp.lt.s32.totalorder %v1357, 3
          %vm1379 = vcmp.lt.s32.totalorder %v1357, 4
          %v1380 = vsel %vm1376, %v1360, %v1363
          %v1381 = vsel %vm1379, %v1369, 2102212464
          %v1382 = vsel %vm1378, %v1366, %v1381
          %v1383 = vsel %vm1377, %v1380, %v1382
          %v1384 = vsel %vm1376, %v1363, %v1366
          %v1385 = vsel %vm1379, %v1372, 920167782
          %v1386 = vsel %vm1378, %v1369, %v1385
          %v1387 = vsel %vm1377, %v1384, %v1386
          %v1388 = vsel %vm1376, %v1366, %v1369
          %v1389 = vsel %vm1379, %v1375, 1326507024
          %v1390 = vsel %vm1378, %v1372, %v1389
          %v1391 = vsel %vm1377, %v1388, %v1390
          %v1392 = vshll.u32 %v1352, 8
          %v1393 = vmul.u32.u64.compose %v1392, %v1391
          %v1394 = vextract.low.u32 %v1393
          %v1395 = vextract.high.u32 %v1393
          %v1396 = vmul.u32.u64.compose %v1392, %v1387
          %v1397 = vextract.low.u32 %v1396
          %v1398 = vextract.high.u32 %v1396
          %v1399 = vmul.u32 %v1392, %v1383
          %v1400 = vadd.s32 %v1395, %v1397
          %vm1401 = vc.u32 %v1395, %v1397
          %v1402 = vadd.s32 %v1398, 1
          %v1403 = vsel %vm1401, %v1402, %v1398
          %v1404 = vadd.s32 %v1399, %v1403
          %v1405 = vadd.s32 %v1404, 536870912
          %v1406 = vshrl.u32 %v1405, 30
          %v1407 = vshll.u32 %v1406, 30
          %v1408 = vsub.s32 %v1404, %v1407
          %vm1409 = vcmp.lt.s32.totalorder %v1408, 0
          %v1410 = vsub.s32 0, %v1408
          %v1411 = vsel %vm1409, %v1410, %v1408
          %v1412 = vclz %v1411
          %v1413 = vsub.s32 %v1412, 2
          %vm1414 = vcmp.gt.s32.totalorder 0, %v1413
          %v1415 = vsel %vm1414, 0, %v1413
          %v1416 = vsub.s32 32, %v1415
          %v1417 = vshll.u32 %v1408, %v1415
          %v1418 = vshrl.u32 %v1400, %v1416
          %v1419 = vor.u32 %v1417, %v1418
          %v1420 = vsub.s32 4294967266, %v1415
          %v1421 = vadd.s32 %v1420, 127
          %v1422 = vshll.u32 %v1421, 23
          %v1423 = vor.u32 4788187, %v1422
          %v1424 = vand.u32 2147483647, %v1423
          %v1426 = vcvt.s32.f32 %v1419
          %v1427 = vmul.f32 %v1426, %v1424
          %v1428 = vxor.u32 %v1427, 2147483648
          %v1429 = vsel %vm1346, %v1428, %v1427
          %v1430 = vsub.s32 4, %v1406
          %v1431 = vsel %vm1346, %v1430, %v1406
          %v1432 = vsel %vm1345, %v592, %v1429
          %v1433 = vsel %vm1345, 0, %v1431
          %v1434 = vcosq.f32.pop %v1432
          %v1435 = vsinq.f32.pop %v1432
          %vm1436 = vweird.f32 %v592
          %v1437 = vadd.s32 %v1433, 3
          %v1438 = vand.u32 %v1437, 3
          %vm1439 = vcmp.lt.s32.totalorder %v1438, 2
          %vm1440 = vcmp.eq.s32.totalorder %v1438, 0
          %v1441 = vxor.u32 %v1435, 2147483648
          %v1442 = vsel %vm1440, %v1434, %v1441
          %vm1443 = vcmp.eq.s32.totalorder %v1438, 2
          %v1444 = vxor.u32 %v1434, 2147483648
          %v1445 = vsel %vm1443, %v1444, %v1435
          %v1446 = vsel %vm1439, %v1442, %v1445
          %v1447 = vsel %vm1436, nan, %v1446
          %v1448 = vand.u32 2147483647, %v597
          %vm1449 = vcmp.le.f32.partialorder %v1448, 0.7853982
          %vm1450 = vcmp.lt.s32.totalorder %v597, 0
          %v1451 = vand.u32 %v597, 2139095040
          %v1452 = vshrl.u32 %v1451, 23
          %v1453 = vsub.s32 %v1452, 127
          %v1454 = vand.u32 2147483647, %v597
          %v1455 = vand.u32 %v1454, 8388607
          %v1456 = vor.u32 %v1455, 8388608
          %v1457 = vsub.s32 0, %v1456
          %v1458 = vadd.s32 %v1453, 1
          %vm1459 = vcmp.gt.s32.totalorder %v1458, 0
          %v1460 = vsel %vm1459, %v1458, 0
          %v1461 = vshrl.u32 %v1460, 5
          %v1462 = vand.u32 %v1460, 31
          %v1463 = vsub.s32 32, %v1462
          %v1464 = vshrl.u32 683565275, %v1463
          %v1465 = vshll.u32 683565275, %v1462
          %v1466 = vshrl.u32 2475754826, %v1463
          %v1467 = vor.u32 %v1465, %v1466
          %v1468 = vshll.u32 2475754826, %v1462
          %v1469 = vshrl.u32 2131351028, %v1463
          %v1470 = vor.u32 %v1468, %v1469
          %v1471 = vshll.u32 2131351028, %v1462
          %v1472 = vshrl.u32 2102212464, %v1463
          %v1473 = vor.u32 %v1471, %v1472
          %v1474 = vshll.u32 2102212464, %v1462
          %v1475 = vshrl.u32 920167782, %v1463
          %v1476 = vor.u32 %v1474, %v1475
          %v1477 = vshll.u32 920167782, %v1462
          %v1478 = vshrl.u32 1326507024, %v1463
          %v1479 = vor.u32 %v1477, %v1478
          %vm1480 = vcmp.lt.s32.totalorder %v1461, 1
          %vm1481 = vcmp.lt.s32.totalorder %v1461, 2
          %vm1482 = vcmp.lt.s32.totalorder %v1461, 3
          %vm1483 = vcmp.lt.s32.totalorder %v1461, 4
          %v1484 = vsel %vm1480, %v1464, %v1467
          %v1485 = vsel %vm1483, %v1473, 2102212464
          %v1486 = vsel %vm1482, %v1470, %v1485
          %v1487 = vsel %vm1481, %v1484, %v1486
          %v1488 = vsel %vm1480, %v1467, %v1470
          %v1489 = vsel %vm1483, %v1476, 920167782
          %v1490 = vsel %vm1482, %v1473, %v1489
          %v1491 = vsel %vm1481, %v1488, %v1490
          %v1492 = vsel %vm1480, %v1470, %v1473
          %v1493 = vsel %vm1483, %v1479, 1326507024
          %v1494 = vsel %vm1482, %v1476, %v1493
          %v1495 = vsel %vm1481, %v1492, %v1494
          %v1496 = vshll.u32 %v1456, 8
          %v1497 = vmul.u32.u64.compose %v1496, %v1495
          %v1498 = vextract.low.u32 %v1497
          %v1499 = vextract.high.u32 %v1497
          %v1500 = vmul.u32.u64.compose %v1496, %v1491
          %v1501 = vextract.low.u32 %v1500
          %v1502 = vextract.high.u32 %v1500
          %v1503 = vmul.u32 %v1496, %v1487
          %v1504 = vadd.s32 %v1499, %v1501
          %vm1505 = vc.u32 %v1499, %v1501
          %v1506 = vadd.s32 %v1502, 1
          %v1507 = vsel %vm1505, %v1506, %v1502
          %v1508 = vadd.s32 %v1503, %v1507
          %v1509 = vadd.s32 %v1508, 536870912
          %v1510 = vshrl.u32 %v1509, 30
          %v1511 = vshll.u32 %v1510, 30
          %v1512 = vsub.s32 %v1508, %v1511
          %vm1513 = vcmp.lt.s32.totalorder %v1512, 0
          %v1514 = vsub.s32 0, %v1512
          %v1515 = vsel %vm1513, %v1514, %v1512
          %v1516 = vclz %v1515
          %v1517 = vsub.s32 %v1516, 2
          %vm1518 = vcmp.gt.s32.totalorder 0, %v1517
          %v1519 = vsel %vm1518, 0, %v1517
          %v1520 = vsub.s32 32, %v1519
          %v1521 = vshll.u32 %v1512, %v1519
          %v1522 = vshrl.u32 %v1504, %v1520
          %v1523 = vor.u32 %v1521, %v1522
          %v1524 = vsub.s32 4294967266, %v1519
          %v1525 = vadd.s32 %v1524, 127
          %v1526 = vshll.u32 %v1525, 23
          %v1527 = vor.u32 4788187, %v1526
          %v1528 = vand.u32 2147483647, %v1527
          %v1530 = vcvt.s32.f32 %v1523
          %v1531 = vmul.f32 %v1530, %v1528
          %v1532 = vxor.u32 %v1531, 2147483648
          %v1533 = vsel %vm1450, %v1532, %v1531
          %v1534 = vsub.s32 4, %v1510
          %v1535 = vsel %vm1450, %v1534, %v1510
          %v1536 = vsel %vm1449, %v597, %v1533
          %v1537 = vsel %vm1449, 0, %v1535
          %v1538 = vcosq.f32.pop %v1536
          %v1539 = vsinq.f32.pop %v1536
          %vm1540 = vweird.f32 %v597
          %v1541 = vadd.s32 %v1537, 3
          %v1542 = vand.u32 %v1541, 3
          %vm1543 = vcmp.lt.s32.totalorder %v1542, 2
          %vm1544 = vcmp.eq.s32.totalorder %v1542, 0
          %v1545 = vxor.u32 %v1539, 2147483648
          %v1546 = vsel %vm1544, %v1538, %v1545
          %vm1547 = vcmp.eq.s32.totalorder %v1542, 2
          %v1548 = vxor.u32 %v1538, 2147483648
          %v1549 = vsel %vm1547, %v1548, %v1539
          %v1550 = vsel %vm1543, %v1546, %v1549
          %v1551 = vsel %vm1540, nan, %v1550
          %v1552 = vand.u32 2147483647, %v602
          %vm1553 = vcmp.le.f32.partialorder %v1552, 0.7853982
          %vm1554 = vcmp.lt.s32.totalorder %v602, 0
          %v1555 = vand.u32 %v602, 2139095040
          %v1556 = vshrl.u32 %v1555, 23
          %v1557 = vsub.s32 %v1556, 127
          %v1558 = vand.u32 2147483647, %v602
          %v1559 = vand.u32 %v1558, 8388607
          %v1560 = vor.u32 %v1559, 8388608
          %v1561 = vsub.s32 0, %v1560
          %v1562 = vadd.s32 %v1557, 1
          %vm1563 = vcmp.gt.s32.totalorder %v1562, 0
          %v1564 = vsel %vm1563, %v1562, 0
          %v1565 = vshrl.u32 %v1564, 5
          %v1566 = vand.u32 %v1564, 31
          %v1567 = vsub.s32 32, %v1566
          %v1568 = vshrl.u32 683565275, %v1567
          %v1569 = vshll.u32 683565275, %v1566
          %v1570 = vshrl.u32 2475754826, %v1567
          %v1571 = vor.u32 %v1569, %v1570
          %v1572 = vshll.u32 2475754826, %v1566
          %v1573 = vshrl.u32 2131351028, %v1567
          %v1574 = vor.u32 %v1572, %v1573
          %v1575 = vshll.u32 2131351028, %v1566
          %v1576 = vshrl.u32 2102212464, %v1567
          %v1577 = vor.u32 %v1575, %v1576
          %v1578 = vshll.u32 2102212464, %v1566
          %v1579 = vshrl.u32 920167782, %v1567
          %v1580 = vor.u32 %v1578, %v1579
          %v1581 = vshll.u32 920167782, %v1566
          %v1582 = vshrl.u32 1326507024, %v1567
          %v1583 = vor.u32 %v1581, %v1582
          %vm1584 = vcmp.lt.s32.totalorder %v1565, 1
          %vm1585 = vcmp.lt.s32.totalorder %v1565, 2
          %vm1586 = vcmp.lt.s32.totalorder %v1565, 3
          %vm1587 = vcmp.lt.s32.totalorder %v1565, 4
          %v1588 = vsel %vm1584, %v1568, %v1571
          %v1589 = vsel %vm1587, %v1577, 2102212464
          %v1590 = vsel %vm1586, %v1574, %v1589
          %v1591 = vsel %vm1585, %v1588, %v1590
          %v1592 = vsel %vm1584, %v1571, %v1574
          %v1593 = vsel %vm1587, %v1580, 920167782
          %v1594 = vsel %vm1586, %v1577, %v1593
          %v1595 = vsel %vm1585, %v1592, %v1594
          %v1596 = vsel %vm1584, %v1574, %v1577
          %v1597 = vsel %vm1587, %v1583, 1326507024
          %v1598 = vsel %vm1586, %v1580, %v1597
          %v1599 = vsel %vm1585, %v1596, %v1598
          %v1600 = vshll.u32 %v1560, 8
          %v1601 = vmul.u32.u64.compose %v1600, %v1599
          %v1602 = vextract.low.u32 %v1601
          %v1603 = vextract.high.u32 %v1601
          %v1604 = vmul.u32.u64.compose %v1600, %v1595
          %v1605 = vextract.low.u32 %v1604
          %v1606 = vextract.high.u32 %v1604
          %v1607 = vmul.u32 %v1600, %v1591
          %v1608 = vadd.s32 %v1603, %v1605
          %vm1609 = vc.u32 %v1603, %v1605
          %v1610 = vadd.s32 %v1606, 1
          %v1611 = vsel %vm1609, %v1610, %v1606
          %v1612 = vadd.s32 %v1607, %v1611
          %v1613 = vadd.s32 %v1612, 536870912
          %v1614 = vshrl.u32 %v1613, 30
          %v1615 = vshll.u32 %v1614, 30
          %v1616 = vsub.s32 %v1612, %v1615
          %vm1617 = vcmp.lt.s32.totalorder %v1616, 0
          %v1618 = vsub.s32 0, %v1616
          %v1619 = vsel %vm1617, %v1618, %v1616
          %v1620 = vclz %v1619
          %v1621 = vsub.s32 %v1620, 2
          %vm1622 = vcmp.gt.s32.totalorder 0, %v1621
          %v1623 = vsel %vm1622, 0, %v1621
          %v1624 = vsub.s32 32, %v1623
          %v1625 = vshll.u32 %v1616, %v1623
          %v1626 = vshrl.u32 %v1608, %v1624
          %v1627 = vor.u32 %v1625, %v1626
          %v1628 = vsub.s32 4294967266, %v1623
          %v1629 = vadd.s32 %v1628, 127
          %v1630 = vshll.u32 %v1629, 23
          %v1631 = vor.u32 4788187, %v1630
          %v1632 = vand.u32 2147483647, %v1631
          %v1634 = vcvt.s32.f32 %v1627
          %v1635 = vmul.f32 %v1634, %v1632
          %v1636 = vxor.u32 %v1635, 2147483648
          %v1637 = vsel %vm1554, %v1636, %v1635
          %v1638 = vsub.s32 4, %v1614
          %v1639 = vsel %vm1554, %v1638, %v1614
          %v1640 = vsel %vm1553, %v602, %v1637
          %v1641 = vsel %vm1553, 0, %v1639
          %v1642 = vcosq.f32.pop %v1640
          %v1643 = vsinq.f32.pop %v1640
          %vm1644 = vweird.f32 %v602
          %v1645 = vadd.s32 %v1641, 3
          %v1646 = vand.u32 %v1645, 3
          %vm1647 = vcmp.lt.s32.totalorder %v1646, 2
          %vm1648 = vcmp.eq.s32.totalorder %v1646, 0
          %v1649 = vxor.u32 %v1643, 2147483648
          %v1650 = vsel %vm1648, %v1642, %v1649
          %vm1651 = vcmp.eq.s32.totalorder %v1646, 2
          %v1652 = vxor.u32 %v1642, 2147483648
          %v1653 = vsel %vm1651, %v1652, %v1643
          %v1654 = vsel %vm1647, %v1650, %v1653
          %v1655 = vsel %vm1644, nan, %v1654
          %v1656 = vand.u32 2147483647, %v607
          %vm1657 = vcmp.le.f32.partialorder %v1656, 0.7853982
          %vm1658 = vcmp.lt.s32.totalorder %v607, 0
          %v1659 = vand.u32 %v607, 2139095040
          %v1660 = vshrl.u32 %v1659, 23
          %v1661 = vsub.s32 %v1660, 127
          %v1662 = vand.u32 2147483647, %v607
          %v1663 = vand.u32 %v1662, 8388607
          %v1664 = vor.u32 %v1663, 8388608
          %v1665 = vsub.s32 0, %v1664
          %v1666 = vadd.s32 %v1661, 1
          %vm1667 = vcmp.gt.s32.totalorder %v1666, 0
          %v1668 = vsel %vm1667, %v1666, 0
          %v1669 = vshrl.u32 %v1668, 5
          %v1670 = vand.u32 %v1668, 31
          %v1671 = vsub.s32 32, %v1670
          %v1672 = vshrl.u32 683565275, %v1671
          %v1673 = vshll.u32 683565275, %v1670
          %v1674 = vshrl.u32 2475754826, %v1671
          %v1675 = vor.u32 %v1673, %v1674
          %v1676 = vshll.u32 2475754826, %v1670
          %v1677 = vshrl.u32 2131351028, %v1671
          %v1678 = vor.u32 %v1676, %v1677
          %v1679 = vshll.u32 2131351028, %v1670
          %v1680 = vshrl.u32 2102212464, %v1671
          %v1681 = vor.u32 %v1679, %v1680
          %v1682 = vshll.u32 2102212464, %v1670
          %v1683 = vshrl.u32 920167782, %v1671
          %v1684 = vor.u32 %v1682, %v1683
          %v1685 = vshll.u32 920167782, %v1670
          %v1686 = vshrl.u32 1326507024, %v1671
          %v1687 = vor.u32 %v1685, %v1686
          %vm1688 = vcmp.lt.s32.totalorder %v1669, 1
          %vm1689 = vcmp.lt.s32.totalorder %v1669, 2
          %vm1690 = vcmp.lt.s32.totalorder %v1669, 3
          %vm1691 = vcmp.lt.s32.totalorder %v1669, 4
          %v1692 = vsel %vm1688, %v1672, %v1675
          %v1693 = vsel %vm1691, %v1681, 2102212464
          %v1694 = vsel %vm1690, %v1678, %v1693
          %v1695 = vsel %vm1689, %v1692, %v1694
          %v1696 = vsel %vm1688, %v1675, %v1678
          %v1697 = vsel %vm1691, %v1684, 920167782
          %v1698 = vsel %vm1690, %v1681, %v1697
          %v1699 = vsel %vm1689, %v1696, %v1698
          %v1700 = vsel %vm1688, %v1678, %v1681
          %v1701 = vsel %vm1691, %v1687, 1326507024
          %v1702 = vsel %vm1690, %v1684, %v1701
          %v1703 = vsel %vm1689, %v1700, %v1702
          %v1704 = vshll.u32 %v1664, 8
          %v1705 = vmul.u32.u64.compose %v1704, %v1703
          %v1706 = vextract.low.u32 %v1705
          %v1707 = vextract.high.u32 %v1705
          %v1708 = vmul.u32.u64.compose %v1704, %v1699
          %v1709 = vextract.low.u32 %v1708
          %v1710 = vextract.high.u32 %v1708
          %v1711 = vmul.u32 %v1704, %v1695
          %v1712 = vadd.s32 %v1707, %v1709
          %vm1713 = vc.u32 %v1707, %v1709
          %v1714 = vadd.s32 %v1710, 1
          %v1715 = vsel %vm1713, %v1714, %v1710
          %v1716 = vadd.s32 %v1711, %v1715
          %v1717 = vadd.s32 %v1716, 536870912
          %v1718 = vshrl.u32 %v1717, 30
          %v1719 = vshll.u32 %v1718, 30
          %v1720 = vsub.s32 %v1716, %v1719
          %vm1721 = vcmp.lt.s32.totalorder %v1720, 0
          %v1722 = vsub.s32 0, %v1720
          %v1723 = vsel %vm1721, %v1722, %v1720
          %v1724 = vclz %v1723
          %v1725 = vsub.s32 %v1724, 2
          %vm1726 = vcmp.gt.s32.totalorder 0, %v1725
          %v1727 = vsel %vm1726, 0, %v1725
          %v1728 = vsub.s32 32, %v1727
          %v1729 = vshll.u32 %v1720, %v1727
          %v1730 = vshrl.u32 %v1712, %v1728
          %v1731 = vor.u32 %v1729, %v1730
          %v1732 = vsub.s32 4294967266, %v1727
          %v1733 = vadd.s32 %v1732, 127
          %v1734 = vshll.u32 %v1733, 23
          %v1735 = vor.u32 4788187, %v1734
          %v1736 = vand.u32 2147483647, %v1735
          %v1738 = vcvt.s32.f32 %v1731
          %v1739 = vmul.f32 %v1738, %v1736
          %v1740 = vxor.u32 %v1739, 2147483648
          %v1741 = vsel %vm1658, %v1740, %v1739
          %v1742 = vsub.s32 4, %v1718
          %v1743 = vsel %vm1658, %v1742, %v1718
          %v1744 = vsel %vm1657, %v607, %v1741
          %v1745 = vsel %vm1657, 0, %v1743
          %v1746 = vcosq.f32.pop %v1744
          %v1747 = vsinq.f32.pop %v1744
          %vm1748 = vweird.f32 %v607
          %v1749 = vadd.s32 %v1745, 3
          %v1750 = vand.u32 %v1749, 3
          %vm1751 = vcmp.lt.s32.totalorder %v1750, 2
          %vm1752 = vcmp.eq.s32.totalorder %v1750, 0
          %v1753 = vxor.u32 %v1747, 2147483648
          %v1754 = vsel %vm1752, %v1746, %v1753
          %vm1755 = vcmp.eq.s32.totalorder %v1750, 2
          %v1756 = vxor.u32 %v1746, 2147483648
          %v1757 = vsel %vm1755, %v1756, %v1747
          %v1758 = vsel %vm1751, %v1754, %v1757
          %v1759 = vsel %vm1748, nan, %v1758
          %v1760 = vand.u32 2147483647, %v612
          %vm1761 = vcmp.le.f32.partialorder %v1760, 0.7853982
          %vm1762 = vcmp.lt.s32.totalorder %v612, 0
          %v1763 = vand.u32 %v612, 2139095040
          %v1764 = vshrl.u32 %v1763, 23
          %v1765 = vsub.s32 %v1764, 127
          %v1766 = vand.u32 2147483647, %v612
          %v1767 = vand.u32 %v1766, 8388607
          %v1768 = vor.u32 %v1767, 8388608
          %v1769 = vsub.s32 0, %v1768
          %v1770 = vadd.s32 %v1765, 1
          %vm1771 = vcmp.gt.s32.totalorder %v1770, 0
          %v1772 = vsel %vm1771, %v1770, 0
          %v1773 = vshrl.u32 %v1772, 5
          %v1774 = vand.u32 %v1772, 31
          %v1775 = vsub.s32 32, %v1774
          %v1776 = vshrl.u32 683565275, %v1775
          %v1777 = vshll.u32 683565275, %v1774
          %v1778 = vshrl.u32 2475754826, %v1775
          %v1779 = vor.u32 %v1777, %v1778
          %v1780 = vshll.u32 2475754826, %v1774
          %v1781 = vshrl.u32 2131351028, %v1775
          %v1782 = vor.u32 %v1780, %v1781
          %v1783 = vshll.u32 2131351028, %v1774
          %v1784 = vshrl.u32 2102212464, %v1775
          %v1785 = vor.u32 %v1783, %v1784
          %v1786 = vshll.u32 2102212464, %v1774
          %v1787 = vshrl.u32 920167782, %v1775
          %v1788 = vor.u32 %v1786, %v1787
          %v1789 = vshll.u32 920167782, %v1774
          %v1790 = vshrl.u32 1326507024, %v1775
          %v1791 = vor.u32 %v1789, %v1790
          %vm1792 = vcmp.lt.s32.totalorder %v1773, 1
          %vm1793 = vcmp.lt.s32.totalorder %v1773, 2
          %vm1794 = vcmp.lt.s32.totalorder %v1773, 3
          %vm1795 = vcmp.lt.s32.totalorder %v1773, 4
          %v1796 = vsel %vm1792, %v1776, %v1779
          %v1797 = vsel %vm1795, %v1785, 2102212464
          %v1798 = vsel %vm1794, %v1782, %v1797
          %v1799 = vsel %vm1793, %v1796, %v1798
          %v1800 = vsel %vm1792, %v1779, %v1782
          %v1801 = vsel %vm1795, %v1788, 920167782
          %v1802 = vsel %vm1794, %v1785, %v1801
          %v1803 = vsel %vm1793, %v1800, %v1802
          %v1804 = vsel %vm1792, %v1782, %v1785
          %v1805 = vsel %vm1795, %v1791, 1326507024
          %v1806 = vsel %vm1794, %v1788, %v1805
          %v1807 = vsel %vm1793, %v1804, %v1806
          %v1808 = vshll.u32 %v1768, 8
          %v1809 = vmul.u32.u64.compose %v1808, %v1807
          %v1810 = vextract.low.u32 %v1809
          %v1811 = vextract.high.u32 %v1809
          %v1812 = vmul.u32.u64.compose %v1808, %v1803
          %v1813 = vextract.low.u32 %v1812
          %v1814 = vextract.high.u32 %v1812
          %v1815 = vmul.u32 %v1808, %v1799
          %v1816 = vadd.s32 %v1811, %v1813
          %vm1817 = vc.u32 %v1811, %v1813
          %v1818 = vadd.s32 %v1814, 1
          %v1819 = vsel %vm1817, %v1818, %v1814
          %v1820 = vadd.s32 %v1815, %v1819
          %v1821 = vadd.s32 %v1820, 536870912
          %v1822 = vshrl.u32 %v1821, 30
          %v1823 = vshll.u32 %v1822, 30
          %v1824 = vsub.s32 %v1820, %v1823
          %vm1825 = vcmp.lt.s32.totalorder %v1824, 0
          %v1826 = vsub.s32 0, %v1824
          %v1827 = vsel %vm1825, %v1826, %v1824
          %v1828 = vclz %v1827
          %v1829 = vsub.s32 %v1828, 2
          %vm1830 = vcmp.gt.s32.totalorder 0, %v1829
          %v1831 = vsel %vm1830, 0, %v1829
          %v1832 = vsub.s32 32, %v1831
          %v1833 = vshll.u32 %v1824, %v1831
          %v1834 = vshrl.u32 %v1816, %v1832
          %v1835 = vor.u32 %v1833, %v1834
          %v1836 = vsub.s32 4294967266, %v1831
          %v1837 = vadd.s32 %v1836, 127
          %v1838 = vshll.u32 %v1837, 23
          %v1839 = vor.u32 4788187, %v1838
          %v1840 = vand.u32 2147483647, %v1839
          %v1842 = vcvt.s32.f32 %v1835
          %v1843 = vmul.f32 %v1842, %v1840
          %v1844 = vxor.u32 %v1843, 2147483648
          %v1845 = vsel %vm1762, %v1844, %v1843
          %v1846 = vsub.s32 4, %v1822
          %v1847 = vsel %vm1762, %v1846, %v1822
          %v1848 = vsel %vm1761, %v612, %v1845
          %v1849 = vsel %vm1761, 0, %v1847
          %v1850 = vcosq.f32.pop %v1848
          %v1851 = vsinq.f32.pop %v1848
          %vm1852 = vweird.f32 %v612
          %v1853 = vadd.s32 %v1849, 3
          %v1854 = vand.u32 %v1853, 3
          %vm1855 = vcmp.lt.s32.totalorder %v1854, 2
          %vm1856 = vcmp.eq.s32.totalorder %v1854, 0
          %v1857 = vxor.u32 %v1851, 2147483648
          %v1858 = vsel %vm1856, %v1850, %v1857
          %vm1859 = vcmp.eq.s32.totalorder %v1854, 2
          %v1860 = vxor.u32 %v1850, 2147483648
          %v1861 = vsel %vm1859, %v1860, %v1851
          %v1862 = vsel %vm1855, %v1858, %v1861
          %v1863 = vsel %vm1852, nan, %v1862
          %v1864 = vand.u32 2147483647, %v617
          %vm1865 = vcmp.le.f32.partialorder %v1864, 0.7853982
          %vm1866 = vcmp.lt.s32.totalorder %v617, 0
          %v1867 = vand.u32 %v617, 2139095040
          %v1868 = vshrl.u32 %v1867, 23
          %v1869 = vsub.s32 %v1868, 127
          %v1870 = vand.u32 2147483647, %v617
          %v1871 = vand.u32 %v1870, 8388607
          %v1872 = vor.u32 %v1871, 8388608
          %v1873 = vsub.s32 0, %v1872
          %v1874 = vadd.s32 %v1869, 1
          %vm1875 = vcmp.gt.s32.totalorder %v1874, 0
          %v1876 = vsel %vm1875, %v1874, 0
          %v1877 = vshrl.u32 %v1876, 5
          %v1878 = vand.u32 %v1876, 31
          %v1879 = vsub.s32 32, %v1878
          %v1880 = vshrl.u32 683565275, %v1879
          %v1881 = vshll.u32 683565275, %v1878
          %v1882 = vshrl.u32 2475754826, %v1879
          %v1883 = vor.u32 %v1881, %v1882
          %v1884 = vshll.u32 2475754826, %v1878
          %v1885 = vshrl.u32 2131351028, %v1879
          %v1886 = vor.u32 %v1884, %v1885
          %v1887 = vshll.u32 2131351028, %v1878
          %v1888 = vshrl.u32 2102212464, %v1879
          %v1889 = vor.u32 %v1887, %v1888
          %v1890 = vshll.u32 2102212464, %v1878
          %v1891 = vshrl.u32 920167782, %v1879
          %v1892 = vor.u32 %v1890, %v1891
          %v1893 = vshll.u32 920167782, %v1878
          %v1894 = vshrl.u32 1326507024, %v1879
          %v1895 = vor.u32 %v1893, %v1894
          %vm1896 = vcmp.lt.s32.totalorder %v1877, 1
          %vm1897 = vcmp.lt.s32.totalorder %v1877, 2
          %vm1898 = vcmp.lt.s32.totalorder %v1877, 3
          %vm1899 = vcmp.lt.s32.totalorder %v1877, 4
          %v1900 = vsel %vm1896, %v1880, %v1883
          %v1901 = vsel %vm1899, %v1889, 2102212464
          %v1902 = vsel %vm1898, %v1886, %v1901
          %v1903 = vsel %vm1897, %v1900, %v1902
          %v1904 = vsel %vm1896, %v1883, %v1886
          %v1905 = vsel %vm1899, %v1892, 920167782
          %v1906 = vsel %vm1898, %v1889, %v1905
          %v1907 = vsel %vm1897, %v1904, %v1906
          %v1908 = vsel %vm1896, %v1886, %v1889
          %v1909 = vsel %vm1899, %v1895, 1326507024
          %v1910 = vsel %vm1898, %v1892, %v1909
          %v1911 = vsel %vm1897, %v1908, %v1910
          %v1912 = vshll.u32 %v1872, 8
          %v1913 = vmul.u32.u64.compose %v1912, %v1911
          %v1914 = vextract.low.u32 %v1913
          %v1915 = vextract.high.u32 %v1913
          %v1916 = vmul.u32.u64.compose %v1912, %v1907
          %v1917 = vextract.low.u32 %v1916
          %v1918 = vextract.high.u32 %v1916
          %v1919 = vmul.u32 %v1912, %v1903
          %v1920 = vadd.s32 %v1915, %v1917
          %vm1921 = vc.u32 %v1915, %v1917
          %v1922 = vadd.s32 %v1918, 1
          %v1923 = vsel %vm1921, %v1922, %v1918
          %v1924 = vadd.s32 %v1919, %v1923
          %v1925 = vadd.s32 %v1924, 536870912
          %v1926 = vshrl.u32 %v1925, 30
          %v1927 = vshll.u32 %v1926, 30
          %v1928 = vsub.s32 %v1924, %v1927
          %vm1929 = vcmp.lt.s32.totalorder %v1928, 0
          %v1930 = vsub.s32 0, %v1928
          %v1931 = vsel %vm1929, %v1930, %v1928
          %v1932 = vclz %v1931
          %v1933 = vsub.s32 %v1932, 2
          %vm1934 = vcmp.gt.s32.totalorder 0, %v1933
          %v1935 = vsel %vm1934, 0, %v1933
          %v1936 = vsub.s32 32, %v1935
          %v1937 = vshll.u32 %v1928, %v1935
          %v1938 = vshrl.u32 %v1920, %v1936
          %v1939 = vor.u32 %v1937, %v1938
          %v1940 = vsub.s32 4294967266, %v1935
          %v1941 = vadd.s32 %v1940, 127
          %v1942 = vshll.u32 %v1941, 23
          %v1943 = vor.u32 4788187, %v1942
          %v1944 = vand.u32 2147483647, %v1943
          %v1946 = vcvt.s32.f32 %v1939
          %v1947 = vmul.f32 %v1946, %v1944
          %v1948 = vxor.u32 %v1947, 2147483648
          %v1949 = vsel %vm1866, %v1948, %v1947
          %v1950 = vsub.s32 4, %v1926
          %v1951 = vsel %vm1866, %v1950, %v1926
          %v1952 = vsel %vm1865, %v617, %v1949
          %v1953 = vsel %vm1865, 0, %v1951
          %v1954 = vcosq.f32.pop %v1952
          %v1955 = vsinq.f32.pop %v1952
          %vm1956 = vweird.f32 %v617
          %v1957 = vadd.s32 %v1953, 3
          %v1958 = vand.u32 %v1957, 3
          %vm1959 = vcmp.lt.s32.totalorder %v1958, 2
          %vm1960 = vcmp.eq.s32.totalorder %v1958, 0
          %v1961 = vxor.u32 %v1955, 2147483648
          %v1962 = vsel %vm1960, %v1954, %v1961
          %vm1963 = vcmp.eq.s32.totalorder %v1958, 2
          %v1964 = vxor.u32 %v1954, 2147483648
          %v1965 = vsel %vm1963, %v1964, %v1955
          %v1966 = vsel %vm1959, %v1962, %v1965
          %v1967 = vsel %vm1956, nan, %v1966
          %v1968 = vand.u32 2147483647, %v622
          %vm1969 = vcmp.le.f32.partialorder %v1968, 0.7853982
          %vm1970 = vcmp.lt.s32.totalorder %v622, 0
          %v1971 = vand.u32 %v622, 2139095040
          %v1972 = vshrl.u32 %v1971, 23
          %v1973 = vsub.s32 %v1972, 127
          %v1974 = vand.u32 2147483647, %v622
          %v1975 = vand.u32 %v1974, 8388607
          %v1976 = vor.u32 %v1975, 8388608
          %v1977 = vsub.s32 0, %v1976
          %v1978 = vadd.s32 %v1973, 1
          %vm1979 = vcmp.gt.s32.totalorder %v1978, 0
          %v1980 = vsel %vm1979, %v1978, 0
          %v1981 = vshrl.u32 %v1980, 5
          %v1982 = vand.u32 %v1980, 31
          %v1983 = vsub.s32 32, %v1982
          %v1984 = vshrl.u32 683565275, %v1983
          %v1985 = vshll.u32 683565275, %v1982
          %v1986 = vshrl.u32 2475754826, %v1983
          %v1987 = vor.u32 %v1985, %v1986
          %v1988 = vshll.u32 2475754826, %v1982
          %v1989 = vshrl.u32 2131351028, %v1983
          %v1990 = vor.u32 %v1988, %v1989
          %v1991 = vshll.u32 2131351028, %v1982
          %v1992 = vshrl.u32 2102212464, %v1983
          %v1993 = vor.u32 %v1991, %v1992
          %v1994 = vshll.u32 2102212464, %v1982
          %v1995 = vshrl.u32 920167782, %v1983
          %v1996 = vor.u32 %v1994, %v1995
          %v1997 = vshll.u32 920167782, %v1982
          %v1998 = vshrl.u32 1326507024, %v1983
          %v1999 = vor.u32 %v1997, %v1998
          %vm2000 = vcmp.lt.s32.totalorder %v1981, 1
          %vm2001 = vcmp.lt.s32.totalorder %v1981, 2
          %vm2002 = vcmp.lt.s32.totalorder %v1981, 3
          %vm2003 = vcmp.lt.s32.totalorder %v1981, 4
          %v2004 = vsel %vm2000, %v1984, %v1987
          %v2005 = vsel %vm2003, %v1993, 2102212464
          %v2006 = vsel %vm2002, %v1990, %v2005
          %v2007 = vsel %vm2001, %v2004, %v2006
          %v2008 = vsel %vm2000, %v1987, %v1990
          %v2009 = vsel %vm2003, %v1996, 920167782
          %v2010 = vsel %vm2002, %v1993, %v2009
          %v2011 = vsel %vm2001, %v2008, %v2010
          %v2012 = vsel %vm2000, %v1990, %v1993
          %v2013 = vsel %vm2003, %v1999, 1326507024
          %v2014 = vsel %vm2002, %v1996, %v2013
          %v2015 = vsel %vm2001, %v2012, %v2014
          %v2016 = vshll.u32 %v1976, 8
          %v2017 = vmul.u32.u64.compose %v2016, %v2015
          %v2018 = vextract.low.u32 %v2017
          %v2019 = vextract.high.u32 %v2017
          %v2020 = vmul.u32.u64.compose %v2016, %v2011
          %v2021 = vextract.low.u32 %v2020
          %v2022 = vextract.high.u32 %v2020
          %v2023 = vmul.u32 %v2016, %v2007
          %v2024 = vadd.s32 %v2019, %v2021
          %vm2025 = vc.u32 %v2019, %v2021
          %v2026 = vadd.s32 %v2022, 1
          %v2027 = vsel %vm2025, %v2026, %v2022
          %v2028 = vadd.s32 %v2023, %v2027
          %v2029 = vadd.s32 %v2028, 536870912
          %v2030 = vshrl.u32 %v2029, 30
          %v2031 = vshll.u32 %v2030, 30
          %v2032 = vsub.s32 %v2028, %v2031
          %vm2033 = vcmp.lt.s32.totalorder %v2032, 0
          %v2034 = vsub.s32 0, %v2032
          %v2035 = vsel %vm2033, %v2034, %v2032
          %v2036 = vclz %v2035
          %v2037 = vsub.s32 %v2036, 2
          %vm2038 = vcmp.gt.s32.totalorder 0, %v2037
          %v2039 = vsel %vm2038, 0, %v2037
          %v2040 = vsub.s32 32, %v2039
          %v2041 = vshll.u32 %v2032, %v2039
          %v2042 = vshrl.u32 %v2024, %v2040
          %v2043 = vor.u32 %v2041, %v2042
          %v2044 = vsub.s32 4294967266, %v2039
          %v2045 = vadd.s32 %v2044, 127
          %v2046 = vshll.u32 %v2045, 23
          %v2047 = vor.u32 4788187, %v2046
          %v2048 = vand.u32 2147483647, %v2047
          %v2050 = vcvt.s32.f32 %v2043
          %v2051 = vmul.f32 %v2050, %v2048
          %v2052 = vxor.u32 %v2051, 2147483648
          %v2053 = vsel %vm1970, %v2052, %v2051
          %v2054 = vsub.s32 4, %v2030
          %v2055 = vsel %vm1970, %v2054, %v2030
          %v2056 = vsel %vm1969, %v622, %v2053
          %v2057 = vsel %vm1969, 0, %v2055
          %v2058 = vcosq.f32.pop %v2056
          %v2059 = vsinq.f32.pop %v2056
          %vm2060 = vweird.f32 %v622
          %v2061 = vadd.s32 %v2057, 3
          %v2062 = vand.u32 %v2061, 3
          %vm2063 = vcmp.lt.s32.totalorder %v2062, 2
          %vm2064 = vcmp.eq.s32.totalorder %v2062, 0
          %v2065 = vxor.u32 %v2059, 2147483648
          %v2066 = vsel %vm2064, %v2058, %v2065
          %vm2067 = vcmp.eq.s32.totalorder %v2062, 2
          %v2068 = vxor.u32 %v2058, 2147483648
          %v2069 = vsel %vm2067, %v2068, %v2059
          %v2070 = vsel %vm2063, %v2066, %v2069
          %v2071 = vsel %vm2060, nan, %v2070
          %v2072 = vand.u32 2147483647, %v627
          %vm2073 = vcmp.le.f32.partialorder %v2072, 0.7853982
          %vm2074 = vcmp.lt.s32.totalorder %v627, 0
          %v2075 = vand.u32 %v627, 2139095040
          %v2076 = vshrl.u32 %v2075, 23
          %v2077 = vsub.s32 %v2076, 127
          %v2078 = vand.u32 2147483647, %v627
          %v2079 = vand.u32 %v2078, 8388607
          %v2080 = vor.u32 %v2079, 8388608
          %v2081 = vsub.s32 0, %v2080
          %v2082 = vadd.s32 %v2077, 1
          %vm2083 = vcmp.gt.s32.totalorder %v2082, 0
          %v2084 = vsel %vm2083, %v2082, 0
          %v2085 = vshrl.u32 %v2084, 5
          %v2086 = vand.u32 %v2084, 31
          %v2087 = vsub.s32 32, %v2086
          %v2088 = vshrl.u32 683565275, %v2087
          %v2089 = vshll.u32 683565275, %v2086
          %v2090 = vshrl.u32 2475754826, %v2087
          %v2091 = vor.u32 %v2089, %v2090
          %v2092 = vshll.u32 2475754826, %v2086
          %v2093 = vshrl.u32 2131351028, %v2087
          %v2094 = vor.u32 %v2092, %v2093
          %v2095 = vshll.u32 2131351028, %v2086
          %v2096 = vshrl.u32 2102212464, %v2087
          %v2097 = vor.u32 %v2095, %v2096
          %v2098 = vshll.u32 2102212464, %v2086
          %v2099 = vshrl.u32 920167782, %v2087
          %v2100 = vor.u32 %v2098, %v2099
          %v2101 = vshll.u32 920167782, %v2086
          %v2102 = vshrl.u32 1326507024, %v2087
          %v2103 = vor.u32 %v2101, %v2102
          %vm2104 = vcmp.lt.s32.totalorder %v2085, 1
          %vm2105 = vcmp.lt.s32.totalorder %v2085, 2
          %vm2106 = vcmp.lt.s32.totalorder %v2085, 3
          %vm2107 = vcmp.lt.s32.totalorder %v2085, 4
          %v2108 = vsel %vm2104, %v2088, %v2091
          %v2109 = vsel %vm2107, %v2097, 2102212464
          %v2110 = vsel %vm2106, %v2094, %v2109
          %v2111 = vsel %vm2105, %v2108, %v2110
          %v2112 = vsel %vm2104, %v2091, %v2094
          %v2113 = vsel %vm2107, %v2100, 920167782
          %v2114 = vsel %vm2106, %v2097, %v2113
          %v2115 = vsel %vm2105, %v2112, %v2114
          %v2116 = vsel %vm2104, %v2094, %v2097
          %v2117 = vsel %vm2107, %v2103, 1326507024
          %v2118 = vsel %vm2106, %v2100, %v2117
          %v2119 = vsel %vm2105, %v2116, %v2118
          %v2120 = vshll.u32 %v2080, 8
          %v2121 = vmul.u32.u64.compose %v2120, %v2119
          %v2122 = vextract.low.u32 %v2121
          %v2123 = vextract.high.u32 %v2121
          %v2124 = vmul.u32.u64.compose %v2120, %v2115
          %v2125 = vextract.low.u32 %v2124
          %v2126 = vextract.high.u32 %v2124
          %v2127 = vmul.u32 %v2120, %v2111
          %v2128 = vadd.s32 %v2123, %v2125
          %vm2129 = vc.u32 %v2123, %v2125
          %v2130 = vadd.s32 %v2126, 1
          %v2131 = vsel %vm2129, %v2130, %v2126
          %v2132 = vadd.s32 %v2127, %v2131
          %v2133 = vadd.s32 %v2132, 536870912
          %v2134 = vshrl.u32 %v2133, 30
          %v2135 = vshll.u32 %v2134, 30
          %v2136 = vsub.s32 %v2132, %v2135
          %vm2137 = vcmp.lt.s32.totalorder %v2136, 0
          %v2138 = vsub.s32 0, %v2136
          %v2139 = vsel %vm2137, %v2138, %v2136
          %v2140 = vclz %v2139
          %v2141 = vsub.s32 %v2140, 2
          %vm2142 = vcmp.gt.s32.totalorder 0, %v2141
          %v2143 = vsel %vm2142, 0, %v2141
          %v2144 = vsub.s32 32, %v2143
          %v2145 = vshll.u32 %v2136, %v2143
          %v2146 = vshrl.u32 %v2128, %v2144
          %v2147 = vor.u32 %v2145, %v2146
          %v2148 = vsub.s32 4294967266, %v2143
          %v2149 = vadd.s32 %v2148, 127
          %v2150 = vshll.u32 %v2149, 23
          %v2151 = vor.u32 4788187, %v2150
          %v2152 = vand.u32 2147483647, %v2151
          %v2154 = vcvt.s32.f32 %v2147
          %v2155 = vmul.f32 %v2154, %v2152
          %v2156 = vxor.u32 %v2155, 2147483648
          %v2157 = vsel %vm2074, %v2156, %v2155
          %v2158 = vsub.s32 4, %v2134
          %v2159 = vsel %vm2074, %v2158, %v2134
          %v2160 = vsel %vm2073, %v627, %v2157
          %v2161 = vsel %vm2073, 0, %v2159
          %v2162 = vcosq.f32.pop %v2160
          %v2163 = vsinq.f32.pop %v2160
          %vm2164 = vweird.f32 %v627
          %v2165 = vadd.s32 %v2161, 3
          %v2166 = vand.u32 %v2165, 3
          %vm2167 = vcmp.lt.s32.totalorder %v2166, 2
          %vm2168 = vcmp.eq.s32.totalorder %v2166, 0
          %v2169 = vxor.u32 %v2163, 2147483648
          %v2170 = vsel %vm2168, %v2162, %v2169
          %vm2171 = vcmp.eq.s32.totalorder %v2166, 2
          %v2172 = vxor.u32 %v2162, 2147483648
          %v2173 = vsel %vm2171, %v2172, %v2163
          %v2174 = vsel %vm2167, %v2170, %v2173
          %v2175 = vsel %vm2164, nan, %v2174
          %v2176 = vand.u32 2147483647, %v632
          %vm2177 = vcmp.le.f32.partialorder %v2176, 0.7853982
          %vm2178 = vcmp.lt.s32.totalorder %v632, 0
          %v2179 = vand.u32 %v632, 2139095040
          %v2180 = vshrl.u32 %v2179, 23
          %v2181 = vsub.s32 %v2180, 127
          %v2182 = vand.u32 2147483647, %v632
          %v2183 = vand.u32 %v2182, 8388607
          %v2184 = vor.u32 %v2183, 8388608
          %v2185 = vsub.s32 0, %v2184
          %v2186 = vadd.s32 %v2181, 1
          %vm2187 = vcmp.gt.s32.totalorder %v2186, 0
          %v2188 = vsel %vm2187, %v2186, 0
          %v2189 = vshrl.u32 %v2188, 5
          %v2190 = vand.u32 %v2188, 31
          %v2191 = vsub.s32 32, %v2190
          %v2192 = vshrl.u32 683565275, %v2191
          %v2193 = vshll.u32 683565275, %v2190
          %v2194 = vshrl.u32 2475754826, %v2191
          %v2195 = vor.u32 %v2193, %v2194
          %v2196 = vshll.u32 2475754826, %v2190
          %v2197 = vshrl.u32 2131351028, %v2191
          %v2198 = vor.u32 %v2196, %v2197
          %v2199 = vshll.u32 2131351028, %v2190
          %v2200 = vshrl.u32 2102212464, %v2191
          %v2201 = vor.u32 %v2199, %v2200
          %v2202 = vshll.u32 2102212464, %v2190
          %v2203 = vshrl.u32 920167782, %v2191
          %v2204 = vor.u32 %v2202, %v2203
          %v2205 = vshll.u32 920167782, %v2190
          %v2206 = vshrl.u32 1326507024, %v2191
          %v2207 = vor.u32 %v2205, %v2206
          %vm2208 = vcmp.lt.s32.totalorder %v2189, 1
          %vm2209 = vcmp.lt.s32.totalorder %v2189, 2
          %vm2210 = vcmp.lt.s32.totalorder %v2189, 3
          %vm2211 = vcmp.lt.s32.totalorder %v2189, 4
          %v2212 = vsel %vm2208, %v2192, %v2195
          %v2213 = vsel %vm2211, %v2201, 2102212464
          %v2214 = vsel %vm2210, %v2198, %v2213
          %v2215 = vsel %vm2209, %v2212, %v2214
          %v2216 = vsel %vm2208, %v2195, %v2198
          %v2217 = vsel %vm2211, %v2204, 920167782
          %v2218 = vsel %vm2210, %v2201, %v2217
          %v2219 = vsel %vm2209, %v2216, %v2218
          %v2220 = vsel %vm2208, %v2198, %v2201
          %v2221 = vsel %vm2211, %v2207, 1326507024
          %v2222 = vsel %vm2210, %v2204, %v2221
          %v2223 = vsel %vm2209, %v2220, %v2222
          %v2224 = vshll.u32 %v2184, 8
          %v2225 = vmul.u32.u64.compose %v2224, %v2223
          %v2226 = vextract.low.u32 %v2225
          %v2227 = vextract.high.u32 %v2225
          %v2228 = vmul.u32.u64.compose %v2224, %v2219
          %v2229 = vextract.low.u32 %v2228
          %v2230 = vextract.high.u32 %v2228
          %v2231 = vmul.u32 %v2224, %v2215
          %v2232 = vadd.s32 %v2227, %v2229
          %vm2233 = vc.u32 %v2227, %v2229
          %v2234 = vadd.s32 %v2230, 1
          %v2235 = vsel %vm2233, %v2234, %v2230
          %v2236 = vadd.s32 %v2231, %v2235
          %v2237 = vadd.s32 %v2236, 536870912
          %v2238 = vshrl.u32 %v2237, 30
          %v2239 = vshll.u32 %v2238, 30
          %v2240 = vsub.s32 %v2236, %v2239
          %vm2241 = vcmp.lt.s32.totalorder %v2240, 0
          %v2242 = vsub.s32 0, %v2240
          %v2243 = vsel %vm2241, %v2242, %v2240
          %v2244 = vclz %v2243
          %v2245 = vsub.s32 %v2244, 2
          %vm2246 = vcmp.gt.s32.totalorder 0, %v2245
          %v2247 = vsel %vm2246, 0, %v2245
          %v2248 = vsub.s32 32, %v2247
          %v2249 = vshll.u32 %v2240, %v2247
          %v2250 = vshrl.u32 %v2232, %v2248
          %v2251 = vor.u32 %v2249, %v2250
          %v2252 = vsub.s32 4294967266, %v2247
          %v2253 = vadd.s32 %v2252, 127
          %v2254 = vshll.u32 %v2253, 23
          %v2255 = vor.u32 4788187, %v2254
          %v2256 = vand.u32 2147483647, %v2255
          %v2258 = vcvt.s32.f32 %v2251
          %v2259 = vmul.f32 %v2258, %v2256
          %v2260 = vxor.u32 %v2259, 2147483648
          %v2261 = vsel %vm2178, %v2260, %v2259
          %v2262 = vsub.s32 4, %v2238
          %v2263 = vsel %vm2178, %v2262, %v2238
          %v2264 = vsel %vm2177, %v632, %v2261
          %v2265 = vsel %vm2177, 0, %v2263
          %v2266 = vcosq.f32.pop %v2264
          %v2267 = vsinq.f32.pop %v2264
          %vm2268 = vweird.f32 %v632
          %v2269 = vadd.s32 %v2265, 3
          %v2270 = vand.u32 %v2269, 3
          %vm2271 = vcmp.lt.s32.totalorder %v2270, 2
          %vm2272 = vcmp.eq.s32.totalorder %v2270, 0
          %v2273 = vxor.u32 %v2267, 2147483648
          %v2274 = vsel %vm2272, %v2266, %v2273
          %vm2275 = vcmp.eq.s32.totalorder %v2270, 2
          %v2276 = vxor.u32 %v2266, 2147483648
          %v2277 = vsel %vm2275, %v2276, %v2267
          %v2278 = vsel %vm2271, %v2274, %v2277
          %v2279 = vsel %vm2268, nan, %v2278
          %v2280 = vand.u32 2147483647, %v637
          %vm2281 = vcmp.le.f32.partialorder %v2280, 0.7853982
          %vm2282 = vcmp.lt.s32.totalorder %v637, 0
          %v2283 = vand.u32 %v637, 2139095040
          %v2284 = vshrl.u32 %v2283, 23
          %v2285 = vsub.s32 %v2284, 127
          %v2286 = vand.u32 2147483647, %v637
          %v2287 = vand.u32 %v2286, 8388607
          %v2288 = vor.u32 %v2287, 8388608
          %v2289 = vsub.s32 0, %v2288
          %v2290 = vadd.s32 %v2285, 1
          %vm2291 = vcmp.gt.s32.totalorder %v2290, 0
          %v2292 = vsel %vm2291, %v2290, 0
          %v2293 = vshrl.u32 %v2292, 5
          %v2294 = vand.u32 %v2292, 31
          %v2295 = vsub.s32 32, %v2294
          %v2296 = vshrl.u32 683565275, %v2295
          %v2297 = vshll.u32 683565275, %v2294
          %v2298 = vshrl.u32 2475754826, %v2295
          %v2299 = vor.u32 %v2297, %v2298
          %v2300 = vshll.u32 2475754826, %v2294
          %v2301 = vshrl.u32 2131351028, %v2295
          %v2302 = vor.u32 %v2300, %v2301
          %v2303 = vshll.u32 2131351028, %v2294
          %v2304 = vshrl.u32 2102212464, %v2295
          %v2305 = vor.u32 %v2303, %v2304
          %v2306 = vshll.u32 2102212464, %v2294
          %v2307 = vshrl.u32 920167782, %v2295
          %v2308 = vor.u32 %v2306, %v2307
          %v2309 = vshll.u32 920167782, %v2294
          %v2310 = vshrl.u32 1326507024, %v2295
          %v2311 = vor.u32 %v2309, %v2310
          %vm2312 = vcmp.lt.s32.totalorder %v2293, 1
          %vm2313 = vcmp.lt.s32.totalorder %v2293, 2
          %vm2314 = vcmp.lt.s32.totalorder %v2293, 3
          %vm2315 = vcmp.lt.s32.totalorder %v2293, 4
          %v2316 = vsel %vm2312, %v2296, %v2299
          %v2317 = vsel %vm2315, %v2305, 2102212464
          %v2318 = vsel %vm2314, %v2302, %v2317
          %v2319 = vsel %vm2313, %v2316, %v2318
          %v2320 = vsel %vm2312, %v2299, %v2302
          %v2321 = vsel %vm2315, %v2308, 920167782
          %v2322 = vsel %vm2314, %v2305, %v2321
          %v2323 = vsel %vm2313, %v2320, %v2322
          %v2324 = vsel %vm2312, %v2302, %v2305
          %v2325 = vsel %vm2315, %v2311, 1326507024
          %v2326 = vsel %vm2314, %v2308, %v2325
          %v2327 = vsel %vm2313, %v2324, %v2326
          %v2328 = vshll.u32 %v2288, 8
          %v2329 = vmul.u32.u64.compose %v2328, %v2327
          %v2330 = vextract.low.u32 %v2329
          %v2331 = vextract.high.u32 %v2329
          %v2332 = vmul.u32.u64.compose %v2328, %v2323
          %v2333 = vextract.low.u32 %v2332
          %v2334 = vextract.high.u32 %v2332
          %v2335 = vmul.u32 %v2328, %v2319
          %v2336 = vadd.s32 %v2331, %v2333
          %vm2337 = vc.u32 %v2331, %v2333
          %v2338 = vadd.s32 %v2334, 1
          %v2339 = vsel %vm2337, %v2338, %v2334
          %v2340 = vadd.s32 %v2335, %v2339
          %v2341 = vadd.s32 %v2340, 536870912
          %v2342 = vshrl.u32 %v2341, 30
          %v2343 = vshll.u32 %v2342, 30
          %v2344 = vsub.s32 %v2340, %v2343
          %vm2345 = vcmp.lt.s32.totalorder %v2344, 0
          %v2346 = vsub.s32 0, %v2344
          %v2347 = vsel %vm2345, %v2346, %v2344
          %v2348 = vclz %v2347
          %v2349 = vsub.s32 %v2348, 2
          %vm2350 = vcmp.gt.s32.totalorder 0, %v2349
          %v2351 = vsel %vm2350, 0, %v2349
          %v2352 = vsub.s32 32, %v2351
          %v2353 = vshll.u32 %v2344, %v2351
          %v2354 = vshrl.u32 %v2336, %v2352
          %v2355 = vor.u32 %v2353, %v2354
          %v2356 = vsub.s32 4294967266, %v2351
          %v2357 = vadd.s32 %v2356, 127
          %v2358 = vshll.u32 %v2357, 23
          %v2359 = vor.u32 4788187, %v2358
          %v2360 = vand.u32 2147483647, %v2359
          %v2362 = vcvt.s32.f32 %v2355
          %v2363 = vmul.f32 %v2362, %v2360
          %v2364 = vxor.u32 %v2363, 2147483648
          %v2365 = vsel %vm2282, %v2364, %v2363
          %v2366 = vsub.s32 4, %v2342
          %v2367 = vsel %vm2282, %v2366, %v2342
          %v2368 = vsel %vm2281, %v637, %v2365
          %v2369 = vsel %vm2281, 0, %v2367
          %v2370 = vcosq.f32.pop %v2368
          %v2371 = vsinq.f32.pop %v2368
          %vm2372 = vweird.f32 %v637
          %v2373 = vadd.s32 %v2369, 3
          %v2374 = vand.u32 %v2373, 3
          %vm2375 = vcmp.lt.s32.totalorder %v2374, 2
          %vm2376 = vcmp.eq.s32.totalorder %v2374, 0
          %v2377 = vxor.u32 %v2371, 2147483648
          %v2378 = vsel %vm2376, %v2370, %v2377
          %vm2379 = vcmp.eq.s32.totalorder %v2374, 2
          %v2380 = vxor.u32 %v2370, 2147483648
          %v2381 = vsel %vm2379, %v2380, %v2371
          %v2382 = vsel %vm2375, %v2378, %v2381
          %v2383 = vsel %vm2372, nan, %v2382
          %v2384 = vand.u32 2147483647, %v642
          %vm2385 = vcmp.le.f32.partialorder %v2384, 0.7853982
          %vm2386 = vcmp.lt.s32.totalorder %v642, 0
          %v2387 = vand.u32 %v642, 2139095040
          %v2388 = vshrl.u32 %v2387, 23
          %v2389 = vsub.s32 %v2388, 127
          %v2390 = vand.u32 2147483647, %v642
          %v2391 = vand.u32 %v2390, 8388607
          %v2392 = vor.u32 %v2391, 8388608
          %v2393 = vsub.s32 0, %v2392
          %v2394 = vadd.s32 %v2389, 1
          %vm2395 = vcmp.gt.s32.totalorder %v2394, 0
          %v2396 = vsel %vm2395, %v2394, 0
          %v2397 = vshrl.u32 %v2396, 5
          %v2398 = vand.u32 %v2396, 31
          %v2399 = vsub.s32 32, %v2398
          %v2400 = vshrl.u32 683565275, %v2399
          %v2401 = vshll.u32 683565275, %v2398
          %v2402 = vshrl.u32 2475754826, %v2399
          %v2403 = vor.u32 %v2401, %v2402
          %v2404 = vshll.u32 2475754826, %v2398
          %v2405 = vshrl.u32 2131351028, %v2399
          %v2406 = vor.u32 %v2404, %v2405
          %v2407 = vshll.u32 2131351028, %v2398
          %v2408 = vshrl.u32 2102212464, %v2399
          %v2409 = vor.u32 %v2407, %v2408
          %v2410 = vshll.u32 2102212464, %v2398
          %v2411 = vshrl.u32 920167782, %v2399
          %v2412 = vor.u32 %v2410, %v2411
          %v2413 = vshll.u32 920167782, %v2398
          %v2414 = vshrl.u32 1326507024, %v2399
          %v2415 = vor.u32 %v2413, %v2414
          %vm2416 = vcmp.lt.s32.totalorder %v2397, 1
          %vm2417 = vcmp.lt.s32.totalorder %v2397, 2
          %vm2418 = vcmp.lt.s32.totalorder %v2397, 3
          %vm2419 = vcmp.lt.s32.totalorder %v2397, 4
          %v2420 = vsel %vm2416, %v2400, %v2403
          %v2421 = vsel %vm2419, %v2409, 2102212464
          %v2422 = vsel %vm2418, %v2406, %v2421
          %v2423 = vsel %vm2417, %v2420, %v2422
          %v2424 = vsel %vm2416, %v2403, %v2406
          %v2425 = vsel %vm2419, %v2412, 920167782
          %v2426 = vsel %vm2418, %v2409, %v2425
          %v2427 = vsel %vm2417, %v2424, %v2426
          %v2428 = vsel %vm2416, %v2406, %v2409
          %v2429 = vsel %vm2419, %v2415, 1326507024
          %v2430 = vsel %vm2418, %v2412, %v2429
          %v2431 = vsel %vm2417, %v2428, %v2430
          %v2432 = vshll.u32 %v2392, 8
          %v2433 = vmul.u32.u64.compose %v2432, %v2431
          %v2434 = vextract.low.u32 %v2433
          %v2435 = vextract.high.u32 %v2433
          %v2436 = vmul.u32.u64.compose %v2432, %v2427
          %v2437 = vextract.low.u32 %v2436
          %v2438 = vextract.high.u32 %v2436
          %v2439 = vmul.u32 %v2432, %v2423
          %v2440 = vadd.s32 %v2435, %v2437
          %vm2441 = vc.u32 %v2435, %v2437
          %v2442 = vadd.s32 %v2438, 1
          %v2443 = vsel %vm2441, %v2442, %v2438
          %v2444 = vadd.s32 %v2439, %v2443
          %v2445 = vadd.s32 %v2444, 536870912
          %v2446 = vshrl.u32 %v2445, 30
          %v2447 = vshll.u32 %v2446, 30
          %v2448 = vsub.s32 %v2444, %v2447
          %vm2449 = vcmp.lt.s32.totalorder %v2448, 0
          %v2450 = vsub.s32 0, %v2448
          %v2451 = vsel %vm2449, %v2450, %v2448
          %v2452 = vclz %v2451
          %v2453 = vsub.s32 %v2452, 2
          %vm2454 = vcmp.gt.s32.totalorder 0, %v2453
          %v2455 = vsel %vm2454, 0, %v2453
          %v2456 = vsub.s32 32, %v2455
          %v2457 = vshll.u32 %v2448, %v2455
          %v2458 = vshrl.u32 %v2440, %v2456
          %v2459 = vor.u32 %v2457, %v2458
          %v2460 = vsub.s32 4294967266, %v2455
          %v2461 = vadd.s32 %v2460, 127
          %v2462 = vshll.u32 %v2461, 23
          %v2463 = vor.u32 4788187, %v2462
          %v2464 = vand.u32 2147483647, %v2463
          %v2466 = vcvt.s32.f32 %v2459
          %v2467 = vmul.f32 %v2466, %v2464
          %v2468 = vxor.u32 %v2467, 2147483648
          %v2469 = vsel %vm2386, %v2468, %v2467
          %v2470 = vsub.s32 4, %v2446
          %v2471 = vsel %vm2386, %v2470, %v2446
          %v2472 = vsel %vm2385, %v642, %v2469
          %v2473 = vsel %vm2385, 0, %v2471
          %v2474 = vcosq.f32.pop %v2472
          %v2475 = vsinq.f32.pop %v2472
          %vm2476 = vweird.f32 %v642
          %v2477 = vadd.s32 %v2473, 3
          %v2478 = vand.u32 %v2477, 3
          %vm2479 = vcmp.lt.s32.totalorder %v2478, 2
          %vm2480 = vcmp.eq.s32.totalorder %v2478, 0
          %v2481 = vxor.u32 %v2475, 2147483648
          %v2482 = vsel %vm2480, %v2474, %v2481
          %vm2483 = vcmp.eq.s32.totalorder %v2478, 2
          %v2484 = vxor.u32 %v2474, 2147483648
          %v2485 = vsel %vm2483, %v2484, %v2475
          %v2486 = vsel %vm2479, %v2482, %v2485
          %v2487 = vsel %vm2476, nan, %v2486
          %v2488 = vand.u32 2147483647, %v647
          %vm2489 = vcmp.le.f32.partialorder %v2488, 0.7853982
          %vm2490 = vcmp.lt.s32.totalorder %v647, 0
          %v2491 = vand.u32 %v647, 2139095040
          %v2492 = vshrl.u32 %v2491, 23
          %v2493 = vsub.s32 %v2492, 127
          %v2494 = vand.u32 2147483647, %v647
          %v2495 = vand.u32 %v2494, 8388607
          %v2496 = vor.u32 %v2495, 8388608
          %v2497 = vsub.s32 0, %v2496
          %v2498 = vadd.s32 %v2493, 1
          %vm2499 = vcmp.gt.s32.totalorder %v2498, 0
          %v2500 = vsel %vm2499, %v2498, 0
          %v2501 = vshrl.u32 %v2500, 5
          %v2502 = vand.u32 %v2500, 31
          %v2503 = vsub.s32 32, %v2502
          %v2504 = vshrl.u32 683565275, %v2503
          %v2505 = vshll.u32 683565275, %v2502
          %v2506 = vshrl.u32 2475754826, %v2503
          %v2507 = vor.u32 %v2505, %v2506
          %v2508 = vshll.u32 2475754826, %v2502
          %v2509 = vshrl.u32 2131351028, %v2503
          %v2510 = vor.u32 %v2508, %v2509
          %v2511 = vshll.u32 2131351028, %v2502
          %v2512 = vshrl.u32 2102212464, %v2503
          %v2513 = vor.u32 %v2511, %v2512
          %v2514 = vshll.u32 2102212464, %v2502
          %v2515 = vshrl.u32 920167782, %v2503
          %v2516 = vor.u32 %v2514, %v2515
          %v2517 = vshll.u32 920167782, %v2502
          %v2518 = vshrl.u32 1326507024, %v2503
          %v2519 = vor.u32 %v2517, %v2518
          %vm2520 = vcmp.lt.s32.totalorder %v2501, 1
          %vm2521 = vcmp.lt.s32.totalorder %v2501, 2
          %vm2522 = vcmp.lt.s32.totalorder %v2501, 3
          %vm2523 = vcmp.lt.s32.totalorder %v2501, 4
          %v2524 = vsel %vm2520, %v2504, %v2507
          %v2525 = vsel %vm2523, %v2513, 2102212464
          %v2526 = vsel %vm2522, %v2510, %v2525
          %v2527 = vsel %vm2521, %v2524, %v2526
          %v2528 = vsel %vm2520, %v2507, %v2510
          %v2529 = vsel %vm2523, %v2516, 920167782
          %v2530 = vsel %vm2522, %v2513, %v2529
          %v2531 = vsel %vm2521, %v2528, %v2530
          %v2532 = vsel %vm2520, %v2510, %v2513
          %v2533 = vsel %vm2523, %v2519, 1326507024
          %v2534 = vsel %vm2522, %v2516, %v2533
          %v2535 = vsel %vm2521, %v2532, %v2534
          %v2536 = vshll.u32 %v2496, 8
          %v2537 = vmul.u32.u64.compose %v2536, %v2535
          %v2538 = vextract.low.u32 %v2537
          %v2539 = vextract.high.u32 %v2537
          %v2540 = vmul.u32.u64.compose %v2536, %v2531
          %v2541 = vextract.low.u32 %v2540
          %v2542 = vextract.high.u32 %v2540
          %v2543 = vmul.u32 %v2536, %v2527
          %v2544 = vadd.s32 %v2539, %v2541
          %vm2545 = vc.u32 %v2539, %v2541
          %v2546 = vadd.s32 %v2542, 1
          %v2547 = vsel %vm2545, %v2546, %v2542
          %v2548 = vadd.s32 %v2543, %v2547
          %v2549 = vadd.s32 %v2548, 536870912
          %v2550 = vshrl.u32 %v2549, 30
          %v2551 = vshll.u32 %v2550, 30
          %v2552 = vsub.s32 %v2548, %v2551
          %vm2553 = vcmp.lt.s32.totalorder %v2552, 0
          %v2554 = vsub.s32 0, %v2552
          %v2555 = vsel %vm2553, %v2554, %v2552
          %v2556 = vclz %v2555
          %v2557 = vsub.s32 %v2556, 2
          %vm2558 = vcmp.gt.s32.totalorder 0, %v2557
          %v2559 = vsel %vm2558, 0, %v2557
          %v2560 = vsub.s32 32, %v2559
          %v2561 = vshll.u32 %v2552, %v2559
          %v2562 = vshrl.u32 %v2544, %v2560
          %v2563 = vor.u32 %v2561, %v2562
          %v2564 = vsub.s32 4294967266, %v2559
          %v2565 = vadd.s32 %v2564, 127
          %v2566 = vshll.u32 %v2565, 23
          %v2567 = vor.u32 4788187, %v2566
          %v2568 = vand.u32 2147483647, %v2567
          %v2570 = vcvt.s32.f32 %v2563
          %v2571 = vmul.f32 %v2570, %v2568
          %v2572 = vxor.u32 %v2571, 2147483648
          %v2573 = vsel %vm2490, %v2572, %v2571
          %v2574 = vsub.s32 4, %v2550
          %v2575 = vsel %vm2490, %v2574, %v2550
          %v2576 = vsel %vm2489, %v647, %v2573
          %v2577 = vsel %vm2489, 0, %v2575
          %v2578 = vcosq.f32.pop %v2576
          %v2579 = vsinq.f32.pop %v2576
          %vm2580 = vweird.f32 %v647
          %v2581 = vadd.s32 %v2577, 3
          %v2582 = vand.u32 %v2581, 3
          %vm2583 = vcmp.lt.s32.totalorder %v2582, 2
          %vm2584 = vcmp.eq.s32.totalorder %v2582, 0
          %v2585 = vxor.u32 %v2579, 2147483648
          %v2586 = vsel %vm2584, %v2578, %v2585
          %vm2587 = vcmp.eq.s32.totalorder %v2582, 2
          %v2588 = vxor.u32 %v2578, 2147483648
          %v2589 = vsel %vm2587, %v2588, %v2579
          %v2590 = vsel %vm2583, %v2586, %v2589
          %v2591 = vsel %vm2580, nan, %v2590
          %v2592 = vand.u32 2147483647, %v652
          %vm2593 = vcmp.le.f32.partialorder %v2592, 0.7853982
          %vm2594 = vcmp.lt.s32.totalorder %v652, 0
          %v2595 = vand.u32 %v652, 2139095040
          %v2596 = vshrl.u32 %v2595, 23
          %v2597 = vsub.s32 %v2596, 127
          %v2598 = vand.u32 2147483647, %v652
          %v2599 = vand.u32 %v2598, 8388607
          %v2600 = vor.u32 %v2599, 8388608
          %v2601 = vsub.s32 0, %v2600
          %v2602 = vadd.s32 %v2597, 1
          %vm2603 = vcmp.gt.s32.totalorder %v2602, 0
          %v2604 = vsel %vm2603, %v2602, 0
          %v2605 = vshrl.u32 %v2604, 5
          %v2606 = vand.u32 %v2604, 31
          %v2607 = vsub.s32 32, %v2606
          %v2608 = vshrl.u32 683565275, %v2607
          %v2609 = vshll.u32 683565275, %v2606
          %v2610 = vshrl.u32 2475754826, %v2607
          %v2611 = vor.u32 %v2609, %v2610
          %v2612 = vshll.u32 2475754826, %v2606
          %v2613 = vshrl.u32 2131351028, %v2607
          %v2614 = vor.u32 %v2612, %v2613
          %v2615 = vshll.u32 2131351028, %v2606
          %v2616 = vshrl.u32 2102212464, %v2607
          %v2617 = vor.u32 %v2615, %v2616
          %v2618 = vshll.u32 2102212464, %v2606
          %v2619 = vshrl.u32 920167782, %v2607
          %v2620 = vor.u32 %v2618, %v2619
          %v2621 = vshll.u32 920167782, %v2606
          %v2622 = vshrl.u32 1326507024, %v2607
          %v2623 = vor.u32 %v2621, %v2622
          %vm2624 = vcmp.lt.s32.totalorder %v2605, 1
          %vm2625 = vcmp.lt.s32.totalorder %v2605, 2
          %vm2626 = vcmp.lt.s32.totalorder %v2605, 3
          %vm2627 = vcmp.lt.s32.totalorder %v2605, 4
          %v2628 = vsel %vm2624, %v2608, %v2611
          %v2629 = vsel %vm2627, %v2617, 2102212464
          %v2630 = vsel %vm2626, %v2614, %v2629
          %v2631 = vsel %vm2625, %v2628, %v2630
          %v2632 = vsel %vm2624, %v2611, %v2614
          %v2633 = vsel %vm2627, %v2620, 920167782
          %v2634 = vsel %vm2626, %v2617, %v2633
          %v2635 = vsel %vm2625, %v2632, %v2634
          %v2636 = vsel %vm2624, %v2614, %v2617
          %v2637 = vsel %vm2627, %v2623, 1326507024
          %v2638 = vsel %vm2626, %v2620, %v2637
          %v2639 = vsel %vm2625, %v2636, %v2638
          %v2640 = vshll.u32 %v2600, 8
          %v2641 = vmul.u32.u64.compose %v2640, %v2639
          %v2642 = vextract.low.u32 %v2641
          %v2643 = vextract.high.u32 %v2641
          %v2644 = vmul.u32.u64.compose %v2640, %v2635
          %v2645 = vextract.low.u32 %v2644
          %v2646 = vextract.high.u32 %v2644
          %v2647 = vmul.u32 %v2640, %v2631
          %v2648 = vadd.s32 %v2643, %v2645
          %vm2649 = vc.u32 %v2643, %v2645
          %v2650 = vadd.s32 %v2646, 1
          %v2651 = vsel %vm2649, %v2650, %v2646
          %v2652 = vadd.s32 %v2647, %v2651
          %v2653 = vadd.s32 %v2652, 536870912
          %v2654 = vshrl.u32 %v2653, 30
          %v2655 = vshll.u32 %v2654, 30
          %v2656 = vsub.s32 %v2652, %v2655
          %vm2657 = vcmp.lt.s32.totalorder %v2656, 0
          %v2658 = vsub.s32 0, %v2656
          %v2659 = vsel %vm2657, %v2658, %v2656
          %v2660 = vclz %v2659
          %v2661 = vsub.s32 %v2660, 2
          %vm2662 = vcmp.gt.s32.totalorder 0, %v2661
          %v2663 = vsel %vm2662, 0, %v2661
          %v2664 = vsub.s32 32, %v2663
          %v2665 = vshll.u32 %v2656, %v2663
          %v2666 = vshrl.u32 %v2648, %v2664
          %v2667 = vor.u32 %v2665, %v2666
          %v2668 = vsub.s32 4294967266, %v2663
          %v2669 = vadd.s32 %v2668, 127
          %v2670 = vshll.u32 %v2669, 23
          %v2671 = vor.u32 4788187, %v2670
          %v2672 = vand.u32 2147483647, %v2671
          %v2674 = vcvt.s32.f32 %v2667
          %v2675 = vmul.f32 %v2674, %v2672
          %v2676 = vxor.u32 %v2675, 2147483648
          %v2677 = vsel %vm2594, %v2676, %v2675
          %v2678 = vsub.s32 4, %v2654
          %v2679 = vsel %vm2594, %v2678, %v2654
          %v2680 = vsel %vm2593, %v652, %v2677
          %v2681 = vsel %vm2593, 0, %v2679
          %v2682 = vcosq.f32.pop %v2680
          %v2683 = vsinq.f32.pop %v2680
          %vm2684 = vweird.f32 %v652
          %v2685 = vadd.s32 %v2681, 3
          %v2686 = vand.u32 %v2685, 3
          %vm2687 = vcmp.lt.s32.totalorder %v2686, 2
          %vm2688 = vcmp.eq.s32.totalorder %v2686, 0
          %v2689 = vxor.u32 %v2683, 2147483648
          %v2690 = vsel %vm2688, %v2682, %v2689
          %vm2691 = vcmp.eq.s32.totalorder %v2686, 2
          %v2692 = vxor.u32 %v2682, 2147483648
          %v2693 = vsel %vm2691, %v2692, %v2683
          %v2694 = vsel %vm2687, %v2690, %v2693
          %v2695 = vsel %vm2684, nan, %v2694
          %v2696 = vand.u32 2147483647, %v657
          %vm2697 = vcmp.le.f32.partialorder %v2696, 0.7853982
          %vm2698 = vcmp.lt.s32.totalorder %v657, 0
          %v2699 = vand.u32 %v657, 2139095040
          %v2700 = vshrl.u32 %v2699, 23
          %v2701 = vsub.s32 %v2700, 127
          %v2702 = vand.u32 2147483647, %v657
          %v2703 = vand.u32 %v2702, 8388607
          %v2704 = vor.u32 %v2703, 8388608
          %v2705 = vsub.s32 0, %v2704
          %v2706 = vadd.s32 %v2701, 1
          %vm2707 = vcmp.gt.s32.totalorder %v2706, 0
          %v2708 = vsel %vm2707, %v2706, 0
          %v2709 = vshrl.u32 %v2708, 5
          %v2710 = vand.u32 %v2708, 31
          %v2711 = vsub.s32 32, %v2710
          %v2712 = vshrl.u32 683565275, %v2711
          %v2713 = vshll.u32 683565275, %v2710
          %v2714 = vshrl.u32 2475754826, %v2711
          %v2715 = vor.u32 %v2713, %v2714
          %v2716 = vshll.u32 2475754826, %v2710
          %v2717 = vshrl.u32 2131351028, %v2711
          %v2718 = vor.u32 %v2716, %v2717
          %v2719 = vshll.u32 2131351028, %v2710
          %v2720 = vshrl.u32 2102212464, %v2711
          %v2721 = vor.u32 %v2719, %v2720
          %v2722 = vshll.u32 2102212464, %v2710
          %v2723 = vshrl.u32 920167782, %v2711
          %v2724 = vor.u32 %v2722, %v2723
          %v2725 = vshll.u32 920167782, %v2710
          %v2726 = vshrl.u32 1326507024, %v2711
          %v2727 = vor.u32 %v2725, %v2726
          %vm2728 = vcmp.lt.s32.totalorder %v2709, 1
          %vm2729 = vcmp.lt.s32.totalorder %v2709, 2
          %vm2730 = vcmp.lt.s32.totalorder %v2709, 3
          %vm2731 = vcmp.lt.s32.totalorder %v2709, 4
          %v2732 = vsel %vm2728, %v2712, %v2715
          %v2733 = vsel %vm2731, %v2721, 2102212464
          %v2734 = vsel %vm2730, %v2718, %v2733
          %v2735 = vsel %vm2729, %v2732, %v2734
          %v2736 = vsel %vm2728, %v2715, %v2718
          %v2737 = vsel %vm2731, %v2724, 920167782
          %v2738 = vsel %vm2730, %v2721, %v2737
          %v2739 = vsel %vm2729, %v2736, %v2738
          %v2740 = vsel %vm2728, %v2718, %v2721
          %v2741 = vsel %vm2731, %v2727, 1326507024
          %v2742 = vsel %vm2730, %v2724, %v2741
          %v2743 = vsel %vm2729, %v2740, %v2742
          %v2744 = vshll.u32 %v2704, 8
          %v2745 = vmul.u32.u64.compose %v2744, %v2743
          %v2746 = vextract.low.u32 %v2745
          %v2747 = vextract.high.u32 %v2745
          %v2748 = vmul.u32.u64.compose %v2744, %v2739
          %v2749 = vextract.low.u32 %v2748
          %v2750 = vextract.high.u32 %v2748
          %v2751 = vmul.u32 %v2744, %v2735
          %v2752 = vadd.s32 %v2747, %v2749
          %vm2753 = vc.u32 %v2747, %v2749
          %v2754 = vadd.s32 %v2750, 1
          %v2755 = vsel %vm2753, %v2754, %v2750
          %v2756 = vadd.s32 %v2751, %v2755
          %v2757 = vadd.s32 %v2756, 536870912
          %v2758 = vshrl.u32 %v2757, 30
          %v2759 = vshll.u32 %v2758, 30
          %v2760 = vsub.s32 %v2756, %v2759
          %vm2761 = vcmp.lt.s32.totalorder %v2760, 0
          %v2762 = vsub.s32 0, %v2760
          %v2763 = vsel %vm2761, %v2762, %v2760
          %v2764 = vclz %v2763
          %v2765 = vsub.s32 %v2764, 2
          %vm2766 = vcmp.gt.s32.totalorder 0, %v2765
          %v2767 = vsel %vm2766, 0, %v2765
          %v2768 = vsub.s32 32, %v2767
          %v2769 = vshll.u32 %v2760, %v2767
          %v2770 = vshrl.u32 %v2752, %v2768
          %v2771 = vor.u32 %v2769, %v2770
          %v2772 = vsub.s32 4294967266, %v2767
          %v2773 = vadd.s32 %v2772, 127
          %v2774 = vshll.u32 %v2773, 23
          %v2775 = vor.u32 4788187, %v2774
          %v2776 = vand.u32 2147483647, %v2775
          %v2778 = vcvt.s32.f32 %v2771
          %v2779 = vmul.f32 %v2778, %v2776
          %v2780 = vxor.u32 %v2779, 2147483648
          %v2781 = vsel %vm2698, %v2780, %v2779
          %v2782 = vsub.s32 4, %v2758
          %v2783 = vsel %vm2698, %v2782, %v2758
          %v2784 = vsel %vm2697, %v657, %v2781
          %v2785 = vsel %vm2697, 0, %v2783
          %v2786 = vcosq.f32.pop %v2784
          %v2787 = vsinq.f32.pop %v2784
          %vm2788 = vweird.f32 %v657
          %v2789 = vadd.s32 %v2785, 3
          %v2790 = vand.u32 %v2789, 3
          %vm2791 = vcmp.lt.s32.totalorder %v2790, 2
          %vm2792 = vcmp.eq.s32.totalorder %v2790, 0
          %v2793 = vxor.u32 %v2787, 2147483648
          %v2794 = vsel %vm2792, %v2786, %v2793
          %vm2795 = vcmp.eq.s32.totalorder %v2790, 2
          %v2796 = vxor.u32 %v2786, 2147483648
          %v2797 = vsel %vm2795, %v2796, %v2787
          %v2798 = vsel %vm2791, %v2794, %v2797
          %v2799 = vsel %vm2788, nan, %v2798
          %v2800 = vand.u32 2147483647, %v662
          %vm2801 = vcmp.le.f32.partialorder %v2800, 0.7853982
          %vm2802 = vcmp.lt.s32.totalorder %v662, 0
          %v2803 = vand.u32 %v662, 2139095040
          %v2804 = vshrl.u32 %v2803, 23
          %v2805 = vsub.s32 %v2804, 127
          %v2806 = vand.u32 2147483647, %v662
          %v2807 = vand.u32 %v2806, 8388607
          %v2808 = vor.u32 %v2807, 8388608
          %v2809 = vsub.s32 0, %v2808
          %v2810 = vadd.s32 %v2805, 1
          %vm2811 = vcmp.gt.s32.totalorder %v2810, 0
          %v2812 = vsel %vm2811, %v2810, 0
          %v2813 = vshrl.u32 %v2812, 5
          %v2814 = vand.u32 %v2812, 31
          %v2815 = vsub.s32 32, %v2814
          %v2816 = vshrl.u32 683565275, %v2815
          %v2817 = vshll.u32 683565275, %v2814
          %v2818 = vshrl.u32 2475754826, %v2815
          %v2819 = vor.u32 %v2817, %v2818
          %v2820 = vshll.u32 2475754826, %v2814
          %v2821 = vshrl.u32 2131351028, %v2815
          %v2822 = vor.u32 %v2820, %v2821
          %v2823 = vshll.u32 2131351028, %v2814
          %v2824 = vshrl.u32 2102212464, %v2815
          %v2825 = vor.u32 %v2823, %v2824
          %v2826 = vshll.u32 2102212464, %v2814
          %v2827 = vshrl.u32 920167782, %v2815
          %v2828 = vor.u32 %v2826, %v2827
          %v2829 = vshll.u32 920167782, %v2814
          %v2830 = vshrl.u32 1326507024, %v2815
          %v2831 = vor.u32 %v2829, %v2830
          %vm2832 = vcmp.lt.s32.totalorder %v2813, 1
          %vm2833 = vcmp.lt.s32.totalorder %v2813, 2
          %vm2834 = vcmp.lt.s32.totalorder %v2813, 3
          %vm2835 = vcmp.lt.s32.totalorder %v2813, 4
          %v2836 = vsel %vm2832, %v2816, %v2819
          %v2837 = vsel %vm2835, %v2825, 2102212464
          %v2838 = vsel %vm2834, %v2822, %v2837
          %v2839 = vsel %vm2833, %v2836, %v2838
          %v2840 = vsel %vm2832, %v2819, %v2822
          %v2841 = vsel %vm2835, %v2828, 920167782
          %v2842 = vsel %vm2834, %v2825, %v2841
          %v2843 = vsel %vm2833, %v2840, %v2842
          %v2844 = vsel %vm2832, %v2822, %v2825
          %v2845 = vsel %vm2835, %v2831, 1326507024
          %v2846 = vsel %vm2834, %v2828, %v2845
          %v2847 = vsel %vm2833, %v2844, %v2846
          %v2848 = vshll.u32 %v2808, 8
          %v2849 = vmul.u32.u64.compose %v2848, %v2847
          %v2850 = vextract.low.u32 %v2849
          %v2851 = vextract.high.u32 %v2849
          %v2852 = vmul.u32.u64.compose %v2848, %v2843
          %v2853 = vextract.low.u32 %v2852
          %v2854 = vextract.high.u32 %v2852
          %v2855 = vmul.u32 %v2848, %v2839
          %v2856 = vadd.s32 %v2851, %v2853
          %vm2857 = vc.u32 %v2851, %v2853
          %v2858 = vadd.s32 %v2854, 1
          %v2859 = vsel %vm2857, %v2858, %v2854
          %v2860 = vadd.s32 %v2855, %v2859
          %v2861 = vadd.s32 %v2860, 536870912
          %v2862 = vshrl.u32 %v2861, 30
          %v2863 = vshll.u32 %v2862, 30
          %v2864 = vsub.s32 %v2860, %v2863
          %vm2865 = vcmp.lt.s32.totalorder %v2864, 0
          %v2866 = vsub.s32 0, %v2864
          %v2867 = vsel %vm2865, %v2866, %v2864
          %v2868 = vclz %v2867
          %v2869 = vsub.s32 %v2868, 2
          %vm2870 = vcmp.gt.s32.totalorder 0, %v2869
          %v2871 = vsel %vm2870, 0, %v2869
          %v2872 = vsub.s32 32, %v2871
          %v2873 = vshll.u32 %v2864, %v2871
          %v2874 = vshrl.u32 %v2856, %v2872
          %v2875 = vor.u32 %v2873, %v2874
          %v2876 = vsub.s32 4294967266, %v2871
          %v2877 = vadd.s32 %v2876, 127
          %v2878 = vshll.u32 %v2877, 23
          %v2879 = vor.u32 4788187, %v2878
          %v2880 = vand.u32 2147483647, %v2879
          %v2882 = vcvt.s32.f32 %v2875
          %v2883 = vmul.f32 %v2882, %v2880
          %v2884 = vxor.u32 %v2883, 2147483648
          %v2885 = vsel %vm2802, %v2884, %v2883
          %v2886 = vsub.s32 4, %v2862
          %v2887 = vsel %vm2802, %v2886, %v2862
          %v2888 = vsel %vm2801, %v662, %v2885
          %v2889 = vsel %vm2801, 0, %v2887
          %v2890 = vcosq.f32.pop %v2888
          %v2891 = vsinq.f32.pop %v2888
          %vm2892 = vweird.f32 %v662
          %v2893 = vadd.s32 %v2889, 3
          %v2894 = vand.u32 %v2893, 3
          %vm2895 = vcmp.lt.s32.totalorder %v2894, 2
          %vm2896 = vcmp.eq.s32.totalorder %v2894, 0
          %v2897 = vxor.u32 %v2891, 2147483648
          %v2898 = vsel %vm2896, %v2890, %v2897
          %vm2899 = vcmp.eq.s32.totalorder %v2894, 2
          %v2900 = vxor.u32 %v2890, 2147483648
          %v2901 = vsel %vm2899, %v2900, %v2891
          %v2902 = vsel %vm2895, %v2898, %v2901
          %v2903 = vsel %vm2892, nan, %v2902
          %v2904 = vand.u32 2147483647, %v667
          %vm2905 = vcmp.le.f32.partialorder %v2904, 0.7853982
          %vm2906 = vcmp.lt.s32.totalorder %v667, 0
          %v2907 = vand.u32 %v667, 2139095040
          %v2908 = vshrl.u32 %v2907, 23
          %v2909 = vsub.s32 %v2908, 127
          %v2910 = vand.u32 2147483647, %v667
          %v2911 = vand.u32 %v2910, 8388607
          %v2912 = vor.u32 %v2911, 8388608
          %v2913 = vsub.s32 0, %v2912
          %v2914 = vadd.s32 %v2909, 1
          %vm2915 = vcmp.gt.s32.totalorder %v2914, 0
          %v2916 = vsel %vm2915, %v2914, 0
          %v2917 = vshrl.u32 %v2916, 5
          %v2918 = vand.u32 %v2916, 31
          %v2919 = vsub.s32 32, %v2918
          %v2920 = vshrl.u32 683565275, %v2919
          %v2921 = vshll.u32 683565275, %v2918
          %v2922 = vshrl.u32 2475754826, %v2919
          %v2923 = vor.u32 %v2921, %v2922
          %v2924 = vshll.u32 2475754826, %v2918
          %v2925 = vshrl.u32 2131351028, %v2919
          %v2926 = vor.u32 %v2924, %v2925
          %v2927 = vshll.u32 2131351028, %v2918
          %v2928 = vshrl.u32 2102212464, %v2919
          %v2929 = vor.u32 %v2927, %v2928
          %v2930 = vshll.u32 2102212464, %v2918
          %v2931 = vshrl.u32 920167782, %v2919
          %v2932 = vor.u32 %v2930, %v2931
          %v2933 = vshll.u32 920167782, %v2918
          %v2934 = vshrl.u32 1326507024, %v2919
          %v2935 = vor.u32 %v2933, %v2934
          %vm2936 = vcmp.lt.s32.totalorder %v2917, 1
          %vm2937 = vcmp.lt.s32.totalorder %v2917, 2
          %vm2938 = vcmp.lt.s32.totalorder %v2917, 3
          %vm2939 = vcmp.lt.s32.totalorder %v2917, 4
          %v2940 = vsel %vm2936, %v2920, %v2923
          %v2941 = vsel %vm2939, %v2929, 2102212464
          %v2942 = vsel %vm2938, %v2926, %v2941
          %v2943 = vsel %vm2937, %v2940, %v2942
          %v2944 = vsel %vm2936, %v2923, %v2926
          %v2945 = vsel %vm2939, %v2932, 920167782
          %v2946 = vsel %vm2938, %v2929, %v2945
          %v2947 = vsel %vm2937, %v2944, %v2946
          %v2948 = vsel %vm2936, %v2926, %v2929
          %v2949 = vsel %vm2939, %v2935, 1326507024
          %v2950 = vsel %vm2938, %v2932, %v2949
          %v2951 = vsel %vm2937, %v2948, %v2950
          %v2952 = vshll.u32 %v2912, 8
          %v2953 = vmul.u32.u64.compose %v2952, %v2951
          %v2954 = vextract.low.u32 %v2953
          %v2955 = vextract.high.u32 %v2953
          %v2956 = vmul.u32.u64.compose %v2952, %v2947
          %v2957 = vextract.low.u32 %v2956
          %v2958 = vextract.high.u32 %v2956
          %v2959 = vmul.u32 %v2952, %v2943
          %v2960 = vadd.s32 %v2955, %v2957
          %vm2961 = vc.u32 %v2955, %v2957
          %v2962 = vadd.s32 %v2958, 1
          %v2963 = vsel %vm2961, %v2962, %v2958
          %v2964 = vadd.s32 %v2959, %v2963
          %v2965 = vadd.s32 %v2964, 536870912
          %v2966 = vshrl.u32 %v2965, 30
          %v2967 = vshll.u32 %v2966, 30
          %v2968 = vsub.s32 %v2964, %v2967
          %vm2969 = vcmp.lt.s32.totalorder %v2968, 0
          %v2970 = vsub.s32 0, %v2968
          %v2971 = vsel %vm2969, %v2970, %v2968
          %v2972 = vclz %v2971
          %v2973 = vsub.s32 %v2972, 2
          %vm2974 = vcmp.gt.s32.totalorder 0, %v2973
          %v2975 = vsel %vm2974, 0, %v2973
          %v2976 = vsub.s32 32, %v2975
          %v2977 = vshll.u32 %v2968, %v2975
          %v2978 = vshrl.u32 %v2960, %v2976
          %v2979 = vor.u32 %v2977, %v2978
          %v2980 = vsub.s32 4294967266, %v2975
          %v2981 = vadd.s32 %v2980, 127
          %v2982 = vshll.u32 %v2981, 23
          %v2983 = vor.u32 4788187, %v2982
          %v2984 = vand.u32 2147483647, %v2983
          %v2986 = vcvt.s32.f32 %v2979
          %v2987 = vmul.f32 %v2986, %v2984
          %v2988 = vxor.u32 %v2987, 2147483648
          %v2989 = vsel %vm2906, %v2988, %v2987
          %v2990 = vsub.s32 4, %v2966
          %v2991 = vsel %vm2906, %v2990, %v2966
          %v2992 = vsel %vm2905, %v667, %v2989
          %v2993 = vsel %vm2905, 0, %v2991
          %v2994 = vcosq.f32.pop %v2992
          %v2995 = vsinq.f32.pop %v2992
          %vm2996 = vweird.f32 %v667
          %v2997 = vadd.s32 %v2993, 3
          %v2998 = vand.u32 %v2997, 3
          %vm2999 = vcmp.lt.s32.totalorder %v2998, 2
          %vm3000 = vcmp.eq.s32.totalorder %v2998, 0
          %v3001 = vxor.u32 %v2995, 2147483648
          %v3002 = vsel %vm3000, %v2994, %v3001
          %vm3003 = vcmp.eq.s32.totalorder %v2998, 2
          %v3004 = vxor.u32 %v2994, 2147483648
          %v3005 = vsel %vm3003, %v3004, %v2995
          %v3006 = vsel %vm2999, %v3002, %v3005
          %v3007 = vsel %vm2996, nan, %v3006
          %v3008 = vand.u32 2147483647, %v672
          %vm3009 = vcmp.le.f32.partialorder %v3008, 0.7853982
          %vm3010 = vcmp.lt.s32.totalorder %v672, 0
          %v3011 = vand.u32 %v672, 2139095040
          %v3012 = vshrl.u32 %v3011, 23
          %v3013 = vsub.s32 %v3012, 127
          %v3014 = vand.u32 2147483647, %v672
          %v3015 = vand.u32 %v3014, 8388607
          %v3016 = vor.u32 %v3015, 8388608
          %v3017 = vsub.s32 0, %v3016
          %v3018 = vadd.s32 %v3013, 1
          %vm3019 = vcmp.gt.s32.totalorder %v3018, 0
          %v3020 = vsel %vm3019, %v3018, 0
          %v3021 = vshrl.u32 %v3020, 5
          %v3022 = vand.u32 %v3020, 31
          %v3023 = vsub.s32 32, %v3022
          %v3024 = vshrl.u32 683565275, %v3023
          %v3025 = vshll.u32 683565275, %v3022
          %v3026 = vshrl.u32 2475754826, %v3023
          %v3027 = vor.u32 %v3025, %v3026
          %v3028 = vshll.u32 2475754826, %v3022
          %v3029 = vshrl.u32 2131351028, %v3023
          %v3030 = vor.u32 %v3028, %v3029
          %v3031 = vshll.u32 2131351028, %v3022
          %v3032 = vshrl.u32 2102212464, %v3023
          %v3033 = vor.u32 %v3031, %v3032
          %v3034 = vshll.u32 2102212464, %v3022
          %v3035 = vshrl.u32 920167782, %v3023
          %v3036 = vor.u32 %v3034, %v3035
          %v3037 = vshll.u32 920167782, %v3022
          %v3038 = vshrl.u32 1326507024, %v3023
          %v3039 = vor.u32 %v3037, %v3038
          %vm3040 = vcmp.lt.s32.totalorder %v3021, 1
          %vm3041 = vcmp.lt.s32.totalorder %v3021, 2
          %vm3042 = vcmp.lt.s32.totalorder %v3021, 3
          %vm3043 = vcmp.lt.s32.totalorder %v3021, 4
          %v3044 = vsel %vm3040, %v3024, %v3027
          %v3045 = vsel %vm3043, %v3033, 2102212464
          %v3046 = vsel %vm3042, %v3030, %v3045
          %v3047 = vsel %vm3041, %v3044, %v3046
          %v3048 = vsel %vm3040, %v3027, %v3030
          %v3049 = vsel %vm3043, %v3036, 920167782
          %v3050 = vsel %vm3042, %v3033, %v3049
          %v3051 = vsel %vm3041, %v3048, %v3050
          %v3052 = vsel %vm3040, %v3030, %v3033
          %v3053 = vsel %vm3043, %v3039, 1326507024
          %v3054 = vsel %vm3042, %v3036, %v3053
          %v3055 = vsel %vm3041, %v3052, %v3054
          %v3056 = vshll.u32 %v3016, 8
          %v3057 = vmul.u32.u64.compose %v3056, %v3055
          %v3058 = vextract.low.u32 %v3057
          %v3059 = vextract.high.u32 %v3057
          %v3060 = vmul.u32.u64.compose %v3056, %v3051
          %v3061 = vextract.low.u32 %v3060
          %v3062 = vextract.high.u32 %v3060
          %v3063 = vmul.u32 %v3056, %v3047
          %v3064 = vadd.s32 %v3059, %v3061
          %vm3065 = vc.u32 %v3059, %v3061
          %v3066 = vadd.s32 %v3062, 1
          %v3067 = vsel %vm3065, %v3066, %v3062
          %v3068 = vadd.s32 %v3063, %v3067
          %v3069 = vadd.s32 %v3068, 536870912
          %v3070 = vshrl.u32 %v3069, 30
          %v3071 = vshll.u32 %v3070, 30
          %v3072 = vsub.s32 %v3068, %v3071
          %vm3073 = vcmp.lt.s32.totalorder %v3072, 0
          %v3074 = vsub.s32 0, %v3072
          %v3075 = vsel %vm3073, %v3074, %v3072
          %v3076 = vclz %v3075
          %v3077 = vsub.s32 %v3076, 2
          %vm3078 = vcmp.gt.s32.totalorder 0, %v3077
          %v3079 = vsel %vm3078, 0, %v3077
          %v3080 = vsub.s32 32, %v3079
          %v3081 = vshll.u32 %v3072, %v3079
          %v3082 = vshrl.u32 %v3064, %v3080
          %v3083 = vor.u32 %v3081, %v3082
          %v3084 = vsub.s32 4294967266, %v3079
          %v3085 = vadd.s32 %v3084, 127
          %v3086 = vshll.u32 %v3085, 23
          %v3087 = vor.u32 4788187, %v3086
          %v3088 = vand.u32 2147483647, %v3087
          %v3090 = vcvt.s32.f32 %v3083
          %v3091 = vmul.f32 %v3090, %v3088
          %v3092 = vxor.u32 %v3091, 2147483648
          %v3093 = vsel %vm3010, %v3092, %v3091
          %v3094 = vsub.s32 4, %v3070
          %v3095 = vsel %vm3010, %v3094, %v3070
          %v3096 = vsel %vm3009, %v672, %v3093
          %v3097 = vsel %vm3009, 0, %v3095
          %v3098 = vcosq.f32.pop %v3096
          %v3099 = vsinq.f32.pop %v3096
          %vm3100 = vweird.f32 %v672
          %v3101 = vadd.s32 %v3097, 3
          %v3102 = vand.u32 %v3101, 3
          %vm3103 = vcmp.lt.s32.totalorder %v3102, 2
          %vm3104 = vcmp.eq.s32.totalorder %v3102, 0
          %v3105 = vxor.u32 %v3099, 2147483648
          %v3106 = vsel %vm3104, %v3098, %v3105
          %vm3107 = vcmp.eq.s32.totalorder %v3102, 2
          %v3108 = vxor.u32 %v3098, 2147483648
          %v3109 = vsel %vm3107, %v3108, %v3099
          %v3110 = vsel %vm3103, %v3106, %v3109
          %v3111 = vsel %vm3100, nan, %v3110
          %v3112 = vand.u32 2147483647, %v677
          %vm3113 = vcmp.le.f32.partialorder %v3112, 0.7853982
          %vm3114 = vcmp.lt.s32.totalorder %v677, 0
          %v3115 = vand.u32 %v677, 2139095040
          %v3116 = vshrl.u32 %v3115, 23
          %v3117 = vsub.s32 %v3116, 127
          %v3118 = vand.u32 2147483647, %v677
          %v3119 = vand.u32 %v3118, 8388607
          %v3120 = vor.u32 %v3119, 8388608
          %v3121 = vsub.s32 0, %v3120
          %v3122 = vadd.s32 %v3117, 1
          %vm3123 = vcmp.gt.s32.totalorder %v3122, 0
          %v3124 = vsel %vm3123, %v3122, 0
          %v3125 = vshrl.u32 %v3124, 5
          %v3126 = vand.u32 %v3124, 31
          %v3127 = vsub.s32 32, %v3126
          %v3128 = vshrl.u32 683565275, %v3127
          %v3129 = vshll.u32 683565275, %v3126
          %v3130 = vshrl.u32 2475754826, %v3127
          %v3131 = vor.u32 %v3129, %v3130
          %v3132 = vshll.u32 2475754826, %v3126
          %v3133 = vshrl.u32 2131351028, %v3127
          %v3134 = vor.u32 %v3132, %v3133
          %v3135 = vshll.u32 2131351028, %v3126
          %v3136 = vshrl.u32 2102212464, %v3127
          %v3137 = vor.u32 %v3135, %v3136
          %v3138 = vshll.u32 2102212464, %v3126
          %v3139 = vshrl.u32 920167782, %v3127
          %v3140 = vor.u32 %v3138, %v3139
          %v3141 = vshll.u32 920167782, %v3126
          %v3142 = vshrl.u32 1326507024, %v3127
          %v3143 = vor.u32 %v3141, %v3142
          %vm3144 = vcmp.lt.s32.totalorder %v3125, 1
          %vm3145 = vcmp.lt.s32.totalorder %v3125, 2
          %vm3146 = vcmp.lt.s32.totalorder %v3125, 3
          %vm3147 = vcmp.lt.s32.totalorder %v3125, 4
          %v3148 = vsel %vm3144, %v3128, %v3131
          %v3149 = vsel %vm3147, %v3137, 2102212464
          %v3150 = vsel %vm3146, %v3134, %v3149
          %v3151 = vsel %vm3145, %v3148, %v3150
          %v3152 = vsel %vm3144, %v3131, %v3134
          %v3153 = vsel %vm3147, %v3140, 920167782
          %v3154 = vsel %vm3146, %v3137, %v3153
          %v3155 = vsel %vm3145, %v3152, %v3154
          %v3156 = vsel %vm3144, %v3134, %v3137
          %v3157 = vsel %vm3147, %v3143, 1326507024
          %v3158 = vsel %vm3146, %v3140, %v3157
          %v3159 = vsel %vm3145, %v3156, %v3158
          %v3160 = vshll.u32 %v3120, 8
          %v3161 = vmul.u32.u64.compose %v3160, %v3159
          %v3162 = vextract.low.u32 %v3161
          %v3163 = vextract.high.u32 %v3161
          %v3164 = vmul.u32.u64.compose %v3160, %v3155
          %v3165 = vextract.low.u32 %v3164
          %v3166 = vextract.high.u32 %v3164
          %v3167 = vmul.u32 %v3160, %v3151
          %v3168 = vadd.s32 %v3163, %v3165
          %vm3169 = vc.u32 %v3163, %v3165
          %v3170 = vadd.s32 %v3166, 1
          %v3171 = vsel %vm3169, %v3170, %v3166
          %v3172 = vadd.s32 %v3167, %v3171
          %v3173 = vadd.s32 %v3172, 536870912
          %v3174 = vshrl.u32 %v3173, 30
          %v3175 = vshll.u32 %v3174, 30
          %v3176 = vsub.s32 %v3172, %v3175
          %vm3177 = vcmp.lt.s32.totalorder %v3176, 0
          %v3178 = vsub.s32 0, %v3176
          %v3179 = vsel %vm3177, %v3178, %v3176
          %v3180 = vclz %v3179
          %v3181 = vsub.s32 %v3180, 2
          %vm3182 = vcmp.gt.s32.totalorder 0, %v3181
          %v3183 = vsel %vm3182, 0, %v3181
          %v3184 = vsub.s32 32, %v3183
          %v3185 = vshll.u32 %v3176, %v3183
          %v3186 = vshrl.u32 %v3168, %v3184
          %v3187 = vor.u32 %v3185, %v3186
          %v3188 = vsub.s32 4294967266, %v3183
          %v3189 = vadd.s32 %v3188, 127
          %v3190 = vshll.u32 %v3189, 23
          %v3191 = vor.u32 4788187, %v3190
          %v3192 = vand.u32 2147483647, %v3191
          %v3194 = vcvt.s32.f32 %v3187
          %v3195 = vmul.f32 %v3194, %v3192
          %v3196 = vxor.u32 %v3195, 2147483648
          %v3197 = vsel %vm3114, %v3196, %v3195
          %v3198 = vsub.s32 4, %v3174
          %v3199 = vsel %vm3114, %v3198, %v3174
          %v3200 = vsel %vm3113, %v677, %v3197
          %v3201 = vsel %vm3113, 0, %v3199
          %v3202 = vcosq.f32.pop %v3200
          %v3203 = vsinq.f32.pop %v3200
          %vm3204 = vweird.f32 %v677
          %v3205 = vadd.s32 %v3201, 3
          %v3206 = vand.u32 %v3205, 3
          %vm3207 = vcmp.lt.s32.totalorder %v3206, 2
          %vm3208 = vcmp.eq.s32.totalorder %v3206, 0
          %v3209 = vxor.u32 %v3203, 2147483648
          %v3210 = vsel %vm3208, %v3202, %v3209
          %vm3211 = vcmp.eq.s32.totalorder %v3206, 2
          %v3212 = vxor.u32 %v3202, 2147483648
          %v3213 = vsel %vm3211, %v3212, %v3203
          %v3214 = vsel %vm3207, %v3210, %v3213
          %v3215 = vsel %vm3204, nan, %v3214
          %v3216 = vand.u32 2147483647, %v682
          %vm3217 = vcmp.le.f32.partialorder %v3216, 0.7853982
          %vm3218 = vcmp.lt.s32.totalorder %v682, 0
          %v3219 = vand.u32 %v682, 2139095040
          %v3220 = vshrl.u32 %v3219, 23
          %v3221 = vsub.s32 %v3220, 127
          %v3222 = vand.u32 2147483647, %v682
          %v3223 = vand.u32 %v3222, 8388607
          %v3224 = vor.u32 %v3223, 8388608
          %v3225 = vsub.s32 0, %v3224
          %v3226 = vadd.s32 %v3221, 1
          %vm3227 = vcmp.gt.s32.totalorder %v3226, 0
          %v3228 = vsel %vm3227, %v3226, 0
          %v3229 = vshrl.u32 %v3228, 5
          %v3230 = vand.u32 %v3228, 31
          %v3231 = vsub.s32 32, %v3230
          %v3232 = vshrl.u32 683565275, %v3231
          %v3233 = vshll.u32 683565275, %v3230
          %v3234 = vshrl.u32 2475754826, %v3231
          %v3235 = vor.u32 %v3233, %v3234
          %v3236 = vshll.u32 2475754826, %v3230
          %v3237 = vshrl.u32 2131351028, %v3231
          %v3238 = vor.u32 %v3236, %v3237
          %v3239 = vshll.u32 2131351028, %v3230
          %v3240 = vshrl.u32 2102212464, %v3231
          %v3241 = vor.u32 %v3239, %v3240
          %v3242 = vshll.u32 2102212464, %v3230
          %v3243 = vshrl.u32 920167782, %v3231
          %v3244 = vor.u32 %v3242, %v3243
          %v3245 = vshll.u32 920167782, %v3230
          %v3246 = vshrl.u32 1326507024, %v3231
          %v3247 = vor.u32 %v3245, %v3246
          %vm3248 = vcmp.lt.s32.totalorder %v3229, 1
          %vm3249 = vcmp.lt.s32.totalorder %v3229, 2
          %vm3250 = vcmp.lt.s32.totalorder %v3229, 3
          %vm3251 = vcmp.lt.s32.totalorder %v3229, 4
          %v3252 = vsel %vm3248, %v3232, %v3235
          %v3253 = vsel %vm3251, %v3241, 2102212464
          %v3254 = vsel %vm3250, %v3238, %v3253
          %v3255 = vsel %vm3249, %v3252, %v3254
          %v3256 = vsel %vm3248, %v3235, %v3238
          %v3257 = vsel %vm3251, %v3244, 920167782
          %v3258 = vsel %vm3250, %v3241, %v3257
          %v3259 = vsel %vm3249, %v3256, %v3258
          %v3260 = vsel %vm3248, %v3238, %v3241
          %v3261 = vsel %vm3251, %v3247, 1326507024
          %v3262 = vsel %vm3250, %v3244, %v3261
          %v3263 = vsel %vm3249, %v3260, %v3262
          %v3264 = vshll.u32 %v3224, 8
          %v3265 = vmul.u32.u64.compose %v3264, %v3263
          %v3266 = vextract.low.u32 %v3265
          %v3267 = vextract.high.u32 %v3265
          %v3268 = vmul.u32.u64.compose %v3264, %v3259
          %v3269 = vextract.low.u32 %v3268
          %v3270 = vextract.high.u32 %v3268
          %v3271 = vmul.u32 %v3264, %v3255
          %v3272 = vadd.s32 %v3267, %v3269
          %vm3273 = vc.u32 %v3267, %v3269
          %v3274 = vadd.s32 %v3270, 1
          %v3275 = vsel %vm3273, %v3274, %v3270
          %v3276 = vadd.s32 %v3271, %v3275
          %v3277 = vadd.s32 %v3276, 536870912
          %v3278 = vshrl.u32 %v3277, 30
          %v3279 = vshll.u32 %v3278, 30
          %v3280 = vsub.s32 %v3276, %v3279
          %vm3281 = vcmp.lt.s32.totalorder %v3280, 0
          %v3282 = vsub.s32 0, %v3280
          %v3283 = vsel %vm3281, %v3282, %v3280
          %v3284 = vclz %v3283
          %v3285 = vsub.s32 %v3284, 2
          %vm3286 = vcmp.gt.s32.totalorder 0, %v3285
          %v3287 = vsel %vm3286, 0, %v3285
          %v3288 = vsub.s32 32, %v3287
          %v3289 = vshll.u32 %v3280, %v3287
          %v3290 = vshrl.u32 %v3272, %v3288
          %v3291 = vor.u32 %v3289, %v3290
          %v3292 = vsub.s32 4294967266, %v3287
          %v3293 = vadd.s32 %v3292, 127
          %v3294 = vshll.u32 %v3293, 23
          %v3295 = vor.u32 4788187, %v3294
          %v3296 = vand.u32 2147483647, %v3295
          %v3298 = vcvt.s32.f32 %v3291
          %v3299 = vmul.f32 %v3298, %v3296
          %v3300 = vxor.u32 %v3299, 2147483648
          %v3301 = vsel %vm3218, %v3300, %v3299
          %v3302 = vsub.s32 4, %v3278
          %v3303 = vsel %vm3218, %v3302, %v3278
          %v3304 = vsel %vm3217, %v682, %v3301
          %v3305 = vsel %vm3217, 0, %v3303
          %v3306 = vcosq.f32.pop %v3304
          %v3307 = vsinq.f32.pop %v3304
          %vm3308 = vweird.f32 %v682
          %v3309 = vadd.s32 %v3305, 3
          %v3310 = vand.u32 %v3309, 3
          %vm3311 = vcmp.lt.s32.totalorder %v3310, 2
          %vm3312 = vcmp.eq.s32.totalorder %v3310, 0
          %v3313 = vxor.u32 %v3307, 2147483648
          %v3314 = vsel %vm3312, %v3306, %v3313
          %vm3315 = vcmp.eq.s32.totalorder %v3310, 2
          %v3316 = vxor.u32 %v3306, 2147483648
          %v3317 = vsel %vm3315, %v3316, %v3307
          %v3318 = vsel %vm3311, %v3314, %v3317
          %v3319 = vsel %vm3308, nan, %v3318
          %v3320 = vand.u32 2147483647, %v687
          %vm3321 = vcmp.le.f32.partialorder %v3320, 0.7853982
          %vm3322 = vcmp.lt.s32.totalorder %v687, 0
          %v3323 = vand.u32 %v687, 2139095040
          %v3324 = vshrl.u32 %v3323, 23
          %v3325 = vsub.s32 %v3324, 127
          %v3326 = vand.u32 2147483647, %v687
          %v3327 = vand.u32 %v3326, 8388607
          %v3328 = vor.u32 %v3327, 8388608
          %v3329 = vsub.s32 0, %v3328
          %v3330 = vadd.s32 %v3325, 1
          %vm3331 = vcmp.gt.s32.totalorder %v3330, 0
          %v3332 = vsel %vm3331, %v3330, 0
          %v3333 = vshrl.u32 %v3332, 5
          %v3334 = vand.u32 %v3332, 31
          %v3335 = vsub.s32 32, %v3334
          %v3336 = vshrl.u32 683565275, %v3335
          %v3337 = vshll.u32 683565275, %v3334
          %v3338 = vshrl.u32 2475754826, %v3335
          %v3339 = vor.u32 %v3337, %v3338
          %v3340 = vshll.u32 2475754826, %v3334
          %v3341 = vshrl.u32 2131351028, %v3335
          %v3342 = vor.u32 %v3340, %v3341
          %v3343 = vshll.u32 2131351028, %v3334
          %v3344 = vshrl.u32 2102212464, %v3335
          %v3345 = vor.u32 %v3343, %v3344
          %v3346 = vshll.u32 2102212464, %v3334
          %v3347 = vshrl.u32 920167782, %v3335
          %v3348 = vor.u32 %v3346, %v3347
          %v3349 = vshll.u32 920167782, %v3334
          %v3350 = vshrl.u32 1326507024, %v3335
          %v3351 = vor.u32 %v3349, %v3350
          %vm3352 = vcmp.lt.s32.totalorder %v3333, 1
          %vm3353 = vcmp.lt.s32.totalorder %v3333, 2
          %vm3354 = vcmp.lt.s32.totalorder %v3333, 3
          %vm3355 = vcmp.lt.s32.totalorder %v3333, 4
          %v3356 = vsel %vm3352, %v3336, %v3339
          %v3357 = vsel %vm3355, %v3345, 2102212464
          %v3358 = vsel %vm3354, %v3342, %v3357
          %v3359 = vsel %vm3353, %v3356, %v3358
          %v3360 = vsel %vm3352, %v3339, %v3342
          %v3361 = vsel %vm3355, %v3348, 920167782
          %v3362 = vsel %vm3354, %v3345, %v3361
          %v3363 = vsel %vm3353, %v3360, %v3362
          %v3364 = vsel %vm3352, %v3342, %v3345
          %v3365 = vsel %vm3355, %v3351, 1326507024
          %v3366 = vsel %vm3354, %v3348, %v3365
          %v3367 = vsel %vm3353, %v3364, %v3366
          %v3368 = vshll.u32 %v3328, 8
          %v3369 = vmul.u32.u64.compose %v3368, %v3367
          %v3370 = vextract.low.u32 %v3369
          %v3371 = vextract.high.u32 %v3369
          %v3372 = vmul.u32.u64.compose %v3368, %v3363
          %v3373 = vextract.low.u32 %v3372
          %v3374 = vextract.high.u32 %v3372
          %v3375 = vmul.u32 %v3368, %v3359
          %v3376 = vadd.s32 %v3371, %v3373
          %vm3377 = vc.u32 %v3371, %v3373
          %v3378 = vadd.s32 %v3374, 1
          %v3379 = vsel %vm3377, %v3378, %v3374
          %v3380 = vadd.s32 %v3375, %v3379
          %v3381 = vadd.s32 %v3380, 536870912
          %v3382 = vshrl.u32 %v3381, 30
          %v3383 = vshll.u32 %v3382, 30
          %v3384 = vsub.s32 %v3380, %v3383
          %vm3385 = vcmp.lt.s32.totalorder %v3384, 0
          %v3386 = vsub.s32 0, %v3384
          %v3387 = vsel %vm3385, %v3386, %v3384
          %v3388 = vclz %v3387
          %v3389 = vsub.s32 %v3388, 2
          %vm3390 = vcmp.gt.s32.totalorder 0, %v3389
          %v3391 = vsel %vm3390, 0, %v3389
          %v3392 = vsub.s32 32, %v3391
          %v3393 = vshll.u32 %v3384, %v3391
          %v3394 = vshrl.u32 %v3376, %v3392
          %v3395 = vor.u32 %v3393, %v3394
          %v3396 = vsub.s32 4294967266, %v3391
          %v3397 = vadd.s32 %v3396, 127
          %v3398 = vshll.u32 %v3397, 23
          %v3399 = vor.u32 4788187, %v3398
          %v3400 = vand.u32 2147483647, %v3399
          %v3402 = vcvt.s32.f32 %v3395
          %v3403 = vmul.f32 %v3402, %v3400
          %v3404 = vxor.u32 %v3403, 2147483648
          %v3405 = vsel %vm3322, %v3404, %v3403
          %v3406 = vsub.s32 4, %v3382
          %v3407 = vsel %vm3322, %v3406, %v3382
          %v3408 = vsel %vm3321, %v687, %v3405
          %v3409 = vsel %vm3321, 0, %v3407
          %v3410 = vcosq.f32.pop %v3408
          %v3411 = vsinq.f32.pop %v3408
          %vm3412 = vweird.f32 %v687
          %v3413 = vadd.s32 %v3409, 3
          %v3414 = vand.u32 %v3413, 3
          %vm3415 = vcmp.lt.s32.totalorder %v3414, 2
          %vm3416 = vcmp.eq.s32.totalorder %v3414, 0
          %v3417 = vxor.u32 %v3411, 2147483648
          %v3418 = vsel %vm3416, %v3410, %v3417
          %vm3419 = vcmp.eq.s32.totalorder %v3414, 2
          %v3420 = vxor.u32 %v3410, 2147483648
          %v3421 = vsel %vm3419, %v3420, %v3411
          %v3422 = vsel %vm3415, %v3418, %v3421
          %v3423 = vsel %vm3412, nan, %v3422
          %v3424 = vand.u32 2147483647, %v692
          %vm3425 = vcmp.le.f32.partialorder %v3424, 0.7853982
          %vm3426 = vcmp.lt.s32.totalorder %v692, 0
          %v3427 = vand.u32 %v692, 2139095040
          %v3428 = vshrl.u32 %v3427, 23
          %v3429 = vsub.s32 %v3428, 127
          %v3430 = vand.u32 2147483647, %v692
          %v3431 = vand.u32 %v3430, 8388607
          %v3432 = vor.u32 %v3431, 8388608
          %v3433 = vsub.s32 0, %v3432
          %v3434 = vadd.s32 %v3429, 1
          %vm3435 = vcmp.gt.s32.totalorder %v3434, 0
          %v3436 = vsel %vm3435, %v3434, 0
          %v3437 = vshrl.u32 %v3436, 5
          %v3438 = vand.u32 %v3436, 31
          %v3439 = vsub.s32 32, %v3438
          %v3440 = vshrl.u32 683565275, %v3439
          %v3441 = vshll.u32 683565275, %v3438
          %v3442 = vshrl.u32 2475754826, %v3439
          %v3443 = vor.u32 %v3441, %v3442
          %v3444 = vshll.u32 2475754826, %v3438
          %v3445 = vshrl.u32 2131351028, %v3439
          %v3446 = vor.u32 %v3444, %v3445
          %v3447 = vshll.u32 2131351028, %v3438
          %v3448 = vshrl.u32 2102212464, %v3439
          %v3449 = vor.u32 %v3447, %v3448
          %v3450 = vshll.u32 2102212464, %v3438
          %v3451 = vshrl.u32 920167782, %v3439
          %v3452 = vor.u32 %v3450, %v3451
          %v3453 = vshll.u32 920167782, %v3438
          %v3454 = vshrl.u32 1326507024, %v3439
          %v3455 = vor.u32 %v3453, %v3454
          %vm3456 = vcmp.lt.s32.totalorder %v3437, 1
          %vm3457 = vcmp.lt.s32.totalorder %v3437, 2
          %vm3458 = vcmp.lt.s32.totalorder %v3437, 3
          %vm3459 = vcmp.lt.s32.totalorder %v3437, 4
          %v3460 = vsel %vm3456, %v3440, %v3443
          %v3461 = vsel %vm3459, %v3449, 2102212464
          %v3462 = vsel %vm3458, %v3446, %v3461
          %v3463 = vsel %vm3457, %v3460, %v3462
          %v3464 = vsel %vm3456, %v3443, %v3446
          %v3465 = vsel %vm3459, %v3452, 920167782
          %v3466 = vsel %vm3458, %v3449, %v3465
          %v3467 = vsel %vm3457, %v3464, %v3466
          %v3468 = vsel %vm3456, %v3446, %v3449
          %v3469 = vsel %vm3459, %v3455, 1326507024
          %v3470 = vsel %vm3458, %v3452, %v3469
          %v3471 = vsel %vm3457, %v3468, %v3470
          %v3472 = vshll.u32 %v3432, 8
          %v3473 = vmul.u32.u64.compose %v3472, %v3471
          %v3474 = vextract.low.u32 %v3473
          %v3475 = vextract.high.u32 %v3473
          %v3476 = vmul.u32.u64.compose %v3472, %v3467
          %v3477 = vextract.low.u32 %v3476
          %v3478 = vextract.high.u32 %v3476
          %v3479 = vmul.u32 %v3472, %v3463
          %v3480 = vadd.s32 %v3475, %v3477
          %vm3481 = vc.u32 %v3475, %v3477
          %v3482 = vadd.s32 %v3478, 1
          %v3483 = vsel %vm3481, %v3482, %v3478
          %v3484 = vadd.s32 %v3479, %v3483
          %v3485 = vadd.s32 %v3484, 536870912
          %v3486 = vshrl.u32 %v3485, 30
          %v3487 = vshll.u32 %v3486, 30
          %v3488 = vsub.s32 %v3484, %v3487
          %vm3489 = vcmp.lt.s32.totalorder %v3488, 0
          %v3490 = vsub.s32 0, %v3488
          %v3491 = vsel %vm3489, %v3490, %v3488
          %v3492 = vclz %v3491
          %v3493 = vsub.s32 %v3492, 2
          %vm3494 = vcmp.gt.s32.totalorder 0, %v3493
          %v3495 = vsel %vm3494, 0, %v3493
          %v3496 = vsub.s32 32, %v3495
          %v3497 = vshll.u32 %v3488, %v3495
          %v3498 = vshrl.u32 %v3480, %v3496
          %v3499 = vor.u32 %v3497, %v3498
          %v3500 = vsub.s32 4294967266, %v3495
          %v3501 = vadd.s32 %v3500, 127
          %v3502 = vshll.u32 %v3501, 23
          %v3503 = vor.u32 4788187, %v3502
          %v3504 = vand.u32 2147483647, %v3503
          %v3506 = vcvt.s32.f32 %v3499
          %v3507 = vmul.f32 %v3506, %v3504
          %v3508 = vxor.u32 %v3507, 2147483648
          %v3509 = vsel %vm3426, %v3508, %v3507
          %v3510 = vsub.s32 4, %v3486
          %v3511 = vsel %vm3426, %v3510, %v3486
          %v3512 = vsel %vm3425, %v692, %v3509
          %v3513 = vsel %vm3425, 0, %v3511
          %v3514 = vcosq.f32.pop %v3512
          %v3515 = vsinq.f32.pop %v3512
          %vm3516 = vweird.f32 %v692
          %v3517 = vadd.s32 %v3513, 3
          %v3518 = vand.u32 %v3517, 3
          %vm3519 = vcmp.lt.s32.totalorder %v3518, 2
          %vm3520 = vcmp.eq.s32.totalorder %v3518, 0
          %v3521 = vxor.u32 %v3515, 2147483648
          %v3522 = vsel %vm3520, %v3514, %v3521
          %vm3523 = vcmp.eq.s32.totalorder %v3518, 2
          %v3524 = vxor.u32 %v3514, 2147483648
          %v3525 = vsel %vm3523, %v3524, %v3515
          %v3526 = vsel %vm3519, %v3522, %v3525
          %v3527 = vsel %vm3516, nan, %v3526
          %v3528 = vand.u32 2147483647, %v697
          %vm3529 = vcmp.le.f32.partialorder %v3528, 0.7853982
          %vm3530 = vcmp.lt.s32.totalorder %v697, 0
          %v3531 = vand.u32 %v697, 2139095040
          %v3532 = vshrl.u32 %v3531, 23
          %v3533 = vsub.s32 %v3532, 127
          %v3534 = vand.u32 2147483647, %v697
          %v3535 = vand.u32 %v3534, 8388607
          %v3536 = vor.u32 %v3535, 8388608
          %v3537 = vsub.s32 0, %v3536
          %v3538 = vadd.s32 %v3533, 1
          %vm3539 = vcmp.gt.s32.totalorder %v3538, 0
          %v3540 = vsel %vm3539, %v3538, 0
          %v3541 = vshrl.u32 %v3540, 5
          %v3542 = vand.u32 %v3540, 31
          %v3543 = vsub.s32 32, %v3542
          %v3544 = vshrl.u32 683565275, %v3543
          %v3545 = vshll.u32 683565275, %v3542
          %v3546 = vshrl.u32 2475754826, %v3543
          %v3547 = vor.u32 %v3545, %v3546
          %v3548 = vshll.u32 2475754826, %v3542
          %v3549 = vshrl.u32 2131351028, %v3543
          %v3550 = vor.u32 %v3548, %v3549
          %v3551 = vshll.u32 2131351028, %v3542
          %v3552 = vshrl.u32 2102212464, %v3543
          %v3553 = vor.u32 %v3551, %v3552
          %v3554 = vshll.u32 2102212464, %v3542
          %v3555 = vshrl.u32 920167782, %v3543
          %v3556 = vor.u32 %v3554, %v3555
          %v3557 = vshll.u32 920167782, %v3542
          %v3558 = vshrl.u32 1326507024, %v3543
          %v3559 = vor.u32 %v3557, %v3558
          %vm3560 = vcmp.lt.s32.totalorder %v3541, 1
          %vm3561 = vcmp.lt.s32.totalorder %v3541, 2
          %vm3562 = vcmp.lt.s32.totalorder %v3541, 3
          %vm3563 = vcmp.lt.s32.totalorder %v3541, 4
          %v3564 = vsel %vm3560, %v3544, %v3547
          %v3565 = vsel %vm3563, %v3553, 2102212464
          %v3566 = vsel %vm3562, %v3550, %v3565
          %v3567 = vsel %vm3561, %v3564, %v3566
          %v3568 = vsel %vm3560, %v3547, %v3550
          %v3569 = vsel %vm3563, %v3556, 920167782
          %v3570 = vsel %vm3562, %v3553, %v3569
          %v3571 = vsel %vm3561, %v3568, %v3570
          %v3572 = vsel %vm3560, %v3550, %v3553
          %v3573 = vsel %vm3563, %v3559, 1326507024
          %v3574 = vsel %vm3562, %v3556, %v3573
          %v3575 = vsel %vm3561, %v3572, %v3574
          %v3576 = vshll.u32 %v3536, 8
          %v3577 = vmul.u32.u64.compose %v3576, %v3575
          %v3578 = vextract.low.u32 %v3577
          %v3579 = vextract.high.u32 %v3577
          %v3580 = vmul.u32.u64.compose %v3576, %v3571
          %v3581 = vextract.low.u32 %v3580
          %v3582 = vextract.high.u32 %v3580
          %v3583 = vmul.u32 %v3576, %v3567
          %v3584 = vadd.s32 %v3579, %v3581
          %vm3585 = vc.u32 %v3579, %v3581
          %v3586 = vadd.s32 %v3582, 1
          %v3587 = vsel %vm3585, %v3586, %v3582
          %v3588 = vadd.s32 %v3583, %v3587
          %v3589 = vadd.s32 %v3588, 536870912
          %v3590 = vshrl.u32 %v3589, 30
          %v3591 = vshll.u32 %v3590, 30
          %v3592 = vsub.s32 %v3588, %v3591
          %vm3593 = vcmp.lt.s32.totalorder %v3592, 0
          %v3594 = vsub.s32 0, %v3592
          %v3595 = vsel %vm3593, %v3594, %v3592
          %v3596 = vclz %v3595
          %v3597 = vsub.s32 %v3596, 2
          %vm3598 = vcmp.gt.s32.totalorder 0, %v3597
          %v3599 = vsel %vm3598, 0, %v3597
          %v3600 = vsub.s32 32, %v3599
          %v3601 = vshll.u32 %v3592, %v3599
          %v3602 = vshrl.u32 %v3584, %v3600
          %v3603 = vor.u32 %v3601, %v3602
          %v3604 = vsub.s32 4294967266, %v3599
          %v3605 = vadd.s32 %v3604, 127
          %v3606 = vshll.u32 %v3605, 23
          %v3607 = vor.u32 4788187, %v3606
          %v3608 = vand.u32 2147483647, %v3607
          %v3610 = vcvt.s32.f32 %v3603
          %v3611 = vmul.f32 %v3610, %v3608
          %v3612 = vxor.u32 %v3611, 2147483648
          %v3613 = vsel %vm3530, %v3612, %v3611
          %v3614 = vsub.s32 4, %v3590
          %v3615 = vsel %vm3530, %v3614, %v3590
          %v3616 = vsel %vm3529, %v697, %v3613
          %v3617 = vsel %vm3529, 0, %v3615
          %v3618 = vcosq.f32.pop %v3616
          %v3619 = vsinq.f32.pop %v3616
          %vm3620 = vweird.f32 %v697
          %v3621 = vadd.s32 %v3617, 3
          %v3622 = vand.u32 %v3621, 3
          %vm3623 = vcmp.lt.s32.totalorder %v3622, 2
          %vm3624 = vcmp.eq.s32.totalorder %v3622, 0
          %v3625 = vxor.u32 %v3619, 2147483648
          %v3626 = vsel %vm3624, %v3618, %v3625
          %vm3627 = vcmp.eq.s32.totalorder %v3622, 2
          %v3628 = vxor.u32 %v3618, 2147483648
          %v3629 = vsel %vm3627, %v3628, %v3619
          %v3630 = vsel %vm3623, %v3626, %v3629
          %v3631 = vsel %vm3620, nan, %v3630
          %v3632 = vand.u32 2147483647, %v702
          %vm3633 = vcmp.le.f32.partialorder %v3632, 0.7853982
          %vm3634 = vcmp.lt.s32.totalorder %v702, 0
          %v3635 = vand.u32 %v702, 2139095040
          %v3636 = vshrl.u32 %v3635, 23
          %v3637 = vsub.s32 %v3636, 127
          %v3638 = vand.u32 2147483647, %v702
          %v3639 = vand.u32 %v3638, 8388607
          %v3640 = vor.u32 %v3639, 8388608
          %v3641 = vsub.s32 0, %v3640
          %v3642 = vadd.s32 %v3637, 1
          %vm3643 = vcmp.gt.s32.totalorder %v3642, 0
          %v3644 = vsel %vm3643, %v3642, 0
          %v3645 = vshrl.u32 %v3644, 5
          %v3646 = vand.u32 %v3644, 31
          %v3647 = vsub.s32 32, %v3646
          %v3648 = vshrl.u32 683565275, %v3647
          %v3649 = vshll.u32 683565275, %v3646
          %v3650 = vshrl.u32 2475754826, %v3647
          %v3651 = vor.u32 %v3649, %v3650
          %v3652 = vshll.u32 2475754826, %v3646
          %v3653 = vshrl.u32 2131351028, %v3647
          %v3654 = vor.u32 %v3652, %v3653
          %v3655 = vshll.u32 2131351028, %v3646
          %v3656 = vshrl.u32 2102212464, %v3647
          %v3657 = vor.u32 %v3655, %v3656
          %v3658 = vshll.u32 2102212464, %v3646
          %v3659 = vshrl.u32 920167782, %v3647
          %v3660 = vor.u32 %v3658, %v3659
          %v3661 = vshll.u32 920167782, %v3646
          %v3662 = vshrl.u32 1326507024, %v3647
          %v3663 = vor.u32 %v3661, %v3662
          %vm3664 = vcmp.lt.s32.totalorder %v3645, 1
          %vm3665 = vcmp.lt.s32.totalorder %v3645, 2
          %vm3666 = vcmp.lt.s32.totalorder %v3645, 3
          %vm3667 = vcmp.lt.s32.totalorder %v3645, 4
          %v3668 = vsel %vm3664, %v3648, %v3651
          %v3669 = vsel %vm3667, %v3657, 2102212464
          %v3670 = vsel %vm3666, %v3654, %v3669
          %v3671 = vsel %vm3665, %v3668, %v3670
          %v3672 = vsel %vm3664, %v3651, %v3654
          %v3673 = vsel %vm3667, %v3660, 920167782
          %v3674 = vsel %vm3666, %v3657, %v3673
          %v3675 = vsel %vm3665, %v3672, %v3674
          %v3676 = vsel %vm3664, %v3654, %v3657
          %v3677 = vsel %vm3667, %v3663, 1326507024
          %v3678 = vsel %vm3666, %v3660, %v3677
          %v3679 = vsel %vm3665, %v3676, %v3678
          %v3680 = vshll.u32 %v3640, 8
          %v3681 = vmul.u32.u64.compose %v3680, %v3679
          %v3682 = vextract.low.u32 %v3681
          %v3683 = vextract.high.u32 %v3681
          %v3684 = vmul.u32.u64.compose %v3680, %v3675
          %v3685 = vextract.low.u32 %v3684
          %v3686 = vextract.high.u32 %v3684
          %v3687 = vmul.u32 %v3680, %v3671
          %v3688 = vadd.s32 %v3683, %v3685
          %vm3689 = vc.u32 %v3683, %v3685
          %v3690 = vadd.s32 %v3686, 1
          %v3691 = vsel %vm3689, %v3690, %v3686
          %v3692 = vadd.s32 %v3687, %v3691
          %v3693 = vadd.s32 %v3692, 536870912
          %v3694 = vshrl.u32 %v3693, 30
          %v3695 = vshll.u32 %v3694, 30
          %v3696 = vsub.s32 %v3692, %v3695
          %vm3697 = vcmp.lt.s32.totalorder %v3696, 0
          %v3698 = vsub.s32 0, %v3696
          %v3699 = vsel %vm3697, %v3698, %v3696
          %v3700 = vclz %v3699
          %v3701 = vsub.s32 %v3700, 2
          %vm3702 = vcmp.gt.s32.totalorder 0, %v3701
          %v3703 = vsel %vm3702, 0, %v3701
          %v3704 = vsub.s32 32, %v3703
          %v3705 = vshll.u32 %v3696, %v3703
          %v3706 = vshrl.u32 %v3688, %v3704
          %v3707 = vor.u32 %v3705, %v3706
          %v3708 = vsub.s32 4294967266, %v3703
          %v3709 = vadd.s32 %v3708, 127
          %v3710 = vshll.u32 %v3709, 23
          %v3711 = vor.u32 4788187, %v3710
          %v3712 = vand.u32 2147483647, %v3711
          %v3714 = vcvt.s32.f32 %v3707
          %v3715 = vmul.f32 %v3714, %v3712
          %v3716 = vxor.u32 %v3715, 2147483648
          %v3717 = vsel %vm3634, %v3716, %v3715
          %v3718 = vsub.s32 4, %v3694
          %v3719 = vsel %vm3634, %v3718, %v3694
          %v3720 = vsel %vm3633, %v702, %v3717
          %v3721 = vsel %vm3633, 0, %v3719
          %v3722 = vcosq.f32.pop %v3720
          %v3723 = vsinq.f32.pop %v3720
          %vm3724 = vweird.f32 %v702
          %v3725 = vadd.s32 %v3721, 3
          %v3726 = vand.u32 %v3725, 3
          %vm3727 = vcmp.lt.s32.totalorder %v3726, 2
          %vm3728 = vcmp.eq.s32.totalorder %v3726, 0
          %v3729 = vxor.u32 %v3723, 2147483648
          %v3730 = vsel %vm3728, %v3722, %v3729
          %vm3731 = vcmp.eq.s32.totalorder %v3726, 2
          %v3732 = vxor.u32 %v3722, 2147483648
          %v3733 = vsel %vm3731, %v3732, %v3723
          %v3734 = vsel %vm3727, %v3730, %v3733
          %v3735 = vsel %vm3724, nan, %v3734
          %v3736 = vand.u32 2147483647, %v707
          %vm3737 = vcmp.le.f32.partialorder %v3736, 0.7853982
          %vm3738 = vcmp.lt.s32.totalorder %v707, 0
          %v3739 = vand.u32 %v707, 2139095040
          %v3740 = vshrl.u32 %v3739, 23
          %v3741 = vsub.s32 %v3740, 127
          %v3742 = vand.u32 2147483647, %v707
          %v3743 = vand.u32 %v3742, 8388607
          %v3744 = vor.u32 %v3743, 8388608
          %v3745 = vsub.s32 0, %v3744
          %v3746 = vadd.s32 %v3741, 1
          %vm3747 = vcmp.gt.s32.totalorder %v3746, 0
          %v3748 = vsel %vm3747, %v3746, 0
          %v3749 = vshrl.u32 %v3748, 5
          %v3750 = vand.u32 %v3748, 31
          %v3751 = vsub.s32 32, %v3750
          %v3752 = vshrl.u32 683565275, %v3751
          %v3753 = vshll.u32 683565275, %v3750
          %v3754 = vshrl.u32 2475754826, %v3751
          %v3755 = vor.u32 %v3753, %v3754
          %v3756 = vshll.u32 2475754826, %v3750
          %v3757 = vshrl.u32 2131351028, %v3751
          %v3758 = vor.u32 %v3756, %v3757
          %v3759 = vshll.u32 2131351028, %v3750
          %v3760 = vshrl.u32 2102212464, %v3751
          %v3761 = vor.u32 %v3759, %v3760
          %v3762 = vshll.u32 2102212464, %v3750
          %v3763 = vshrl.u32 920167782, %v3751
          %v3764 = vor.u32 %v3762, %v3763
          %v3765 = vshll.u32 920167782, %v3750
          %v3766 = vshrl.u32 1326507024, %v3751
          %v3767 = vor.u32 %v3765, %v3766
          %vm3768 = vcmp.lt.s32.totalorder %v3749, 1
          %vm3769 = vcmp.lt.s32.totalorder %v3749, 2
          %vm3770 = vcmp.lt.s32.totalorder %v3749, 3
          %vm3771 = vcmp.lt.s32.totalorder %v3749, 4
          %v3772 = vsel %vm3768, %v3752, %v3755
          %v3773 = vsel %vm3771, %v3761, 2102212464
          %v3774 = vsel %vm3770, %v3758, %v3773
          %v3775 = vsel %vm3769, %v3772, %v3774
          %v3776 = vsel %vm3768, %v3755, %v3758
          %v3777 = vsel %vm3771, %v3764, 920167782
          %v3778 = vsel %vm3770, %v3761, %v3777
          %v3779 = vsel %vm3769, %v3776, %v3778
          %v3780 = vsel %vm3768, %v3758, %v3761
          %v3781 = vsel %vm3771, %v3767, 1326507024
          %v3782 = vsel %vm3770, %v3764, %v3781
          %v3783 = vsel %vm3769, %v3780, %v3782
          %v3784 = vshll.u32 %v3744, 8
          %v3785 = vmul.u32.u64.compose %v3784, %v3783
          %v3786 = vextract.low.u32 %v3785
          %v3787 = vextract.high.u32 %v3785
          %v3788 = vmul.u32.u64.compose %v3784, %v3779
          %v3789 = vextract.low.u32 %v3788
          %v3790 = vextract.high.u32 %v3788
          %v3791 = vmul.u32 %v3784, %v3775
          %v3792 = vadd.s32 %v3787, %v3789
          %vm3793 = vc.u32 %v3787, %v3789
          %v3794 = vadd.s32 %v3790, 1
          %v3795 = vsel %vm3793, %v3794, %v3790
          %v3796 = vadd.s32 %v3791, %v3795
          %v3797 = vadd.s32 %v3796, 536870912
          %v3798 = vshrl.u32 %v3797, 30
          %v3799 = vshll.u32 %v3798, 30
          %v3800 = vsub.s32 %v3796, %v3799
          %vm3801 = vcmp.lt.s32.totalorder %v3800, 0
          %v3802 = vsub.s32 0, %v3800
          %v3803 = vsel %vm3801, %v3802, %v3800
          %v3804 = vclz %v3803
          %v3805 = vsub.s32 %v3804, 2
          %vm3806 = vcmp.gt.s32.totalorder 0, %v3805
          %v3807 = vsel %vm3806, 0, %v3805
          %v3808 = vsub.s32 32, %v3807
          %v3809 = vshll.u32 %v3800, %v3807
          %v3810 = vshrl.u32 %v3792, %v3808
          %v3811 = vor.u32 %v3809, %v3810
          %v3812 = vsub.s32 4294967266, %v3807
          %v3813 = vadd.s32 %v3812, 127
          %v3814 = vshll.u32 %v3813, 23
          %v3815 = vor.u32 4788187, %v3814
          %v3816 = vand.u32 2147483647, %v3815
          %v3818 = vcvt.s32.f32 %v3811
          %v3819 = vmul.f32 %v3818, %v3816
          %v3820 = vxor.u32 %v3819, 2147483648
          %v3821 = vsel %vm3738, %v3820, %v3819
          %v3822 = vsub.s32 4, %v3798
          %v3823 = vsel %vm3738, %v3822, %v3798
          %v3824 = vsel %vm3737, %v707, %v3821
          %v3825 = vsel %vm3737, 0, %v3823
          %v3826 = vcosq.f32.pop %v3824
          %v3827 = vsinq.f32.pop %v3824
          %vm3828 = vweird.f32 %v707
          %v3829 = vadd.s32 %v3825, 3
          %v3830 = vand.u32 %v3829, 3
          %vm3831 = vcmp.lt.s32.totalorder %v3830, 2
          %vm3832 = vcmp.eq.s32.totalorder %v3830, 0
          %v3833 = vxor.u32 %v3827, 2147483648
          %v3834 = vsel %vm3832, %v3826, %v3833
          %vm3835 = vcmp.eq.s32.totalorder %v3830, 2
          %v3836 = vxor.u32 %v3826, 2147483648
          %v3837 = vsel %vm3835, %v3836, %v3827
          %v3838 = vsel %vm3831, %v3834, %v3837
          %v3839 = vsel %vm3828, nan, %v3838
          %v3840 = vand.u32 2147483647, %v712
          %vm3841 = vcmp.le.f32.partialorder %v3840, 0.7853982
          %vm3842 = vcmp.lt.s32.totalorder %v712, 0
          %v3843 = vand.u32 %v712, 2139095040
          %v3844 = vshrl.u32 %v3843, 23
          %v3845 = vsub.s32 %v3844, 127
          %v3846 = vand.u32 2147483647, %v712
          %v3847 = vand.u32 %v3846, 8388607
          %v3848 = vor.u32 %v3847, 8388608
          %v3849 = vsub.s32 0, %v3848
          %v3850 = vadd.s32 %v3845, 1
          %vm3851 = vcmp.gt.s32.totalorder %v3850, 0
          %v3852 = vsel %vm3851, %v3850, 0
          %v3853 = vshrl.u32 %v3852, 5
          %v3854 = vand.u32 %v3852, 31
          %v3855 = vsub.s32 32, %v3854
          %v3856 = vshrl.u32 683565275, %v3855
          %v3857 = vshll.u32 683565275, %v3854
          %v3858 = vshrl.u32 2475754826, %v3855
          %v3859 = vor.u32 %v3857, %v3858
          %v3860 = vshll.u32 2475754826, %v3854
          %v3861 = vshrl.u32 2131351028, %v3855
          %v3862 = vor.u32 %v3860, %v3861
          %v3863 = vshll.u32 2131351028, %v3854
          %v3864 = vshrl.u32 2102212464, %v3855
          %v3865 = vor.u32 %v3863, %v3864
          %v3866 = vshll.u32 2102212464, %v3854
          %v3867 = vshrl.u32 920167782, %v3855
          %v3868 = vor.u32 %v3866, %v3867
          %v3869 = vshll.u32 920167782, %v3854
          %v3870 = vshrl.u32 1326507024, %v3855
          %v3871 = vor.u32 %v3869, %v3870
          %vm3872 = vcmp.lt.s32.totalorder %v3853, 1
          %vm3873 = vcmp.lt.s32.totalorder %v3853, 2
          %vm3874 = vcmp.lt.s32.totalorder %v3853, 3
          %vm3875 = vcmp.lt.s32.totalorder %v3853, 4
          %v3876 = vsel %vm3872, %v3856, %v3859
          %v3877 = vsel %vm3875, %v3865, 2102212464
          %v3878 = vsel %vm3874, %v3862, %v3877
          %v3879 = vsel %vm3873, %v3876, %v3878
          %v3880 = vsel %vm3872, %v3859, %v3862
          %v3881 = vsel %vm3875, %v3868, 920167782
          %v3882 = vsel %vm3874, %v3865, %v3881
          %v3883 = vsel %vm3873, %v3880, %v3882
          %v3884 = vsel %vm3872, %v3862, %v3865
          %v3885 = vsel %vm3875, %v3871, 1326507024
          %v3886 = vsel %vm3874, %v3868, %v3885
          %v3887 = vsel %vm3873, %v3884, %v3886
          %v3888 = vshll.u32 %v3848, 8
          %v3889 = vmul.u32.u64.compose %v3888, %v3887
          %v3890 = vextract.low.u32 %v3889
          %v3891 = vextract.high.u32 %v3889
          %v3892 = vmul.u32.u64.compose %v3888, %v3883
          %v3893 = vextract.low.u32 %v3892
          %v3894 = vextract.high.u32 %v3892
          %v3895 = vmul.u32 %v3888, %v3879
          %v3896 = vadd.s32 %v3891, %v3893
          %vm3897 = vc.u32 %v3891, %v3893
          %v3898 = vadd.s32 %v3894, 1
          %v3899 = vsel %vm3897, %v3898, %v3894
          %v3900 = vadd.s32 %v3895, %v3899
          %v3901 = vadd.s32 %v3900, 536870912
          %v3902 = vshrl.u32 %v3901, 30
          %v3903 = vshll.u32 %v3902, 30
          %v3904 = vsub.s32 %v3900, %v3903
          %vm3905 = vcmp.lt.s32.totalorder %v3904, 0
          %v3906 = vsub.s32 0, %v3904
          %v3907 = vsel %vm3905, %v3906, %v3904
          %v3908 = vclz %v3907
          %v3909 = vsub.s32 %v3908, 2
          %vm3910 = vcmp.gt.s32.totalorder 0, %v3909
          %v3911 = vsel %vm3910, 0, %v3909
          %v3912 = vsub.s32 32, %v3911
          %v3913 = vshll.u32 %v3904, %v3911
          %v3914 = vshrl.u32 %v3896, %v3912
          %v3915 = vor.u32 %v3913, %v3914
          %v3916 = vsub.s32 4294967266, %v3911
          %v3917 = vadd.s32 %v3916, 127
          %v3918 = vshll.u32 %v3917, 23
          %v3919 = vor.u32 4788187, %v3918
          %v3920 = vand.u32 2147483647, %v3919
          %v3922 = vcvt.s32.f32 %v3915
          %v3923 = vmul.f32 %v3922, %v3920
          %v3924 = vxor.u32 %v3923, 2147483648
          %v3925 = vsel %vm3842, %v3924, %v3923
          %v3926 = vsub.s32 4, %v3902
          %v3927 = vsel %vm3842, %v3926, %v3902
          %v3928 = vsel %vm3841, %v712, %v3925
          %v3929 = vsel %vm3841, 0, %v3927
          %v3930 = vcosq.f32.pop %v3928
          %v3931 = vsinq.f32.pop %v3928
          %vm3932 = vweird.f32 %v712
          %v3933 = vadd.s32 %v3929, 3
          %v3934 = vand.u32 %v3933, 3
          %vm3935 = vcmp.lt.s32.totalorder %v3934, 2
          %vm3936 = vcmp.eq.s32.totalorder %v3934, 0
          %v3937 = vxor.u32 %v3931, 2147483648
          %v3938 = vsel %vm3936, %v3930, %v3937
          %vm3939 = vcmp.eq.s32.totalorder %v3934, 2
          %v3940 = vxor.u32 %v3930, 2147483648
          %v3941 = vsel %vm3939, %v3940, %v3931
          %v3942 = vsel %vm3935, %v3938, %v3941
          %v3943 = vsel %vm3932, nan, %v3942
          %v3944 = vand.u32 2147483647, %v717
          %vm3945 = vcmp.le.f32.partialorder %v3944, 0.7853982
          %vm3946 = vcmp.lt.s32.totalorder %v717, 0
          %v3947 = vand.u32 %v717, 2139095040
          %v3948 = vshrl.u32 %v3947, 23
          %v3949 = vsub.s32 %v3948, 127
          %v3950 = vand.u32 2147483647, %v717
          %v3951 = vand.u32 %v3950, 8388607
          %v3952 = vor.u32 %v3951, 8388608
          %v3953 = vsub.s32 0, %v3952
          %v3954 = vadd.s32 %v3949, 1
          %vm3955 = vcmp.gt.s32.totalorder %v3954, 0
          %v3956 = vsel %vm3955, %v3954, 0
          %v3957 = vshrl.u32 %v3956, 5
          %v3958 = vand.u32 %v3956, 31
          %v3959 = vsub.s32 32, %v3958
          %v3960 = vshrl.u32 683565275, %v3959
          %v3961 = vshll.u32 683565275, %v3958
          %v3962 = vshrl.u32 2475754826, %v3959
          %v3963 = vor.u32 %v3961, %v3962
          %v3964 = vshll.u32 2475754826, %v3958
          %v3965 = vshrl.u32 2131351028, %v3959
          %v3966 = vor.u32 %v3964, %v3965
          %v3967 = vshll.u32 2131351028, %v3958
          %v3968 = vshrl.u32 2102212464, %v3959
          %v3969 = vor.u32 %v3967, %v3968
          %v3970 = vshll.u32 2102212464, %v3958
          %v3971 = vshrl.u32 920167782, %v3959
          %v3972 = vor.u32 %v3970, %v3971
          %v3973 = vshll.u32 920167782, %v3958
          %v3974 = vshrl.u32 1326507024, %v3959
          %v3975 = vor.u32 %v3973, %v3974
          %vm3976 = vcmp.lt.s32.totalorder %v3957, 1
          %vm3977 = vcmp.lt.s32.totalorder %v3957, 2
          %vm3978 = vcmp.lt.s32.totalorder %v3957, 3
          %vm3979 = vcmp.lt.s32.totalorder %v3957, 4
          %v3980 = vsel %vm3976, %v3960, %v3963
          %v3981 = vsel %vm3979, %v3969, 2102212464
          %v3982 = vsel %vm3978, %v3966, %v3981
          %v3983 = vsel %vm3977, %v3980, %v3982
          %v3984 = vsel %vm3976, %v3963, %v3966
          %v3985 = vsel %vm3979, %v3972, 920167782
          %v3986 = vsel %vm3978, %v3969, %v3985
          %v3987 = vsel %vm3977, %v3984, %v3986
          %v3988 = vsel %vm3976, %v3966, %v3969
          %v3989 = vsel %vm3979, %v3975, 1326507024
          %v3990 = vsel %vm3978, %v3972, %v3989
          %v3991 = vsel %vm3977, %v3988, %v3990
          %v3992 = vshll.u32 %v3952, 8
          %v3993 = vmul.u32.u64.compose %v3992, %v3991
          %v3994 = vextract.low.u32 %v3993
          %v3995 = vextract.high.u32 %v3993
          %v3996 = vmul.u32.u64.compose %v3992, %v3987
          %v3997 = vextract.low.u32 %v3996
          %v3998 = vextract.high.u32 %v3996
          %v3999 = vmul.u32 %v3992, %v3983
          %v4000 = vadd.s32 %v3995, %v3997
          %vm4001 = vc.u32 %v3995, %v3997
          %v4002 = vadd.s32 %v3998, 1
          %v4003 = vsel %vm4001, %v4002, %v3998
          %v4004 = vadd.s32 %v3999, %v4003
          %v4005 = vadd.s32 %v4004, 536870912
          %v4006 = vshrl.u32 %v4005, 30
          %v4007 = vshll.u32 %v4006, 30
          %v4008 = vsub.s32 %v4004, %v4007
          %vm4009 = vcmp.lt.s32.totalorder %v4008, 0
          %v4010 = vsub.s32 0, %v4008
          %v4011 = vsel %vm4009, %v4010, %v4008
          %v4012 = vclz %v4011
          %v4013 = vsub.s32 %v4012, 2
          %vm4014 = vcmp.gt.s32.totalorder 0, %v4013
          %v4015 = vsel %vm4014, 0, %v4013
          %v4016 = vsub.s32 32, %v4015
          %v4017 = vshll.u32 %v4008, %v4015
          %v4018 = vshrl.u32 %v4000, %v4016
          %v4019 = vor.u32 %v4017, %v4018
          %v4020 = vsub.s32 4294967266, %v4015
          %v4021 = vadd.s32 %v4020, 127
          %v4022 = vshll.u32 %v4021, 23
          %v4023 = vor.u32 4788187, %v4022
          %v4024 = vand.u32 2147483647, %v4023
          %v4026 = vcvt.s32.f32 %v4019
          %v4027 = vmul.f32 %v4026, %v4024
          %v4028 = vxor.u32 %v4027, 2147483648
          %v4029 = vsel %vm3946, %v4028, %v4027
          %v4030 = vsub.s32 4, %v4006
          %v4031 = vsel %vm3946, %v4030, %v4006
          %v4032 = vsel %vm3945, %v717, %v4029
          %v4033 = vsel %vm3945, 0, %v4031
          %v4034 = vcosq.f32.pop %v4032
          %v4035 = vsinq.f32.pop %v4032
          %vm4036 = vweird.f32 %v717
          %v4037 = vadd.s32 %v4033, 3
          %v4038 = vand.u32 %v4037, 3
          %vm4039 = vcmp.lt.s32.totalorder %v4038, 2
          %vm4040 = vcmp.eq.s32.totalorder %v4038, 0
          %v4041 = vxor.u32 %v4035, 2147483648
          %v4042 = vsel %vm4040, %v4034, %v4041
          %vm4043 = vcmp.eq.s32.totalorder %v4038, 2
          %v4044 = vxor.u32 %v4034, 2147483648
          %v4045 = vsel %vm4043, %v4044, %v4035
          %v4046 = vsel %vm4039, %v4042, %v4045
          %v4047 = vsel %vm4036, nan, %v4046
          %v4048 = vld [vmem:[%s5] sm:$0xff]
          %v4049 = vld [vmem:[%s5 + $0x8] sm:$0xff]
          %v4050 = vld [vmem:[%s5 + $0x10] sm:$0xff]
          %v4051 = vld [vmem:[%s5 + $0x18] sm:$0xff]
          %v4052 = vld [vmem:[%s5 + $0x20] sm:$0xff]
          %v4053 = vld [vmem:[%s5 + $0x28] sm:$0xff]
          %v4054 = vld [vmem:[%s5 + $0x30] sm:$0xff]
          %v4055 = vld [vmem:[%s5 + $0x38] sm:$0xff]
          %v4056 = vld [vmem:[%s5 + $0x40] sm:$0xff]
          %v4057 = vld [vmem:[%s5 + $0x48] sm:$0xff]
          %v4058 = vld [vmem:[%s5 + $0x50] sm:$0xff]
          %v4059 = vld [vmem:[%s5 + $0x58] sm:$0xff]
          %v4060 = vld [vmem:[%s5 + $0x60] sm:$0xff]
          %v4061 = vld [vmem:[%s5 + $0x68] sm:$0xff]
          %v4062 = vld [vmem:[%s5 + $0x70] sm:$0xff]
          %v4063 = vld [vmem:[%s5 + $0x78] sm:$0xff]
          %4064 = vmatprep.subr.mxu0 0.0
          %4065 = vmatpush1.msra.mxu0 %v4048
          %4066 = vmatprep.subr.mxu0 0.0
          %4067 = vmatpush1.msra.mxu0 %v4049
          %4068 = vmatprep.subr.mxu0 0.0
          %4069 = vmatpush1.msra.mxu0 %v4050
          %4070 = vmatprep.subr.mxu0 0.0
          %4071 = vmatpush1.msra.mxu0 %v4051
          %4072 = vmatprep.subr.mxu0 0.0
          %4073 = vmatpush1.msra.mxu0 %v4052
          %4074 = vmatprep.subr.mxu0 0.0
          %4075 = vmatpush1.msra.mxu0 %v4053
          %4076 = vmatprep.subr.mxu0 0.0
          %4077 = vmatpush1.msra.mxu0 %v4054
          %4078 = vmatprep.subr.mxu0 0.0
          %4079 = vmatpush1.msra.mxu0 %v4055
          %4080 = vmatprep.subr.mxu0 0.0
          %4081 = vmatpush1.msra.mxu0 %v4056
          %4082 = vmatprep.subr.mxu0 0.0
          %4083 = vmatpush1.msra.mxu0 %v4057
          %4084 = vmatprep.subr.mxu0 0.0
          %4085 = vmatpush1.msra.mxu0 %v4058
          %4086 = vmatprep.subr.mxu0 0.0
          %4087 = vmatpush1.msra.mxu0 %v4059
          %4088 = vmatprep.subr.mxu0 0.0
          %4089 = vmatpush1.msra.mxu0 %v4060
          %4090 = vmatprep.subr.mxu0 0.0
          %4091 = vmatpush1.msra.mxu0 %v4061
          %4092 = vmatprep.subr.mxu0 0.0
          %4093 = vmatpush1.msra.mxu0 %v4062
          %4094 = vmatprep.subr.mxu0 0.0
          %4095 = vmatpush1.msra.mxu0 %v4063
          %4096 = vmatprep.subr.mxu0 0.0
          %4097 = vmatpush1.msra.mxu0 0.0
          %4098 = vmatprep.subr.mxu0 0.0
          %4099 = vmatpush1.msra.mxu0 0.0
          %4100 = vmatprep.subr.mxu0 0.0
          %4101 = vmatpush1.msra.mxu0 0.0
          %4102 = vmatprep.subr.mxu0 0.0
          %4103 = vmatpush1.msra.mxu0 0.0
          %4104 = vmatprep.subr.mxu0 0.0
          %4105 = vmatpush1.msra.mxu0 0.0
          %4106 = vmatprep.subr.mxu0 0.0
          %4107 = vmatpush1.msra.mxu0 0.0
          %4108 = vmatprep.subr.mxu0 0.0
          %4109 = vmatpush1.msra.mxu0 0.0
          %4110 = vmatprep.subr.mxu0 0.0
          %4111 = vmatpush1.msra.mxu0 0.0
          %4112 = vmatprep.subr.mxu0 0.0
          %4113 = vmatpush1.msra.mxu0 0.0
          %4114 = vmatprep.subr.mxu0 0.0
          %4115 = vmatpush1.msra.mxu0 0.0
          %4116 = vmatprep.subr.mxu0 0.0
          %4117 = vmatpush1.msra.mxu0 0.0
          %4118 = vmatprep.subr.mxu0 0.0
          %4119 = vmatpush1.msra.mxu0 0.0
          %4120 = vmatprep.subr.mxu0 0.0
          %4121 = vmatpush1.msra.mxu0 0.0
          %4122 = vmatprep.subr.mxu0 0.0
          %4123 = vmatpush1.msra.mxu0 0.0
          %4124 = vmatprep.subr.mxu0 0.0
          %4125 = vmatpush1.msra.mxu0 0.0
          %4126 = vmatprep.subr.mxu0 0.0
          %4127 = vmatpush1.msra.mxu0 0.0
          %4128 = vmatprep.mubr.f32.mxu0 0.0
          %4129 = vmatmul.mubr.f32.gmra.mrb[0].mxu0 %v823
          %v4130 = vpop.f32.mrb[0].mxu0
          %v4131 = vadd.f32 0.0, %v4130
          %v4132 = vpop.f32.mrb[0].mxu0
          %4133 = vmatprep.mubr.f32.mxu0 0.0
          %4134 = vmatmul.mubr.f32.gmra.mrb[0].mxu0 %v927
          %v4135 = vpop.f32.mrb[0].mxu0
          %v4136 = vadd.f32 0.0, %v4135
          %v4137 = vpop.f32.mrb[0].mxu0
          %4138 = vmatprep.mubr.f32.mxu0 0.0
          %4139 = vmatmul.mubr.f32.gmra.mrb[0].mxu0 %v1031
          %v4140 = vpop.f32.mrb[0].mxu0
          %v4141 = vadd.f32 0.0, %v4140
          %v4142 = vpop.f32.mrb[0].mxu0
          %4143 = vmatprep.mubr.f32.mxu0 0.0
          %4144 = vmatmul.mubr.f32.gmra.mrb[0].mxu0 %v1135
          %v4145 = vpop.f32.mrb[0].mxu0
          %v4146 = vadd.f32 0.0, %v4145
          %v4147 = vpop.f32.mrb[0].mxu0
          %4148 = vmatprep.mubr.f32.mxu0 0.0
          %4149 = vmatmul.mubr.f32.gmra.mrb[0].mxu0 %v1239
          %v4150 = vpop.f32.mrb[0].mxu0
          %v4151 = vadd.f32 0.0, %v4150
          %v4152 = vpop.f32.mrb[0].mxu0
          %4153 = vmatprep.mubr.f32.mxu0 0.0
          %4154 = vmatmul.mubr.f32.gmra.mrb[0].mxu0 %v1343
          %v4155 = vpop.f32.mrb[0].mxu0
          %v4156 = vadd.f32 0.0, %v4155
          %v4157 = vpop.f32.mrb[0].mxu0
          %4158 = vmatprep.mubr.f32.mxu0 0.0
          %4159 = vmatmul.mubr.f32.gmra.mrb[0].mxu0 %v1447
          %v4160 = vpop.f32.mrb[0].mxu0
          %v4161 = vadd.f32 0.0, %v4160
          %v4162 = vpop.f32.mrb[0].mxu0
          %4163 = vmatprep.mubr.f32.mxu0 0.0
          %4164 = vmatmul.mubr.f32.gmra.mrb[0].mxu0 %v1551
          %v4165 = vpop.f32.mrb[0].mxu0
          %v4166 = vadd.f32 0.0, %v4165
          %v4167 = vpop.f32.mrb[0].mxu0
          %4168 = vmatprep.mubr.f32.mxu0 0.0
          %4169 = vmatmul.mubr.f32.gmra.mrb[0].mxu0 %v1655
          %v4170 = vpop.f32.mrb[0].mxu0
          %v4171 = vadd.f32 0.0, %v4170
          %v4172 = vpop.f32.mrb[0].mxu0
          %4173 = vmatprep.mubr.f32.mxu0 0.0
          %4174 = vmatmul.mubr.f32.gmra.mrb[0].mxu0 %v1759
          %v4175 = vpop.f32.mrb[0].mxu0
          %v4176 = vadd.f32 0.0, %v4175
          %v4177 = vpop.f32.mrb[0].mxu0
          %4178 = vmatprep.mubr.f32.mxu0 0.0
          %4179 = vmatmul.mubr.f32.gmra.mrb[0].mxu0 %v1863
          %v4180 = vpop.f32.mrb[0].mxu0
          %v4181 = vadd.f32 0.0, %v4180
          %v4182 = vpop.f32.mrb[0].mxu0
          %4183 = vmatprep.mubr.f32.mxu0 0.0
          %4184 = vmatmul.mubr.f32.gmra.mrb[0].mxu0 %v1967
          %v4185 = vpop.f32.mrb[0].mxu0
          %v4186 = vadd.f32 0.0, %v4185
          %v4187 = vpop.f32.mrb[0].mxu0
          %4188 = vmatprep.mubr.f32.mxu0 0.0
          %4189 = vmatmul.mubr.f32.gmra.mrb[0].mxu0 %v2071
          %v4190 = vpop.f32.mrb[0].mxu0
          %v4191 = vadd.f32 0.0, %v4190
          %v4192 = vpop.f32.mrb[0].mxu0
          %4193 = vmatprep.mubr.f32.mxu0 0.0
          %4194 = vmatmul.mubr.f32.gmra.mrb[0].mxu0 %v2175
          %v4195 = vpop.f32.mrb[0].mxu0
          %v4196 = vadd.f32 0.0, %v4195
          %v4197 = vpop.f32.mrb[0].mxu0
          %4198 = vmatprep.mubr.f32.mxu0 0.0
          %4199 = vmatmul.mubr.f32.gmra.mrb[0].mxu0 %v2279
          %v4200 = vpop.f32.mrb[0].mxu0
          %v4201 = vadd.f32 0.0, %v4200
          %v4202 = vpop.f32.mrb[0].mxu0
          %4203 = vmatprep.mubr.f32.mxu0 0.0
          %4204 = vmatmul.mubr.f32.gmra.mrb[0].mxu0 %v2383
          %v4205 = vpop.f32.mrb[0].mxu0
          %v4206 = vadd.f32 0.0, %v4205
          %v4207 = vpop.f32.mrb[0].mxu0
          %4208 = vmatprep.mubr.f32.mxu0 0.0
          %4209 = vmatmul.mubr.f32.gmra.mrb[0].mxu0 %v2487
          %v4210 = vpop.f32.mrb[0].mxu0
          %v4211 = vadd.f32 0.0, %v4210
          %v4212 = vpop.f32.mrb[0].mxu0
          %4213 = vmatprep.mubr.f32.mxu0 0.0
          %4214 = vmatmul.mubr.f32.gmra.mrb[0].mxu0 %v2591
          %v4215 = vpop.f32.mrb[0].mxu0
          %v4216 = vadd.f32 0.0, %v4215
          %v4217 = vpop.f32.mrb[0].mxu0
          %4218 = vmatprep.mubr.f32.mxu0 0.0
          %4219 = vmatmul.mubr.f32.gmra.mrb[0].mxu0 %v2695
          %v4220 = vpop.f32.mrb[0].mxu0
          %v4221 = vadd.f32 0.0, %v4220
          %v4222 = vpop.f32.mrb[0].mxu0
          %4223 = vmatprep.mubr.f32.mxu0 0.0
          %4224 = vmatmul.mubr.f32.gmra.mrb[0].mxu0 %v2799
          %v4225 = vpop.f32.mrb[0].mxu0
          %v4226 = vadd.f32 0.0, %v4225
          %v4227 = vpop.f32.mrb[0].mxu0
          %4228 = vmatprep.mubr.f32.mxu0 0.0
          %4229 = vmatmul.mubr.f32.gmra.mrb[0].mxu0 %v2903
          %v4230 = vpop.f32.mrb[0].mxu0
          %v4231 = vadd.f32 0.0, %v4230
          %v4232 = vpop.f32.mrb[0].mxu0
          %4233 = vmatprep.mubr.f32.mxu0 0.0
          %4234 = vmatmul.mubr.f32.gmra.mrb[0].mxu0 %v3007
          %v4235 = vpop.f32.mrb[0].mxu0
          %v4236 = vadd.f32 0.0, %v4235
          %v4237 = vpop.f32.mrb[0].mxu0
          %4238 = vmatprep.mubr.f32.mxu0 0.0
          %4239 = vmatmul.mubr.f32.gmra.mrb[0].mxu0 %v3111
          %v4240 = vpop.f32.mrb[0].mxu0
          %v4241 = vadd.f32 0.0, %v4240
          %v4242 = vpop.f32.mrb[0].mxu0
          %4243 = vmatprep.mubr.f32.mxu0 0.0
          %4244 = vmatmul.mubr.f32.gmra.mrb[0].mxu0 %v3215
          %v4245 = vpop.f32.mrb[0].mxu0
          %v4246 = vadd.f32 0.0, %v4245
          %v4247 = vpop.f32.mrb[0].mxu0
          %4248 = vmatprep.mubr.f32.mxu0 0.0
          %4249 = vmatmul.mubr.f32.gmra.mrb[0].mxu0 %v3319
          %v4250 = vpop.f32.mrb[0].mxu0
          %v4251 = vadd.f32 0.0, %v4250
          %v4252 = vpop.f32.mrb[0].mxu0
          %4253 = vmatprep.mubr.f32.mxu0 0.0
          %4254 = vmatmul.mubr.f32.gmra.mrb[0].mxu0 %v3423
          %v4255 = vpop.f32.mrb[0].mxu0
          %v4256 = vadd.f32 0.0, %v4255
          %v4257 = vpop.f32.mrb[0].mxu0
          %4258 = vmatprep.mubr.f32.mxu0 0.0
          %4259 = vmatmul.mubr.f32.gmra.mrb[0].mxu0 %v3527
          %v4260 = vpop.f32.mrb[0].mxu0
          %v4261 = vadd.f32 0.0, %v4260
          %v4262 = vpop.f32.mrb[0].mxu0
          %4263 = vmatprep.mubr.f32.mxu0 0.0
          %4264 = vmatmul.mubr.f32.gmra.mrb[0].mxu0 %v3631
          %v4265 = vpop.f32.mrb[0].mxu0
          %v4266 = vadd.f32 0.0, %v4265
          %v4267 = vpop.f32.mrb[0].mxu0
          %4268 = vmatprep.mubr.f32.mxu0 0.0
          %4269 = vmatmul.mubr.f32.gmra.mrb[0].mxu0 %v3735
          %v4270 = vpop.f32.mrb[0].mxu0
          %v4271 = vadd.f32 0.0, %v4270
          %v4272 = vpop.f32.mrb[0].mxu0
          %4273 = vmatprep.mubr.f32.mxu0 0.0
          %4274 = vmatmul.mubr.f32.gmra.mrb[0].mxu0 %v3839
          %v4275 = vpop.f32.mrb[0].mxu0
          %v4276 = vadd.f32 0.0, %v4275
          %v4277 = vpop.f32.mrb[0].mxu0
          %4278 = vmatprep.mubr.f32.mxu0 0.0
          %4279 = vmatmul.mubr.f32.gmra.mrb[0].mxu0 %v3943
          %v4280 = vpop.f32.mrb[0].mxu0
          %v4281 = vadd.f32 0.0, %v4280
          %v4282 = vpop.f32.mrb[0].mxu0
          %4283 = vmatprep.mubr.f32.mxu0 0.0
          %4284 = vmatmul.mubr.f32.gmra.mrb[0].mxu0 %v4047
          %v4285 = vpop.f32.mrb[0].mxu0
          %v4286 = vadd.f32 0.0, %v4285
          %v4287 = vpop.f32.mrb[0].mxu0
          %4288 = vdwg.mxu0
          %v4289 = vld [vmem:[%s405] sm:$0xff]
          %v4290 = vld [vmem:[%s405 + $0x8] sm:$0xff]
          %v4291 = vld [vmem:[%s405 + $0x10] sm:$0xff]
          %v4292 = vld [vmem:[%s405 + $0x18] sm:$0xff]
          %v4293 = vld [vmem:[%s405 + $0x20] sm:$0xff]
          %v4294 = vld [vmem:[%s405 + $0x28] sm:$0xff]
          %v4295 = vld [vmem:[%s405 + $0x30] sm:$0xff]
          %v4296 = vld [vmem:[%s405 + $0x38] sm:$0xff]
          %v4297 = vld [vmem:[%s405 + $0x40] sm:$0xff]
          %v4298 = vld [vmem:[%s405 + $0x48] sm:$0xff]
          %v4299 = vld [vmem:[%s405 + $0x50] sm:$0xff]
          %v4300 = vld [vmem:[%s405 + $0x58] sm:$0xff]
          %v4301 = vld [vmem:[%s405 + $0x60] sm:$0xff]
          %v4302 = vld [vmem:[%s405 + $0x68] sm:$0xff]
          %v4303 = vld [vmem:[%s405 + $0x70] sm:$0xff]
          %v4304 = vld [vmem:[%s405 + $0x78] sm:$0xff]
          %v4305 = vld [vmem:[%s405 + $0x80] sm:$0xff]
          %v4306 = vld [vmem:[%s405 + $0x88] sm:$0xff]
          %v4307 = vld [vmem:[%s405 + $0x90] sm:$0xff]
          %v4308 = vld [vmem:[%s405 + $0x98] sm:$0xff]
          %v4309 = vld [vmem:[%s405 + $0xa0] sm:$0xff]
          %v4310 = vld [vmem:[%s405 + $0xa8] sm:$0xff]
          %v4311 = vld [vmem:[%s405 + $0xb0] sm:$0xff]
          %v4312 = vld [vmem:[%s405 + $0xb8] sm:$0xff]
          %v4313 = vld [vmem:[%s405 + $0xc0] sm:$0xff]
          %v4314 = vld [vmem:[%s405 + $0xc8] sm:$0xff]
          %v4315 = vld [vmem:[%s405 + $0xd0] sm:$0xff]
          %v4316 = vld [vmem:[%s405 + $0xd8] sm:$0xff]
          %v4317 = vld [vmem:[%s405 + $0xe0] sm:$0xff]
          %v4318 = vld [vmem:[%s405 + $0xe8] sm:$0xff]
          %v4319 = vld [vmem:[%s405 + $0xf0] sm:$0xff]
          %v4320 = vld [vmem:[%s405 + $0xf8] sm:$0xff]
          %v4321 = vlaneseq
          %v4322 = vand.u32 %v4321, 127
          %4323 = vset.pattern.permute.xlu0 0
          %4324 = vperm.xlu0 %4323, %v4289
          %v4325 = vpop.permute.xlu0 %4324
          %4326 = vset.pattern.permute.xlu0 0
          %4327 = vperm.xlu0 %4326, %v4290
          %v4328 = vpop.permute.xlu0 %4327
          %4329 = vset.pattern.permute.xlu0 0
          %4330 = vperm.xlu0 %4329, %v4291
          %v4331 = vpop.permute.xlu0 %4330
          %4332 = vset.pattern.permute.xlu0 0
          %4333 = vperm.xlu0 %4332, %v4292
          %v4334 = vpop.permute.xlu0 %4333
          %4335 = vset.pattern.permute.xlu0 0
          %4336 = vperm.xlu0 %4335, %v4293
          %v4337 = vpop.permute.xlu0 %4336
          %4338 = vset.pattern.permute.xlu0 0
          %4339 = vperm.xlu0 %4338, %v4294
          %v4340 = vpop.permute.xlu0 %4339
          %4341 = vset.pattern.permute.xlu0 0
          %4342 = vperm.xlu0 %4341, %v4295
          %v4343 = vpop.permute.xlu0 %4342
          %4344 = vset.pattern.permute.xlu0 0
          %4345 = vperm.xlu0 %4344, %v4296
          %v4346 = vpop.permute.xlu0 %4345
          %4347 = vset.pattern.permute.xlu0 0
          %4348 = vperm.xlu0 %4347, %v4297
          %v4349 = vpop.permute.xlu0 %4348
          %4350 = vset.pattern.permute.xlu0 0
          %4351 = vperm.xlu0 %4350, %v4298
          %v4352 = vpop.permute.xlu0 %4351
          %4353 = vset.pattern.permute.xlu0 0
          %4354 = vperm.xlu0 %4353, %v4299
          %v4355 = vpop.permute.xlu0 %4354
          %4356 = vset.pattern.permute.xlu0 0
          %4357 = vperm.xlu0 %4356, %v4300
          %v4358 = vpop.permute.xlu0 %4357
          %4359 = vset.pattern.permute.xlu0 0
          %4360 = vperm.xlu0 %4359, %v4301
          %v4361 = vpop.permute.xlu0 %4360
          %4362 = vset.pattern.permute.xlu0 0
          %4363 = vperm.xlu0 %4362, %v4302
          %v4364 = vpop.permute.xlu0 %4363
          %4365 = vset.pattern.permute.xlu0 0
          %4366 = vperm.xlu0 %4365, %v4303
          %v4367 = vpop.permute.xlu0 %4366
          %4368 = vset.pattern.permute.xlu0 0
          %4369 = vperm.xlu0 %4368, %v4304
          %v4370 = vpop.permute.xlu0 %4369
          %4371 = vset.pattern.permute.xlu0 0
          %4372 = vperm.xlu0 %4371, %v4305
          %v4373 = vpop.permute.xlu0 %4372
          %4374 = vset.pattern.permute.xlu0 0
          %4375 = vperm.xlu0 %4374, %v4306
          %v4376 = vpop.permute.xlu0 %4375
          %4377 = vset.pattern.permute.xlu0 0
          %4378 = vperm.xlu0 %4377, %v4307
          %v4379 = vpop.permute.xlu0 %4378
          %4380 = vset.pattern.permute.xlu0 0
          %4381 = vperm.xlu0 %4380, %v4308
          %v4382 = vpop.permute.xlu0 %4381
          %4383 = vset.pattern.permute.xlu0 0
          %4384 = vperm.xlu0 %4383, %v4309
          %v4385 = vpop.permute.xlu0 %4384
          %4386 = vset.pattern.permute.xlu0 0
          %4387 = vperm.xlu0 %4386, %v4310
          %v4388 = vpop.permute.xlu0 %4387
          %4389 = vset.pattern.permute.xlu0 0
          %4390 = vperm.xlu0 %4389, %v4311
          %v4391 = vpop.permute.xlu0 %4390
          %4392 = vset.pattern.permute.xlu0 0
          %4393 = vperm.xlu0 %4392, %v4312
          %v4394 = vpop.permute.xlu0 %4393
          %4395 = vset.pattern.permute.xlu0 0
          %4396 = vperm.xlu0 %4395, %v4313
          %v4397 = vpop.permute.xlu0 %4396
          %4398 = vset.pattern.permute.xlu0 0
          %4399 = vperm.xlu0 %4398, %v4314
          %v4400 = vpop.permute.xlu0 %4399
          %4401 = vset.pattern.permute.xlu0 0
          %4402 = vperm.xlu0 %4401, %v4315
          %v4403 = vpop.permute.xlu0 %4402
          %4404 = vset.pattern.permute.xlu0 0
          %4405 = vperm.xlu0 %4404, %v4316
          %v4406 = vpop.permute.xlu0 %4405
          %4407 = vset.pattern.permute.xlu0 0
          %4408 = vperm.xlu0 %4407, %v4317
          %v4409 = vpop.permute.xlu0 %4408
          %4410 = vset.pattern.permute.xlu0 0
          %4411 = vperm.xlu0 %4410, %v4318
          %v4412 = vpop.permute.xlu0 %4411
          %4413 = vset.pattern.permute.xlu0 0
          %4414 = vperm.xlu0 %4413, %v4319
          %v4415 = vpop.permute.xlu0 %4414
          %4416 = vset.pattern.permute.xlu0 0
          %4417 = vperm.xlu0 %4416, %v4320
          %v4418 = vpop.permute.xlu0 %4417
          %v4419 = vadd.s32 %v4325, %v4322
          %v4420 = vadd.s32 %v4328, %v4322
          %v4421 = vadd.s32 %v4331, %v4322
          %v4422 = vadd.s32 %v4334, %v4322
          %v4423 = vadd.s32 %v4337, %v4322
          %v4424 = vadd.s32 %v4340, %v4322
          %v4425 = vadd.s32 %v4343, %v4322
          %v4426 = vadd.s32 %v4346, %v4322
          %v4427 = vadd.s32 %v4349, %v4322
          %v4428 = vadd.s32 %v4352, %v4322
          %v4429 = vadd.s32 %v4355, %v4322
          %v4430 = vadd.s32 %v4358, %v4322
          %v4431 = vadd.s32 %v4361, %v4322
          %v4432 = vadd.s32 %v4364, %v4322
          %v4433 = vadd.s32 %v4367, %v4322
          %v4434 = vadd.s32 %v4370, %v4322
          %v4435 = vadd.s32 %v4373, %v4322
          %v4436 = vadd.s32 %v4376, %v4322
          %v4437 = vadd.s32 %v4379, %v4322
          %v4438 = vadd.s32 %v4382, %v4322
          %v4439 = vadd.s32 %v4385, %v4322
          %v4440 = vadd.s32 %v4388, %v4322
          %v4441 = vadd.s32 %v4391, %v4322
          %v4442 = vadd.s32 %v4394, %v4322
          %v4443 = vadd.s32 %v4397, %v4322
          %v4444 = vadd.s32 %v4400, %v4322
          %v4445 = vadd.s32 %v4403, %v4322
          %v4446 = vadd.s32 %v4406, %v4322
          %v4447 = vadd.s32 %v4409, %v4322
          %v4448 = vadd.s32 %v4412, %v4322
          %v4449 = vadd.s32 %v4415, %v4322
          %v4450 = vadd.s32 %v4418, %v4322
          %vm4451 = vcmp.ge.s32.totalorder %v4419, 256
          %vm4452 = vcmp.ge.s32.totalorder %v4420, 256
          %vm4453 = vcmp.ge.s32.totalorder %v4421, 256
          %vm4454 = vcmp.ge.s32.totalorder %v4422, 256
          %vm4455 = vcmp.ge.s32.totalorder %v4423, 256
          %vm4456 = vcmp.ge.s32.totalorder %v4424, 256
          %vm4457 = vcmp.ge.s32.totalorder %v4425, 256
          %vm4458 = vcmp.ge.s32.totalorder %v4426, 256
          %vm4459 = vcmp.ge.s32.totalorder %v4427, 256
          %vm4460 = vcmp.ge.s32.totalorder %v4428, 256
          %vm4461 = vcmp.ge.s32.totalorder %v4429, 256
          %vm4462 = vcmp.ge.s32.totalorder %v4430, 256
          %vm4463 = vcmp.ge.s32.totalorder %v4431, 256
          %vm4464 = vcmp.ge.s32.totalorder %v4432, 256
          %vm4465 = vcmp.ge.s32.totalorder %v4433, 256
          %vm4466 = vcmp.ge.s32.totalorder %v4434, 256
          %vm4467 = vcmp.ge.s32.totalorder %v4435, 256
          %vm4468 = vcmp.ge.s32.totalorder %v4436, 256
          %vm4469 = vcmp.ge.s32.totalorder %v4437, 256
          %vm4470 = vcmp.ge.s32.totalorder %v4438, 256
          %vm4471 = vcmp.ge.s32.totalorder %v4439, 256
          %vm4472 = vcmp.ge.s32.totalorder %v4440, 256
          %vm4473 = vcmp.ge.s32.totalorder %v4441, 256
          %vm4474 = vcmp.ge.s32.totalorder %v4442, 256
          %vm4475 = vcmp.ge.s32.totalorder %v4443, 256
          %vm4476 = vcmp.ge.s32.totalorder %v4444, 256
          %vm4477 = vcmp.ge.s32.totalorder %v4445, 256
          %vm4478 = vcmp.ge.s32.totalorder %v4446, 256
          %vm4479 = vcmp.ge.s32.totalorder %v4447, 256
          %vm4480 = vcmp.ge.s32.totalorder %v4448, 256
          %vm4481 = vcmp.ge.s32.totalorder %v4449, 256
          %vm4482 = vcmp.ge.s32.totalorder %v4450, 256
          %v4483 = vsub.s32 %v4419, 256
          %v4484 = vsub.s32 %v4420, 256
          %v4485 = vsub.s32 %v4421, 256
          %v4486 = vsub.s32 %v4422, 256
          %v4487 = vsub.s32 %v4423, 256
          %v4488 = vsub.s32 %v4424, 256
          %v4489 = vsub.s32 %v4425, 256
          %v4490 = vsub.s32 %v4426, 256
          %v4491 = vsub.s32 %v4427, 256
          %v4492 = vsub.s32 %v4428, 256
          %v4493 = vsub.s32 %v4429, 256
          %v4494 = vsub.s32 %v4430, 256
          %v4495 = vsub.s32 %v4431, 256
          %v4496 = vsub.s32 %v4432, 256
          %v4497 = vsub.s32 %v4433, 256
          %v4498 = vsub.s32 %v4434, 256
          %v4499 = vsub.s32 %v4435, 256
          %v4500 = vsub.s32 %v4436, 256
          %v4501 = vsub.s32 %v4437, 256
          %v4502 = vsub.s32 %v4438, 256
          %v4503 = vsub.s32 %v4439, 256
          %v4504 = vsub.s32 %v4440, 256
          %v4505 = vsub.s32 %v4441, 256
          %v4506 = vsub.s32 %v4442, 256
          %v4507 = vsub.s32 %v4443, 256
          %v4508 = vsub.s32 %v4444, 256
          %v4509 = vsub.s32 %v4445, 256
          %v4510 = vsub.s32 %v4446, 256
          %v4511 = vsub.s32 %v4447, 256
          %v4512 = vsub.s32 %v4448, 256
          %v4513 = vsub.s32 %v4449, 256
          %v4514 = vsub.s32 %v4450, 256
          %v4515 = vsel %vm4451, %v4483, %v4419
          %v4516 = vsel %vm4452, %v4484, %v4420
          %v4517 = vsel %vm4453, %v4485, %v4421
          %v4518 = vsel %vm4454, %v4486, %v4422
          %v4519 = vsel %vm4455, %v4487, %v4423
          %v4520 = vsel %vm4456, %v4488, %v4424
          %v4521 = vsel %vm4457, %v4489, %v4425
          %v4522 = vsel %vm4458, %v4490, %v4426
          %v4523 = vsel %vm4459, %v4491, %v4427
          %v4524 = vsel %vm4460, %v4492, %v4428
          %v4525 = vsel %vm4461, %v4493, %v4429
          %v4526 = vsel %vm4462, %v4494, %v4430
          %v4527 = vsel %vm4463, %v4495, %v4431
          %v4528 = vsel %vm4464, %v4496, %v4432
          %v4529 = vsel %vm4465, %v4497, %v4433
          %v4530 = vsel %vm4466, %v4498, %v4434
          %v4531 = vsel %vm4467, %v4499, %v4435
          %v4532 = vsel %vm4468, %v4500, %v4436
          %v4533 = vsel %vm4469, %v4501, %v4437
          %v4534 = vsel %vm4470, %v4502, %v4438
          %v4535 = vsel %vm4471, %v4503, %v4439
          %v4536 = vsel %vm4472, %v4504, %v4440
          %v4537 = vsel %vm4473, %v4505, %v4441
          %v4538 = vsel %vm4474, %v4506, %v4442
          %v4539 = vsel %vm4475, %v4507, %v4443
          %v4540 = vsel %vm4476, %v4508, %v4444
          %v4541 = vsel %vm4477, %v4509, %v4445
          %v4542 = vsel %vm4478, %v4510, %v4446
          %v4543 = vsel %vm4479, %v4511, %v4447
          %v4544 = vsel %vm4480, %v4512, %v4448
          %v4545 = vsel %vm4481, %v4513, %v4449
          %v4546 = vsel %vm4482, %v4514, %v4450
          %v4547 = vld [vmem:[%s426] sm:$0xff]
          %v4548 = vld [vmem:[%s426 + $0x8] sm:$0xff]
          %v4549 = vld [vmem:[%s426 + $0x10] sm:$0xff]
          %v4550 = vld [vmem:[%s426 + $0x18] sm:$0xff]
          %v4551 = vld [vmem:[%s426 + $0x20] sm:$0xff]
          %v4552 = vld [vmem:[%s426 + $0x28] sm:$0xff]
          %v4553 = vld [vmem:[%s426 + $0x30] sm:$0xff]
          %v4554 = vld [vmem:[%s426 + $0x38] sm:$0xff]
          %v4555 = vld [vmem:[%s426 + $0x40] sm:$0xff]
          %v4556 = vld [vmem:[%s426 + $0x48] sm:$0xff]
          %v4557 = vld [vmem:[%s426 + $0x50] sm:$0xff]
          %v4558 = vld [vmem:[%s426 + $0x58] sm:$0xff]
          %v4559 = vld [vmem:[%s426 + $0x60] sm:$0xff]
          %v4560 = vld [vmem:[%s426 + $0x68] sm:$0xff]
          %v4561 = vld [vmem:[%s426 + $0x70] sm:$0xff]
          %v4562 = vld [vmem:[%s426 + $0x78] sm:$0xff]
          %v4563 = vld [vmem:[%s426 + $0x80] sm:$0xff]
          %v4564 = vld [vmem:[%s426 + $0x88] sm:$0xff]
          %v4565 = vld [vmem:[%s426 + $0x90] sm:$0xff]
          %v4566 = vld [vmem:[%s426 + $0x98] sm:$0xff]
          %v4567 = vld [vmem:[%s426 + $0xa0] sm:$0xff]
          %v4568 = vld [vmem:[%s426 + $0xa8] sm:$0xff]
          %v4569 = vld [vmem:[%s426 + $0xb0] sm:$0xff]
          %v4570 = vld [vmem:[%s426 + $0xb8] sm:$0xff]
          %v4571 = vld [vmem:[%s426 + $0xc0] sm:$0xff]
          %v4572 = vld [vmem:[%s426 + $0xc8] sm:$0xff]
          %v4573 = vld [vmem:[%s426 + $0xd0] sm:$0xff]
          %v4574 = vld [vmem:[%s426 + $0xd8] sm:$0xff]
          %v4575 = vld [vmem:[%s426 + $0xe0] sm:$0xff]
          %v4576 = vld [vmem:[%s426 + $0xe8] sm:$0xff]
          %v4577 = vld [vmem:[%s426 + $0xf0] sm:$0xff]
          %v4578 = vld [vmem:[%s426 + $0xf8] sm:$0xff]
          %v4579 = vld [vmem:[%s426 + $0x100] sm:$0xff]
          %v4580 = vld [vmem:[%s426 + $0x108] sm:$0xff]
          %v4581 = vld [vmem:[%s426 + $0x110] sm:$0xff]
          %v4582 = vld [vmem:[%s426 + $0x118] sm:$0xff]
          %v4583 = vld [vmem:[%s426 + $0x120] sm:$0xff]
          %v4584 = vld [vmem:[%s426 + $0x128] sm:$0xff]
          %v4585 = vld [vmem:[%s426 + $0x130] sm:$0xff]
          %v4586 = vld [vmem:[%s426 + $0x138] sm:$0xff]
          %v4587 = vld [vmem:[%s426 + $0x140] sm:$0xff]
          %v4588 = vld [vmem:[%s426 + $0x148] sm:$0xff]
          %v4589 = vld [vmem:[%s426 + $0x150] sm:$0xff]
          %v4590 = vld [vmem:[%s426 + $0x158] sm:$0xff]
          %v4591 = vld [vmem:[%s426 + $0x160] sm:$0xff]
          %v4592 = vld [vmem:[%s426 + $0x168] sm:$0xff]
          %v4593 = vld [vmem:[%s426 + $0x170] sm:$0xff]
          %v4594 = vld [vmem:[%s426 + $0x178] sm:$0xff]
          %v4595 = vld [vmem:[%s426 + $0x180] sm:$0xff]
          %v4596 = vld [vmem:[%s426 + $0x188] sm:$0xff]
          %v4597 = vld [vmem:[%s426 + $0x190] sm:$0xff]
          %v4598 = vld [vmem:[%s426 + $0x198] sm:$0xff]
          %v4599 = vld [vmem:[%s426 + $0x1a0] sm:$0xff]
          %v4600 = vld [vmem:[%s426 + $0x1a8] sm:$0xff]
          %v4601 = vld [vmem:[%s426 + $0x1b0] sm:$0xff]
          %v4602 = vld [vmem:[%s426 + $0x1b8] sm:$0xff]
          %v4603 = vld [vmem:[%s426 + $0x1c0] sm:$0xff]
          %v4604 = vld [vmem:[%s426 + $0x1c8] sm:$0xff]
          %v4605 = vld [vmem:[%s426 + $0x1d0] sm:$0xff]
          %v4606 = vld [vmem:[%s426 + $0x1d8] sm:$0xff]
          %v4607 = vld [vmem:[%s426 + $0x1e0] sm:$0xff]
          %v4608 = vld [vmem:[%s426 + $0x1e8] sm:$0xff]
          %v4609 = vld [vmem:[%s426 + $0x1f0] sm:$0xff]
          %v4610 = vld [vmem:[%s426 + $0x1f8] sm:$0xff]
          %4611 = vrot.lane.b32.xlu0 %v4547, 1
          %v4612 = vpop.permute.xlu0 %4611
          %4613 = vrot.lane.b32.xlu0 %v4549, 1
          %v4614 = vpop.permute.xlu0 %4613
          %4615 = vrot.lane.b32.xlu0 %v4551, 1
          %v4616 = vpop.permute.xlu0 %4615
          %4617 = vrot.lane.b32.xlu0 %v4553, 1
          %v4618 = vpop.permute.xlu0 %4617
          %4619 = vrot.lane.b32.xlu0 %v4555, 1
          %v4620 = vpop.permute.xlu0 %4619
          %4621 = vrot.lane.b32.xlu0 %v4557, 1
          %v4622 = vpop.permute.xlu0 %4621
          %4623 = vrot.lane.b32.xlu0 %v4559, 1
          %v4624 = vpop.permute.xlu0 %4623
          %4625 = vrot.lane.b32.xlu0 %v4561, 1
          %v4626 = vpop.permute.xlu0 %4625
          %4627 = vrot.lane.b32.xlu0 %v4563, 1
          %v4628 = vpop.permute.xlu0 %4627
          %4629 = vrot.lane.b32.xlu0 %v4565, 1
          %v4630 = vpop.permute.xlu0 %4629
          %4631 = vrot.lane.b32.xlu0 %v4567, 1
          %v4632 = vpop.permute.xlu0 %4631
          %4633 = vrot.lane.b32.xlu0 %v4569, 1
          %v4634 = vpop.permute.xlu0 %4633
          %4635 = vrot.lane.b32.xlu0 %v4571, 1
          %v4636 = vpop.permute.xlu0 %4635
          %4637 = vrot.lane.b32.xlu0 %v4573, 1
          %v4638 = vpop.permute.xlu0 %4637
          %4639 = vrot.lane.b32.xlu0 %v4575, 1
          %v4640 = vpop.permute.xlu0 %4639
          %4641 = vrot.lane.b32.xlu0 %v4577, 1
          %v4642 = vpop.permute.xlu0 %4641
          %4643 = vrot.lane.b32.xlu0 %v4579, 1
          %v4644 = vpop.permute.xlu0 %4643
          %4645 = vrot.lane.b32.xlu0 %v4581, 1
          %v4646 = vpop.permute.xlu0 %4645
          %4647 = vrot.lane.b32.xlu0 %v4583, 1
          %v4648 = vpop.permute.xlu0 %4647
          %4649 = vrot.lane.b32.xlu0 %v4585, 1
          %v4650 = vpop.permute.xlu0 %4649
          %4651 = vrot.lane.b32.xlu0 %v4587, 1
          %v4652 = vpop.permute.xlu0 %4651
          %4653 = vrot.lane.b32.xlu0 %v4589, 1
          %v4654 = vpop.permute.xlu0 %4653
          %4655 = vrot.lane.b32.xlu0 %v4591, 1
          %v4656 = vpop.permute.xlu0 %4655
          %4657 = vrot.lane.b32.xlu0 %v4593, 1
          %v4658 = vpop.permute.xlu0 %4657
          %4659 = vrot.lane.b32.xlu0 %v4595, 1
          %v4660 = vpop.permute.xlu0 %4659
          %4661 = vrot.lane.b32.xlu0 %v4597, 1
          %v4662 = vpop.permute.xlu0 %4661
          %4663 = vrot.lane.b32.xlu0 %v4599, 1
          %v4664 = vpop.permute.xlu0 %4663
          %4665 = vrot.lane.b32.xlu0 %v4601, 1
          %v4666 = vpop.permute.xlu0 %4665
          %4667 = vrot.lane.b32.xlu0 %v4603, 1
          %v4668 = vpop.permute.xlu0 %4667
          %4669 = vrot.lane.b32.xlu0 %v4605, 1
          %v4670 = vpop.permute.xlu0 %4669
          %4671 = vrot.lane.b32.xlu0 %v4607, 1
          %v4672 = vpop.permute.xlu0 %4671
          %4673 = vrot.lane.b32.xlu0 %v4609, 1
          %v4674 = vpop.permute.xlu0 %4673
          %4675 = vrot.lane.b32.xlu0 %v4548, 1
          %v4676 = vpop.permute.xlu0 %4675
          %4677 = vrot.lane.b32.xlu0 %v4550, 1
          %v4678 = vpop.permute.xlu0 %4677
          %4679 = vrot.lane.b32.xlu0 %v4552, 1
          %v4680 = vpop.permute.xlu0 %4679
          %4681 = vrot.lane.b32.xlu0 %v4554, 1
          %v4682 = vpop.permute.xlu0 %4681
          %4683 = vrot.lane.b32.xlu0 %v4556, 1
          %v4684 = vpop.permute.xlu0 %4683
          %4685 = vrot.lane.b32.xlu0 %v4558, 1
          %v4686 = vpop.permute.xlu0 %4685
          %4687 = vrot.lane.b32.xlu0 %v4560, 1
          %v4688 = vpop.permute.xlu0 %4687
          %4689 = vrot.lane.b32.xlu0 %v4562, 1
          %v4690 = vpop.permute.xlu0 %4689
          %4691 = vrot.lane.b32.xlu0 %v4564, 1
          %v4692 = vpop.permute.xlu0 %4691
          %4693 = vrot.lane.b32.xlu0 %v4566, 1
          %v4694 = vpop.permute.xlu0 %4693
          %4695 = vrot.lane.b32.xlu0 %v4568, 1
          %v4696 = vpop.permute.xlu0 %4695
          %4697 = vrot.lane.b32.xlu0 %v4570, 1
          %v4698 = vpop.permute.xlu0 %4697
          %4699 = vrot.lane.b32.xlu0 %v4572, 1
          %v4700 = vpop.permute.xlu0 %4699
          %4701 = vrot.lane.b32.xlu0 %v4574, 1
          %v4702 = vpop.permute.xlu0 %4701
          %4703 = vrot.lane.b32.xlu0 %v4576, 1
          %v4704 = vpop.permute.xlu0 %4703
          %4705 = vrot.lane.b32.xlu0 %v4578, 1
          %v4706 = vpop.permute.xlu0 %4705
          %4707 = vrot.lane.b32.xlu0 %v4580, 1
          %v4708 = vpop.permute.xlu0 %4707
          %4709 = vrot.lane.b32.xlu0 %v4582, 1
          %v4710 = vpop.permute.xlu0 %4709
          %4711 = vrot.lane.b32.xlu0 %v4584, 1
          %v4712 = vpop.permute.xlu0 %4711
          %4713 = vrot.lane.b32.xlu0 %v4586, 1
          %v4714 = vpop.permute.xlu0 %4713
          %4715 = vrot.lane.b32.xlu0 %v4588, 1
          %v4716 = vpop.permute.xlu0 %4715
          %4717 = vrot.lane.b32.xlu0 %v4590, 1
          %v4718 = vpop.permute.xlu0 %4717
          %4719 = vrot.lane.b32.xlu0 %v4592, 1
          %v4720 = vpop.permute.xlu0 %4719
          %4721 = vrot.lane.b32.xlu0 %v4594, 1
          %v4722 = vpop.permute.xlu0 %4721
          %4723 = vrot.lane.b32.xlu0 %v4596, 1
          %v4724 = vpop.permute.xlu0 %4723
          %4725 = vrot.lane.b32.xlu0 %v4598, 1
          %v4726 = vpop.permute.xlu0 %4725
          %4727 = vrot.lane.b32.xlu0 %v4600, 1
          %v4728 = vpop.permute.xlu0 %4727
          %4729 = vrot.lane.b32.xlu0 %v4602, 1
          %v4730 = vpop.permute.xlu0 %4729
          %4731 = vrot.lane.b32.xlu0 %v4604, 1
          %v4732 = vpop.permute.xlu0 %4731
          %4733 = vrot.lane.b32.xlu0 %v4606, 1
          %v4734 = vpop.permute.xlu0 %4733
          %4735 = vrot.lane.b32.xlu0 %v4608, 1
          %v4736 = vpop.permute.xlu0 %4735
          %4737 = vrot.lane.b32.xlu0 %v4610, 1
          %v4738 = vpop.permute.xlu0 %4737
          %vm4739 = vcmp.lt.s32.totalorder %v4322, 1
          %v4740 = vsel %vm4739, %v4676, %v4612
          %v4741 = vsel %vm4739, %v4678, %v4614
          %v4742 = vsel %vm4739, %v4680, %v4616
          %v4743 = vsel %vm4739, %v4682, %v4618
          %v4744 = vsel %vm4739, %v4684, %v4620
          %v4745 = vsel %vm4739, %v4686, %v4622
          %v4746 = vsel %vm4739, %v4688, %v4624
          %v4747 = vsel %vm4739, %v4690, %v4626
          %v4748 = vsel %vm4739, %v4692, %v4628
          %v4749 = vsel %vm4739, %v4694, %v4630
          %v4750 = vsel %vm4739, %v4696, %v4632
          %v4751 = vsel %vm4739, %v4698, %v4634
          %v4752 = vsel %vm4739, %v4700, %v4636
          %v4753 = vsel %vm4739, %v4702, %v4638
          %v4754 = vsel %vm4739, %v4704, %v4640
          %v4755 = vsel %vm4739, %v4706, %v4642
          %v4756 = vsel %vm4739, %v4708, %v4644
          %v4757 = vsel %vm4739, %v4710, %v4646
          %v4758 = vsel %vm4739, %v4712, %v4648
          %v4759 = vsel %vm4739, %v4714, %v4650
          %v4760 = vsel %vm4739, %v4716, %v4652
          %v4761 = vsel %vm4739, %v4718, %v4654
          %v4762 = vsel %vm4739, %v4720, %v4656
          %v4763 = vsel %vm4739, %v4722, %v4658
          %v4764 = vsel %vm4739, %v4724, %v4660
          %v4765 = vsel %vm4739, %v4726, %v4662
          %v4766 = vsel %vm4739, %v4728, %v4664
          %v4767 = vsel %vm4739, %v4730, %v4666
          %v4768 = vsel %vm4739, %v4732, %v4668
          %v4769 = vsel %vm4739, %v4734, %v4670
          %v4770 = vsel %vm4739, %v4736, %v4672
          %v4771 = vsel %vm4739, %v4738, %v4674
          %vm4772 = vcmp.ge.s32.totalorder %v4515, 1
          %vm4773 = vcmp.ge.s32.totalorder %v4516, 1
          %vm4774 = vcmp.ge.s32.totalorder %v4517, 1
          %vm4775 = vcmp.ge.s32.totalorder %v4518, 1
          %vm4776 = vcmp.ge.s32.totalorder %v4519, 1
          %vm4777 = vcmp.ge.s32.totalorder %v4520, 1
          %vm4778 = vcmp.ge.s32.totalorder %v4521, 1
          %vm4779 = vcmp.ge.s32.totalorder %v4522, 1
          %vm4780 = vcmp.ge.s32.totalorder %v4523, 1
          %vm4781 = vcmp.ge.s32.totalorder %v4524, 1
          %vm4782 = vcmp.ge.s32.totalorder %v4525, 1
          %vm4783 = vcmp.ge.s32.totalorder %v4526, 1
          %vm4784 = vcmp.ge.s32.totalorder %v4527, 1
          %vm4785 = vcmp.ge.s32.totalorder %v4528, 1
          %vm4786 = vcmp.ge.s32.totalorder %v4529, 1
          %vm4787 = vcmp.ge.s32.totalorder %v4530, 1
          %vm4788 = vcmp.ge.s32.totalorder %v4531, 1
          %vm4789 = vcmp.ge.s32.totalorder %v4532, 1
          %vm4790 = vcmp.ge.s32.totalorder %v4533, 1
          %vm4791 = vcmp.ge.s32.totalorder %v4534, 1
          %vm4792 = vcmp.ge.s32.totalorder %v4535, 1
          %vm4793 = vcmp.ge.s32.totalorder %v4536, 1
          %vm4794 = vcmp.ge.s32.totalorder %v4537, 1
          %vm4795 = vcmp.ge.s32.totalorder %v4538, 1
          %vm4796 = vcmp.ge.s32.totalorder %v4539, 1
          %vm4797 = vcmp.ge.s32.totalorder %v4540, 1
          %vm4798 = vcmp.ge.s32.totalorder %v4541, 1
          %vm4799 = vcmp.ge.s32.totalorder %v4542, 1
          %vm4800 = vcmp.ge.s32.totalorder %v4543, 1
          %vm4801 = vcmp.ge.s32.totalorder %v4544, 1
          %vm4802 = vcmp.ge.s32.totalorder %v4545, 1
          %vm4803 = vcmp.ge.s32.totalorder %v4546, 1
          %v4804 = vsel %vm4772, %v4740, 0.0
          %v4805 = vsel %vm4773, %v4741, 0.0
          %v4806 = vsel %vm4774, %v4742, 0.0
          %v4807 = vsel %vm4775, %v4743, 0.0
          %v4808 = vsel %vm4776, %v4744, 0.0
          %v4809 = vsel %vm4777, %v4745, 0.0
          %v4810 = vsel %vm4778, %v4746, 0.0
          %v4811 = vsel %vm4779, %v4747, 0.0
          %v4812 = vsel %vm4780, %v4748, 0.0
          %v4813 = vsel %vm4781, %v4749, 0.0
          %v4814 = vsel %vm4782, %v4750, 0.0
          %v4815 = vsel %vm4783, %v4751, 0.0
          %v4816 = vsel %vm4784, %v4752, 0.0
          %v4817 = vsel %vm4785, %v4753, 0.0
          %v4818 = vsel %vm4786, %v4754, 0.0
          %v4819 = vsel %vm4787, %v4755, 0.0
          %v4820 = vsel %vm4788, %v4756, 0.0
          %v4821 = vsel %vm4789, %v4757, 0.0
          %v4822 = vsel %vm4790, %v4758, 0.0
          %v4823 = vsel %vm4791, %v4759, 0.0
          %v4824 = vsel %vm4792, %v4760, 0.0
          %v4825 = vsel %vm4793, %v4761, 0.0
          %v4826 = vsel %vm4794, %v4762, 0.0
          %v4827 = vsel %vm4795, %v4763, 0.0
          %v4828 = vsel %vm4796, %v4764, 0.0
          %v4829 = vsel %vm4797, %v4765, 0.0
          %v4830 = vsel %vm4798, %v4766, 0.0
          %v4831 = vsel %vm4799, %v4767, 0.0
          %v4832 = vsel %vm4800, %v4768, 0.0
          %v4833 = vsel %vm4801, %v4769, 0.0
          %v4834 = vsel %vm4802, %v4770, 0.0
          %v4835 = vsel %vm4803, %v4771, 0.0
          %4837 = vset.pattern.permute.xlu0 0
          %4838 = vperm.xlu0 %4837, %v4131
          %v4839 = vpop.permute.xlu0 %4838
          %4842 = vset.pattern.permute.xlu0 0
          %4843 = vperm.xlu0 %4842, %v4136
          %v4844 = vpop.permute.xlu0 %4843
          %4847 = vset.pattern.permute.xlu0 0
          %4848 = vperm.xlu0 %4847, %v4141
          %v4849 = vpop.permute.xlu0 %4848
          %4852 = vset.pattern.permute.xlu0 0
          %4853 = vperm.xlu0 %4852, %v4146
          %v4854 = vpop.permute.xlu0 %4853
          %4857 = vset.pattern.permute.xlu0 0
          %4858 = vperm.xlu0 %4857, %v4151
          %v4859 = vpop.permute.xlu0 %4858
          %4862 = vset.pattern.permute.xlu0 0
          %4863 = vperm.xlu0 %4862, %v4156
          %v4864 = vpop.permute.xlu0 %4863
          %4867 = vset.pattern.permute.xlu0 0
          %4868 = vperm.xlu0 %4867, %v4161
          %v4869 = vpop.permute.xlu0 %4868
          %4872 = vset.pattern.permute.xlu0 0
          %4873 = vperm.xlu0 %4872, %v4166
          %v4874 = vpop.permute.xlu0 %4873
          %4877 = vset.pattern.permute.xlu0 0
          %4878 = vperm.xlu0 %4877, %v4171
          %v4879 = vpop.permute.xlu0 %4878
          %4882 = vset.pattern.permute.xlu0 0
          %4883 = vperm.xlu0 %4882, %v4176
          %v4884 = vpop.permute.xlu0 %4883
          %4887 = vset.pattern.permute.xlu0 0
          %4888 = vperm.xlu0 %4887, %v4181
          %v4889 = vpop.permute.xlu0 %4888
          %4892 = vset.pattern.permute.xlu0 0
          %4893 = vperm.xlu0 %4892, %v4186
          %v4894 = vpop.permute.xlu0 %4893
          %4897 = vset.pattern.permute.xlu0 0
          %4898 = vperm.xlu0 %4897, %v4191
          %v4899 = vpop.permute.xlu0 %4898
          %4902 = vset.pattern.permute.xlu0 0
          %4903 = vperm.xlu0 %4902, %v4196
          %v4904 = vpop.permute.xlu0 %4903
          %4907 = vset.pattern.permute.xlu0 0
          %4908 = vperm.xlu0 %4907, %v4201
          %v4909 = vpop.permute.xlu0 %4908
          %4912 = vset.pattern.permute.xlu0 0
          %4913 = vperm.xlu0 %4912, %v4206
          %v4914 = vpop.permute.xlu0 %4913
          %4917 = vset.pattern.permute.xlu0 0
          %4918 = vperm.xlu0 %4917, %v4211
          %v4919 = vpop.permute.xlu0 %4918
          %4922 = vset.pattern.permute.xlu0 0
          %4923 = vperm.xlu0 %4922, %v4216
          %v4924 = vpop.permute.xlu0 %4923
          %4927 = vset.pattern.permute.xlu0 0
          %4928 = vperm.xlu0 %4927, %v4221
          %v4929 = vpop.permute.xlu0 %4928
          %4932 = vset.pattern.permute.xlu0 0
          %4933 = vperm.xlu0 %4932, %v4226
          %v4934 = vpop.permute.xlu0 %4933
          %4937 = vset.pattern.permute.xlu0 0
          %4938 = vperm.xlu0 %4937, %v4231
          %v4939 = vpop.permute.xlu0 %4938
          %4942 = vset.pattern.permute.xlu0 0
          %4943 = vperm.xlu0 %4942, %v4236
          %v4944 = vpop.permute.xlu0 %4943
          %4947 = vset.pattern.permute.xlu0 0
          %4948 = vperm.xlu0 %4947, %v4241
          %v4949 = vpop.permute.xlu0 %4948
          %4952 = vset.pattern.permute.xlu0 0
          %4953 = vperm.xlu0 %4952, %v4246
          %v4954 = vpop.permute.xlu0 %4953
          %4957 = vset.pattern.permute.xlu0 0
          %4958 = vperm.xlu0 %4957, %v4251
          %v4959 = vpop.permute.xlu0 %4958
          %4962 = vset.pattern.permute.xlu0 0
          %4963 = vperm.xlu0 %4962, %v4256
          %v4964 = vpop.permute.xlu0 %4963
          %4967 = vset.pattern.permute.xlu0 0
          %4968 = vperm.xlu0 %4967, %v4261
          %v4969 = vpop.permute.xlu0 %4968
          %4972 = vset.pattern.permute.xlu0 0
          %4973 = vperm.xlu0 %4972, %v4266
          %v4974 = vpop.permute.xlu0 %4973
          %4977 = vset.pattern.permute.xlu0 0
          %4978 = vperm.xlu0 %4977, %v4271
          %v4979 = vpop.permute.xlu0 %4978
          %4982 = vset.pattern.permute.xlu0 0
          %4983 = vperm.xlu0 %4982, %v4276
          %v4984 = vpop.permute.xlu0 %4983
          %4987 = vset.pattern.permute.xlu0 0
          %4988 = vperm.xlu0 %4987, %v4281
          %v4989 = vpop.permute.xlu0 %4988
          %4992 = vset.pattern.permute.xlu0 0
          %4993 = vperm.xlu0 %4992, %v4286
          %v4994 = vpop.permute.xlu0 %4993
          %v4996 = vmul.f32 %v4804, %v4839
          %v4997 = vmul.f32 %v4805, %v4844
          %v4998 = vmul.f32 %v4806, %v4849
          %v4999 = vmul.f32 %v4807, %v4854
          %v5000 = vmul.f32 %v4808, %v4859
          %v5001 = vmul.f32 %v4809, %v4864
          %v5002 = vmul.f32 %v4810, %v4869
          %v5003 = vmul.f32 %v4811, %v4874
          %v5004 = vmul.f32 %v4812, %v4879
          %v5005 = vmul.f32 %v4813, %v4884
          %v5006 = vmul.f32 %v4814, %v4889
          %v5007 = vmul.f32 %v4815, %v4894
          %v5008 = vmul.f32 %v4816, %v4899
          %v5009 = vmul.f32 %v4817, %v4904
          %v5010 = vmul.f32 %v4818, %v4909
          %v5011 = vmul.f32 %v4819, %v4914
          %v5012 = vmul.f32 %v4820, %v4919
          %v5013 = vmul.f32 %v4821, %v4924
          %v5014 = vmul.f32 %v4822, %v4929
          %v5015 = vmul.f32 %v4823, %v4934
          %v5016 = vmul.f32 %v4824, %v4939
          %v5017 = vmul.f32 %v4825, %v4944
          %v5018 = vmul.f32 %v4826, %v4949
          %v5019 = vmul.f32 %v4827, %v4954
          %v5020 = vmul.f32 %v4828, %v4959
          %v5021 = vmul.f32 %v4829, %v4964
          %v5022 = vmul.f32 %v4830, %v4969
          %v5023 = vmul.f32 %v4831, %v4974
          %v5024 = vmul.f32 %v4832, %v4979
          %v5025 = vmul.f32 %v4833, %v4984
          %v5026 = vmul.f32 %v4834, %v4989
          %v5027 = vmul.f32 %v4835, %v4994
          %v5028 = vadd.f32 %v4996, 0.0
          %v5029 = vadd.f32 %v4997, 0.0
          %v5030 = vadd.f32 %v4998, 0.0
          %v5031 = vadd.f32 %v4999, 0.0
          %v5032 = vadd.f32 %v5000, 0.0
          %v5033 = vadd.f32 %v5001, 0.0
          %v5034 = vadd.f32 %v5002, 0.0
          %v5035 = vadd.f32 %v5003, 0.0
          %v5036 = vadd.f32 %v5004, 0.0
          %v5037 = vadd.f32 %v5005, 0.0
          %v5038 = vadd.f32 %v5006, 0.0
          %v5039 = vadd.f32 %v5007, 0.0
          %v5040 = vadd.f32 %v5008, 0.0
          %v5041 = vadd.f32 %v5009, 0.0
          %v5042 = vadd.f32 %v5010, 0.0
          %v5043 = vadd.f32 %v5011, 0.0
          %v5044 = vadd.f32 %v5012, 0.0
          %v5045 = vadd.f32 %v5013, 0.0
          %v5046 = vadd.f32 %v5014, 0.0
          %v5047 = vadd.f32 %v5015, 0.0
          %v5048 = vadd.f32 %v5016, 0.0
          %v5049 = vadd.f32 %v5017, 0.0
          %v5050 = vadd.f32 %v5018, 0.0
          %v5051 = vadd.f32 %v5019, 0.0
          %v5052 = vadd.f32 %v5020, 0.0
          %v5053 = vadd.f32 %v5021, 0.0
          %v5054 = vadd.f32 %v5022, 0.0
          %v5055 = vadd.f32 %v5023, 0.0
          %v5056 = vadd.f32 %v5024, 0.0
          %v5057 = vadd.f32 %v5025, 0.0
          %v5058 = vadd.f32 %v5026, 0.0
          %v5059 = vadd.f32 %v5027, 0.0
          %5060 = vset.pattern.permute.xlu0 1
          %5061 = vperm.xlu0 %5060, %v4131
          %v5062 = vpop.permute.xlu0 %5061
          %5064 = vset.pattern.permute.xlu0 1
          %5065 = vperm.xlu0 %5064, %v4136
          %v5066 = vpop.permute.xlu0 %5065
          %5068 = vset.pattern.permute.xlu0 1
          %5069 = vperm.xlu0 %5068, %v4141
          %v5070 = vpop.permute.xlu0 %5069
          %5072 = vset.pattern.permute.xlu0 1
          %5073 = vperm.xlu0 %5072, %v4146
          %v5074 = vpop.permute.xlu0 %5073
          %5076 = vset.pattern.permute.xlu0 1
          %5077 = vperm.xlu0 %5076, %v4151
          %v5078 = vpop.permute.xlu0 %5077
          %5080 = vset.pattern.permute.xlu0 1
          %5081 = vperm.xlu0 %5080, %v4156
          %v5082 = vpop.permute.xlu0 %5081
          %5084 = vset.pattern.permute.xlu0 1
          %5085 = vperm.xlu0 %5084, %v4161
          %v5086 = vpop.permute.xlu0 %5085
          %5088 = vset.pattern.permute.xlu0 1
          %5089 = vperm.xlu0 %5088, %v4166
          %v5090 = vpop.permute.xlu0 %5089
          %5092 = vset.pattern.permute.xlu0 1
          %5093 = vperm.xlu0 %5092, %v4171
          %v5094 = vpop.permute.xlu0 %5093
          %5096 = vset.pattern.permute.xlu0 1
          %5097 = vperm.xlu0 %5096, %v4176
          %v5098 = vpop.permute.xlu0 %5097
          %5100 = vset.pattern.permute.xlu0 1
          %5101 = vperm.xlu0 %5100, %v4181
          %v5102 = vpop.permute.xlu0 %5101
          %5104 = vset.pattern.permute.xlu0 1
          %5105 = vperm.xlu0 %5104, %v4186
          %v5106 = vpop.permute.xlu0 %5105
          %5108 = vset.pattern.permute.xlu0 1
          %5109 = vperm.xlu0 %5108, %v4191
          %v5110 = vpop.permute.xlu0 %5109
          %5112 = vset.pattern.permute.xlu0 1
          %5113 = vperm.xlu0 %5112, %v4196
          %v5114 = vpop.permute.xlu0 %5113
          %5116 = vset.pattern.permute.xlu0 1
          %5117 = vperm.xlu0 %5116, %v4201
          %v5118 = vpop.permute.xlu0 %5117
          %5120 = vset.pattern.permute.xlu0 1
          %5121 = vperm.xlu0 %5120, %v4206
          %v5122 = vpop.permute.xlu0 %5121
          %5124 = vset.pattern.permute.xlu0 1
          %5125 = vperm.xlu0 %5124, %v4211
          %v5126 = vpop.permute.xlu0 %5125
          %5128 = vset.pattern.permute.xlu0 1
          %5129 = vperm.xlu0 %5128, %v4216
          %v5130 = vpop.permute.xlu0 %5129
          %5132 = vset.pattern.permute.xlu0 1
          %5133 = vperm.xlu0 %5132, %v4221
          %v5134 = vpop.permute.xlu0 %5133
          %5136 = vset.pattern.permute.xlu0 1
          %5137 = vperm.xlu0 %5136, %v4226
          %v5138 = vpop.permute.xlu0 %5137
          %5140 = vset.pattern.permute.xlu0 1
          %5141 = vperm.xlu0 %5140, %v4231
          %v5142 = vpop.permute.xlu0 %5141
          %5144 = vset.pattern.permute.xlu0 1
          %5145 = vperm.xlu0 %5144, %v4236
          %v5146 = vpop.permute.xlu0 %5145
          %5148 = vset.pattern.permute.xlu0 1
          %5149 = vperm.xlu0 %5148, %v4241
          %v5150 = vpop.permute.xlu0 %5149
          %5152 = vset.pattern.permute.xlu0 1
          %5153 = vperm.xlu0 %5152, %v4246
          %v5154 = vpop.permute.xlu0 %5153
          %5156 = vset.pattern.permute.xlu0 1
          %5157 = vperm.xlu0 %5156, %v4251
          %v5158 = vpop.permute.xlu0 %5157
          %5160 = vset.pattern.permute.xlu0 1
          %5161 = vperm.xlu0 %5160, %v4256
          %v5162 = vpop.permute.xlu0 %5161
          %5164 = vset.pattern.permute.xlu0 1
          %5165 = vperm.xlu0 %5164, %v4261
          %v5166 = vpop.permute.xlu0 %5165
          %5168 = vset.pattern.permute.xlu0 1
          %5169 = vperm.xlu0 %5168, %v4266
          %v5170 = vpop.permute.xlu0 %5169
          %5172 = vset.pattern.permute.xlu0 1
          %5173 = vperm.xlu0 %5172, %v4271
          %v5174 = vpop.permute.xlu0 %5173
          %5176 = vset.pattern.permute.xlu0 1
          %5177 = vperm.xlu0 %5176, %v4276
          %v5178 = vpop.permute.xlu0 %5177
          %5180 = vset.pattern.permute.xlu0 1
          %5181 = vperm.xlu0 %5180, %v4281
          %v5182 = vpop.permute.xlu0 %5181
          %5184 = vset.pattern.permute.xlu0 1
          %5185 = vperm.xlu0 %5184, %v4286
          %v5186 = vpop.permute.xlu0 %5185
          %v5188 = vmul.f32 %v4547, %v5062
          %v5189 = vmul.f32 %v4549, %v5066
          %v5190 = vmul.f32 %v4551, %v5070
          %v5191 = vmul.f32 %v4553, %v5074
          %v5192 = vmul.f32 %v4555, %v5078
          %v5193 = vmul.f32 %v4557, %v5082
          %v5194 = vmul.f32 %v4559, %v5086
          %v5195 = vmul.f32 %v4561, %v5090
          %v5196 = vmul.f32 %v4563, %v5094
          %v5197 = vmul.f32 %v4565, %v5098
          %v5198 = vmul.f32 %v4567, %v5102
          %v5199 = vmul.f32 %v4569, %v5106
          %v5200 = vmul.f32 %v4571, %v5110
          %v5201 = vmul.f32 %v4573, %v5114
          %v5202 = vmul.f32 %v4575, %v5118
          %v5203 = vmul.f32 %v4577, %v5122
          %v5204 = vmul.f32 %v4579, %v5126
          %v5205 = vmul.f32 %v4581, %v5130
          %v5206 = vmul.f32 %v4583, %v5134
          %v5207 = vmul.f32 %v4585, %v5138
          %v5208 = vmul.f32 %v4587, %v5142
          %v5209 = vmul.f32 %v4589, %v5146
          %v5210 = vmul.f32 %v4591, %v5150
          %v5211 = vmul.f32 %v4593, %v5154
          %v5212 = vmul.f32 %v4595, %v5158
          %v5213 = vmul.f32 %v4597, %v5162
          %v5214 = vmul.f32 %v4599, %v5166
          %v5215 = vmul.f32 %v4601, %v5170
          %v5216 = vmul.f32 %v4603, %v5174
          %v5217 = vmul.f32 %v4605, %v5178
          %v5218 = vmul.f32 %v4607, %v5182
          %v5219 = vmul.f32 %v4609, %v5186
          %v5220 = vadd.f32 %v5028, %v5188
          %v5221 = vadd.f32 %v5029, %v5189
          %v5222 = vadd.f32 %v5030, %v5190
          %v5223 = vadd.f32 %v5031, %v5191
          %v5224 = vadd.f32 %v5032, %v5192
          %v5225 = vadd.f32 %v5033, %v5193
          %v5226 = vadd.f32 %v5034, %v5194
          %v5227 = vadd.f32 %v5035, %v5195
          %v5228 = vadd.f32 %v5036, %v5196
          %v5229 = vadd.f32 %v5037, %v5197
          %v5230 = vadd.f32 %v5038, %v5198
          %v5231 = vadd.f32 %v5039, %v5199
          %v5232 = vadd.f32 %v5040, %v5200
          %v5233 = vadd.f32 %v5041, %v5201
          %v5234 = vadd.f32 %v5042, %v5202
          %v5235 = vadd.f32 %v5043, %v5203
          %v5236 = vadd.f32 %v5044, %v5204
          %v5237 = vadd.f32 %v5045, %v5205
          %v5238 = vadd.f32 %v5046, %v5206
          %v5239 = vadd.f32 %v5047, %v5207
          %v5240 = vadd.f32 %v5048, %v5208
          %v5241 = vadd.f32 %v5049, %v5209
          %v5242 = vadd.f32 %v5050, %v5210
          %v5243 = vadd.f32 %v5051, %v5211
          %v5244 = vadd.f32 %v5052, %v5212
          %v5245 = vadd.f32 %v5053, %v5213
          %v5246 = vadd.f32 %v5054, %v5214
          %v5247 = vadd.f32 %v5055, %v5215
          %v5248 = vadd.f32 %v5056, %v5216
          %v5249 = vadd.f32 %v5057, %v5217
          %v5250 = vadd.f32 %v5058, %v5218
          %v5251 = vadd.f32 %v5059, %v5219
          %5252 = vrot.lane.b32.xlu0 %v4547, 127
          %v5253 = vpop.permute.xlu0 %5252
          %5254 = vrot.lane.b32.xlu0 %v4549, 127
          %v5255 = vpop.permute.xlu0 %5254
          %5256 = vrot.lane.b32.xlu0 %v4551, 127
          %v5257 = vpop.permute.xlu0 %5256
          %5258 = vrot.lane.b32.xlu0 %v4553, 127
          %v5259 = vpop.permute.xlu0 %5258
          %5260 = vrot.lane.b32.xlu0 %v4555, 127
          %v5261 = vpop.permute.xlu0 %5260
          %5262 = vrot.lane.b32.xlu0 %v4557, 127
          %v5263 = vpop.permute.xlu0 %5262
          %5264 = vrot.lane.b32.xlu0 %v4559, 127
          %v5265 = vpop.permute.xlu0 %5264
          %5266 = vrot.lane.b32.xlu0 %v4561, 127
          %v5267 = vpop.permute.xlu0 %5266
          %5268 = vrot.lane.b32.xlu0 %v4563, 127
          %v5269 = vpop.permute.xlu0 %5268
          %5270 = vrot.lane.b32.xlu0 %v4565, 127
          %v5271 = vpop.permute.xlu0 %5270
          %5272 = vrot.lane.b32.xlu0 %v4567, 127
          %v5273 = vpop.permute.xlu0 %5272
          %5274 = vrot.lane.b32.xlu0 %v4569, 127
          %v5275 = vpop.permute.xlu0 %5274
          %5276 = vrot.lane.b32.xlu0 %v4571, 127
          %v5277 = vpop.permute.xlu0 %5276
          %5278 = vrot.lane.b32.xlu0 %v4573, 127
          %v5279 = vpop.permute.xlu0 %5278
          %5280 = vrot.lane.b32.xlu0 %v4575, 127
          %v5281 = vpop.permute.xlu0 %5280
          %5282 = vrot.lane.b32.xlu0 %v4577, 127
          %v5283 = vpop.permute.xlu0 %5282
          %5284 = vrot.lane.b32.xlu0 %v4579, 127
          %v5285 = vpop.permute.xlu0 %5284
          %5286 = vrot.lane.b32.xlu0 %v4581, 127
          %v5287 = vpop.permute.xlu0 %5286
          %5288 = vrot.lane.b32.xlu0 %v4583, 127
          %v5289 = vpop.permute.xlu0 %5288
          %5290 = vrot.lane.b32.xlu0 %v4585, 127
          %v5291 = vpop.permute.xlu0 %5290
          %5292 = vrot.lane.b32.xlu0 %v4587, 127
          %v5293 = vpop.permute.xlu0 %5292
          %5294 = vrot.lane.b32.xlu0 %v4589, 127
          %v5295 = vpop.permute.xlu0 %5294
          %5296 = vrot.lane.b32.xlu0 %v4591, 127
          %v5297 = vpop.permute.xlu0 %5296
          %5298 = vrot.lane.b32.xlu0 %v4593, 127
          %v5299 = vpop.permute.xlu0 %5298
          %5300 = vrot.lane.b32.xlu0 %v4595, 127
          %v5301 = vpop.permute.xlu0 %5300
          %5302 = vrot.lane.b32.xlu0 %v4597, 127
          %v5303 = vpop.permute.xlu0 %5302
          %5304 = vrot.lane.b32.xlu0 %v4599, 127
          %v5305 = vpop.permute.xlu0 %5304
          %5306 = vrot.lane.b32.xlu0 %v4601, 127
          %v5307 = vpop.permute.xlu0 %5306
          %5308 = vrot.lane.b32.xlu0 %v4603, 127
          %v5309 = vpop.permute.xlu0 %5308
          %5310 = vrot.lane.b32.xlu0 %v4605, 127
          %v5311 = vpop.permute.xlu0 %5310
          %5312 = vrot.lane.b32.xlu0 %v4607, 127
          %v5313 = vpop.permute.xlu0 %5312
          %5314 = vrot.lane.b32.xlu0 %v4609, 127
          %v5315 = vpop.permute.xlu0 %5314
          %5316 = vrot.lane.b32.xlu0 %v4548, 127
          %v5317 = vpop.permute.xlu0 %5316
          %5318 = vrot.lane.b32.xlu0 %v4550, 127
          %v5319 = vpop.permute.xlu0 %5318
          %5320 = vrot.lane.b32.xlu0 %v4552, 127
          %v5321 = vpop.permute.xlu0 %5320
          %5322 = vrot.lane.b32.xlu0 %v4554, 127
          %v5323 = vpop.permute.xlu0 %5322
          %5324 = vrot.lane.b32.xlu0 %v4556, 127
          %v5325 = vpop.permute.xlu0 %5324
          %5326 = vrot.lane.b32.xlu0 %v4558, 127
          %v5327 = vpop.permute.xlu0 %5326
          %5328 = vrot.lane.b32.xlu0 %v4560, 127
          %v5329 = vpop.permute.xlu0 %5328
          %5330 = vrot.lane.b32.xlu0 %v4562, 127
          %v5331 = vpop.permute.xlu0 %5330
          %5332 = vrot.lane.b32.xlu0 %v4564, 127
          %v5333 = vpop.permute.xlu0 %5332
          %5334 = vrot.lane.b32.xlu0 %v4566, 127
          %v5335 = vpop.permute.xlu0 %5334
          %5336 = vrot.lane.b32.xlu0 %v4568, 127
          %v5337 = vpop.permute.xlu0 %5336
          %5338 = vrot.lane.b32.xlu0 %v4570, 127
          %v5339 = vpop.permute.xlu0 %5338
          %5340 = vrot.lane.b32.xlu0 %v4572, 127
          %v5341 = vpop.permute.xlu0 %5340
          %5342 = vrot.lane.b32.xlu0 %v4574, 127
          %v5343 = vpop.permute.xlu0 %5342
          %5344 = vrot.lane.b32.xlu0 %v4576, 127
          %v5345 = vpop.permute.xlu0 %5344
          %5346 = vrot.lane.b32.xlu0 %v4578, 127
          %v5347 = vpop.permute.xlu0 %5346
          %5348 = vrot.lane.b32.xlu0 %v4580, 127
          %v5349 = vpop.permute.xlu0 %5348
          %5350 = vrot.lane.b32.xlu0 %v4582, 127
          %v5351 = vpop.permute.xlu0 %5350
          %5352 = vrot.lane.b32.xlu0 %v4584, 127
          %v5353 = vpop.permute.xlu0 %5352
          %5354 = vrot.lane.b32.xlu0 %v4586, 127
          %v5355 = vpop.permute.xlu0 %5354
          %5356 = vrot.lane.b32.xlu0 %v4588, 127
          %v5357 = vpop.permute.xlu0 %5356
          %5358 = vrot.lane.b32.xlu0 %v4590, 127
          %v5359 = vpop.permute.xlu0 %5358
          %5360 = vrot.lane.b32.xlu0 %v4592, 127
          %v5361 = vpop.permute.xlu0 %5360
          %5362 = vrot.lane.b32.xlu0 %v4594, 127
          %v5363 = vpop.permute.xlu0 %5362
          %5364 = vrot.lane.b32.xlu0 %v4596, 127
          %v5365 = vpop.permute.xlu0 %5364
          %5366 = vrot.lane.b32.xlu0 %v4598, 127
          %v5367 = vpop.permute.xlu0 %5366
          %5368 = vrot.lane.b32.xlu0 %v4600, 127
          %v5369 = vpop.permute.xlu0 %5368
          %5370 = vrot.lane.b32.xlu0 %v4602, 127
          %v5371 = vpop.permute.xlu0 %5370
          %5372 = vrot.lane.b32.xlu0 %v4604, 127
          %v5373 = vpop.permute.xlu0 %5372
          %5374 = vrot.lane.b32.xlu0 %v4606, 127
          %v5375 = vpop.permute.xlu0 %5374
          %5376 = vrot.lane.b32.xlu0 %v4608, 127
          %v5377 = vpop.permute.xlu0 %5376
          %5378 = vrot.lane.b32.xlu0 %v4610, 127
          %v5379 = vpop.permute.xlu0 %5378
          %vm5380 = vcmp.lt.s32.totalorder %v4322, 127
          %v5381 = vsel %vm5380, %v5253, %v5317
          %v5382 = vsel %vm5380, %v5255, %v5319
          %v5383 = vsel %vm5380, %v5257, %v5321
          %v5384 = vsel %vm5380, %v5259, %v5323
          %v5385 = vsel %vm5380, %v5261, %v5325
          %v5386 = vsel %vm5380, %v5263, %v5327
          %v5387 = vsel %vm5380, %v5265, %v5329
          %v5388 = vsel %vm5380, %v5267, %v5331
          %v5389 = vsel %vm5380, %v5269, %v5333
          %v5390 = vsel %vm5380, %v5271, %v5335
          %v5391 = vsel %vm5380, %v5273, %v5337
          %v5392 = vsel %vm5380, %v5275, %v5339
          %v5393 = vsel %vm5380, %v5277, %v5341
          %v5394 = vsel %vm5380, %v5279, %v5343
          %v5395 = vsel %vm5380, %v5281, %v5345
          %v5396 = vsel %vm5380, %v5283, %v5347
          %v5397 = vsel %vm5380, %v5285, %v5349
          %v5398 = vsel %vm5380, %v5287, %v5351
          %v5399 = vsel %vm5380, %v5289, %v5353
          %v5400 = vsel %vm5380, %v5291, %v5355
          %v5401 = vsel %vm5380, %v5293, %v5357
          %v5402 = vsel %vm5380, %v5295, %v5359
          %v5403 = vsel %vm5380, %v5297, %v5361
          %v5404 = vsel %vm5380, %v5299, %v5363
          %v5405 = vsel %vm5380, %v5301, %v5365
          %v5406 = vsel %vm5380, %v5303, %v5367
          %v5407 = vsel %vm5380, %v5305, %v5369
          %v5408 = vsel %vm5380, %v5307, %v5371
          %v5409 = vsel %vm5380, %v5309, %v5373
          %v5410 = vsel %vm5380, %v5311, %v5375
          %v5411 = vsel %vm5380, %v5313, %v5377
          %v5412 = vsel %vm5380, %v5315, %v5379
          %vm5413 = vcmp.lt.s32.totalorder %v4515, 255
          %vm5414 = vcmp.lt.s32.totalorder %v4516, 255
          %vm5415 = vcmp.lt.s32.totalorder %v4517, 255
          %vm5416 = vcmp.lt.s32.totalorder %v4518, 255
          %vm5417 = vcmp.lt.s32.totalorder %v4519, 255
          %vm5418 = vcmp.lt.s32.totalorder %v4520, 255
          %vm5419 = vcmp.lt.s32.totalorder %v4521, 255
          %vm5420 = vcmp.lt.s32.totalorder %v4522, 255
          %vm5421 = vcmp.lt.s32.totalorder %v4523, 255
          %vm5422 = vcmp.lt.s32.totalorder %v4524, 255
          %vm5423 = vcmp.lt.s32.totalorder %v4525, 255
          %vm5424 = vcmp.lt.s32.totalorder %v4526, 255
          %vm5425 = vcmp.lt.s32.totalorder %v4527, 255
          %vm5426 = vcmp.lt.s32.totalorder %v4528, 255
          %vm5427 = vcmp.lt.s32.totalorder %v4529, 255
          %vm5428 = vcmp.lt.s32.totalorder %v4530, 255
          %vm5429 = vcmp.lt.s32.totalorder %v4531, 255
          %vm5430 = vcmp.lt.s32.totalorder %v4532, 255
          %vm5431 = vcmp.lt.s32.totalorder %v4533, 255
          %vm5432 = vcmp.lt.s32.totalorder %v4534, 255
          %vm5433 = vcmp.lt.s32.totalorder %v4535, 255
          %vm5434 = vcmp.lt.s32.totalorder %v4536, 255
          %vm5435 = vcmp.lt.s32.totalorder %v4537, 255
          %vm5436 = vcmp.lt.s32.totalorder %v4538, 255
          %vm5437 = vcmp.lt.s32.totalorder %v4539, 255
          %vm5438 = vcmp.lt.s32.totalorder %v4540, 255
          %vm5439 = vcmp.lt.s32.totalorder %v4541, 255
          %vm5440 = vcmp.lt.s32.totalorder %v4542, 255
          %vm5441 = vcmp.lt.s32.totalorder %v4543, 255
          %vm5442 = vcmp.lt.s32.totalorder %v4544, 255
          %vm5443 = vcmp.lt.s32.totalorder %v4545, 255
          %vm5444 = vcmp.lt.s32.totalorder %v4546, 255
          %v5445 = vsel %vm5413, %v5381, 0.0
          %v5446 = vsel %vm5414, %v5382, 0.0
          %v5447 = vsel %vm5415, %v5383, 0.0
          %v5448 = vsel %vm5416, %v5384, 0.0
          %v5449 = vsel %vm5417, %v5385, 0.0
          %v5450 = vsel %vm5418, %v5386, 0.0
          %v5451 = vsel %vm5419, %v5387, 0.0
          %v5452 = vsel %vm5420, %v5388, 0.0
          %v5453 = vsel %vm5421, %v5389, 0.0
          %v5454 = vsel %vm5422, %v5390, 0.0
          %v5455 = vsel %vm5423, %v5391, 0.0
          %v5456 = vsel %vm5424, %v5392, 0.0
          %v5457 = vsel %vm5425, %v5393, 0.0
          %v5458 = vsel %vm5426, %v5394, 0.0
          %v5459 = vsel %vm5427, %v5395, 0.0
          %v5460 = vsel %vm5428, %v5396, 0.0
          %v5461 = vsel %vm5429, %v5397, 0.0
          %v5462 = vsel %vm5430, %v5398, 0.0
          %v5463 = vsel %vm5431, %v5399, 0.0
          %v5464 = vsel %vm5432, %v5400, 0.0
          %v5465 = vsel %vm5433, %v5401, 0.0
          %v5466 = vsel %vm5434, %v5402, 0.0
          %v5467 = vsel %vm5435, %v5403, 0.0
          %v5468 = vsel %vm5436, %v5404, 0.0
          %v5469 = vsel %vm5437, %v5405, 0.0
          %v5470 = vsel %vm5438, %v5406, 0.0
          %v5471 = vsel %vm5439, %v5407, 0.0
          %v5472 = vsel %vm5440, %v5408, 0.0
          %v5473 = vsel %vm5441, %v5409, 0.0
          %v5474 = vsel %vm5442, %v5410, 0.0
          %v5475 = vsel %vm5443, %v5411, 0.0
          %v5476 = vsel %vm5444, %v5412, 0.0
          %5477 = vset.pattern.permute.xlu0 2
          %5478 = vperm.xlu0 %5477, %v4131
          %v5479 = vpop.permute.xlu0 %5478
          %5481 = vset.pattern.permute.xlu0 2
          %5482 = vperm.xlu0 %5481, %v4136
          %v5483 = vpop.permute.xlu0 %5482
          %5485 = vset.pattern.permute.xlu0 2
          %5486 = vperm.xlu0 %5485, %v4141
          %v5487 = vpop.permute.xlu0 %5486
          %5489 = vset.pattern.permute.xlu0 2
          %5490 = vperm.xlu0 %5489, %v4146
          %v5491 = vpop.permute.xlu0 %5490
          %5493 = vset.pattern.permute.xlu0 2
          %5494 = vperm.xlu0 %5493, %v4151
          %v5495 = vpop.permute.xlu0 %5494
          %5497 = vset.pattern.permute.xlu0 2
          %5498 = vperm.xlu0 %5497, %v4156
          %v5499 = vpop.permute.xlu0 %5498
          %5501 = vset.pattern.permute.xlu0 2
          %5502 = vperm.xlu0 %5501, %v4161
          %v5503 = vpop.permute.xlu0 %5502
          %5505 = vset.pattern.permute.xlu0 2
          %5506 = vperm.xlu0 %5505, %v4166
          %v5507 = vpop.permute.xlu0 %5506
          %5509 = vset.pattern.permute.xlu0 2
          %5510 = vperm.xlu0 %5509, %v4171
          %v5511 = vpop.permute.xlu0 %5510
          %5513 = vset.pattern.permute.xlu0 2
          %5514 = vperm.xlu0 %5513, %v4176
          %v5515 = vpop.permute.xlu0 %5514
          %5517 = vset.pattern.permute.xlu0 2
          %5518 = vperm.xlu0 %5517, %v4181
          %v5519 = vpop.permute.xlu0 %5518
          %5521 = vset.pattern.permute.xlu0 2
          %5522 = vperm.xlu0 %5521, %v4186
          %v5523 = vpop.permute.xlu0 %5522
          %5525 = vset.pattern.permute.xlu0 2
          %5526 = vperm.xlu0 %5525, %v4191
          %v5527 = vpop.permute.xlu0 %5526
          %5529 = vset.pattern.permute.xlu0 2
          %5530 = vperm.xlu0 %5529, %v4196
          %v5531 = vpop.permute.xlu0 %5530
          %5533 = vset.pattern.permute.xlu0 2
          %5534 = vperm.xlu0 %5533, %v4201
          %v5535 = vpop.permute.xlu0 %5534
          %5537 = vset.pattern.permute.xlu0 2
          %5538 = vperm.xlu0 %5537, %v4206
          %v5539 = vpop.permute.xlu0 %5538
          %5541 = vset.pattern.permute.xlu0 2
          %5542 = vperm.xlu0 %5541, %v4211
          %v5543 = vpop.permute.xlu0 %5542
          %5545 = vset.pattern.permute.xlu0 2
          %5546 = vperm.xlu0 %5545, %v4216
          %v5547 = vpop.permute.xlu0 %5546
          %5549 = vset.pattern.permute.xlu0 2
          %5550 = vperm.xlu0 %5549, %v4221
          %v5551 = vpop.permute.xlu0 %5550
          %5553 = vset.pattern.permute.xlu0 2
          %5554 = vperm.xlu0 %5553, %v4226
          %v5555 = vpop.permute.xlu0 %5554
          %5557 = vset.pattern.permute.xlu0 2
          %5558 = vperm.xlu0 %5557, %v4231
          %v5559 = vpop.permute.xlu0 %5558
          %5561 = vset.pattern.permute.xlu0 2
          %5562 = vperm.xlu0 %5561, %v4236
          %v5563 = vpop.permute.xlu0 %5562
          %5565 = vset.pattern.permute.xlu0 2
          %5566 = vperm.xlu0 %5565, %v4241
          %v5567 = vpop.permute.xlu0 %5566
          %5569 = vset.pattern.permute.xlu0 2
          %5570 = vperm.xlu0 %5569, %v4246
          %v5571 = vpop.permute.xlu0 %5570
          %5573 = vset.pattern.permute.xlu0 2
          %5574 = vperm.xlu0 %5573, %v4251
          %v5575 = vpop.permute.xlu0 %5574
          %5577 = vset.pattern.permute.xlu0 2
          %5578 = vperm.xlu0 %5577, %v4256
          %v5579 = vpop.permute.xlu0 %5578
          %5581 = vset.pattern.permute.xlu0 2
          %5582 = vperm.xlu0 %5581, %v4261
          %v5583 = vpop.permute.xlu0 %5582
          %5585 = vset.pattern.permute.xlu0 2
          %5586 = vperm.xlu0 %5585, %v4266
          %v5587 = vpop.permute.xlu0 %5586
          %5589 = vset.pattern.permute.xlu0 2
          %5590 = vperm.xlu0 %5589, %v4271
          %v5591 = vpop.permute.xlu0 %5590
          %5593 = vset.pattern.permute.xlu0 2
          %5594 = vperm.xlu0 %5593, %v4276
          %v5595 = vpop.permute.xlu0 %5594
          %5597 = vset.pattern.permute.xlu0 2
          %5598 = vperm.xlu0 %5597, %v4281
          %v5599 = vpop.permute.xlu0 %5598
          %5601 = vset.pattern.permute.xlu0 2
          %5602 = vperm.xlu0 %5601, %v4286
          %v5603 = vpop.permute.xlu0 %5602
          %v5605 = vmul.f32 %v5445, %v5479
          %v5606 = vmul.f32 %v5446, %v5483
          %v5607 = vmul.f32 %v5447, %v5487
          %v5608 = vmul.f32 %v5448, %v5491
          %v5609 = vmul.f32 %v5449, %v5495
          %v5610 = vmul.f32 %v5450, %v5499
          %v5611 = vmul.f32 %v5451, %v5503
          %v5612 = vmul.f32 %v5452, %v5507
          %v5613 = vmul.f32 %v5453, %v5511
          %v5614 = vmul.f32 %v5454, %v5515
          %v5615 = vmul.f32 %v5455, %v5519
          %v5616 = vmul.f32 %v5456, %v5523
          %v5617 = vmul.f32 %v5457, %v5527
          %v5618 = vmul.f32 %v5458, %v5531
          %v5619 = vmul.f32 %v5459, %v5535
          %v5620 = vmul.f32 %v5460, %v5539
          %v5621 = vmul.f32 %v5461, %v5543
          %v5622 = vmul.f32 %v5462, %v5547
          %v5623 = vmul.f32 %v5463, %v5551
          %v5624 = vmul.f32 %v5464, %v5555
          %v5625 = vmul.f32 %v5465, %v5559
          %v5626 = vmul.f32 %v5466, %v5563
          %v5627 = vmul.f32 %v5467, %v5567
          %v5628 = vmul.f32 %v5468, %v5571
          %v5629 = vmul.f32 %v5469, %v5575
          %v5630 = vmul.f32 %v5470, %v5579
          %v5631 = vmul.f32 %v5471, %v5583
          %v5632 = vmul.f32 %v5472, %v5587
          %v5633 = vmul.f32 %v5473, %v5591
          %v5634 = vmul.f32 %v5474, %v5595
          %v5635 = vmul.f32 %v5475, %v5599
          %v5636 = vmul.f32 %v5476, %v5603
          %v5637 = vadd.f32 %v5220, %v5605
          %v5638 = vadd.f32 %v5221, %v5606
          %v5639 = vadd.f32 %v5222, %v5607
          %v5640 = vadd.f32 %v5223, %v5608
          %v5641 = vadd.f32 %v5224, %v5609
          %v5642 = vadd.f32 %v5225, %v5610
          %v5643 = vadd.f32 %v5226, %v5611
          %v5644 = vadd.f32 %v5227, %v5612
          %v5645 = vadd.f32 %v5228, %v5613
          %v5646 = vadd.f32 %v5229, %v5614
          %v5647 = vadd.f32 %v5230, %v5615
          %v5648 = vadd.f32 %v5231, %v5616
          %v5649 = vadd.f32 %v5232, %v5617
          %v5650 = vadd.f32 %v5233, %v5618
          %v5651 = vadd.f32 %v5234, %v5619
          %v5652 = vadd.f32 %v5235, %v5620
          %v5653 = vadd.f32 %v5236, %v5621
          %v5654 = vadd.f32 %v5237, %v5622
          %v5655 = vadd.f32 %v5238, %v5623
          %v5656 = vadd.f32 %v5239, %v5624
          %v5657 = vadd.f32 %v5240, %v5625
          %v5658 = vadd.f32 %v5241, %v5626
          %v5659 = vadd.f32 %v5242, %v5627
          %v5660 = vadd.f32 %v5243, %v5628
          %v5661 = vadd.f32 %v5244, %v5629
          %v5662 = vadd.f32 %v5245, %v5630
          %v5663 = vadd.f32 %v5246, %v5631
          %v5664 = vadd.f32 %v5247, %v5632
          %v5665 = vadd.f32 %v5248, %v5633
          %v5666 = vadd.f32 %v5249, %v5634
          %v5667 = vadd.f32 %v5250, %v5635
          %v5668 = vadd.f32 %v5251, %v5636
          %5670 = vset.pattern.permute.xlu0 9
          %5671 = vperm.xlu0 %5670, %v562
          %v5672 = vpop.permute.xlu0 %5671
          %5675 = vset.pattern.permute.xlu0 9
          %5676 = vperm.xlu0 %5675, %v567
          %v5677 = vpop.permute.xlu0 %5676
          %5680 = vset.pattern.permute.xlu0 9
          %5681 = vperm.xlu0 %5680, %v572
          %v5682 = vpop.permute.xlu0 %5681
          %5685 = vset.pattern.permute.xlu0 9
          %5686 = vperm.xlu0 %5685, %v577
          %v5687 = vpop.permute.xlu0 %5686
          %5690 = vset.pattern.permute.xlu0 9
          %5691 = vperm.xlu0 %5690, %v582
          %v5692 = vpop.permute.xlu0 %5691
          %5695 = vset.pattern.permute.xlu0 9
          %5696 = vperm.xlu0 %5695, %v587
          %v5697 = vpop.permute.xlu0 %5696
          %5700 = vset.pattern.permute.xlu0 9
          %5701 = vperm.xlu0 %5700, %v592
          %v5702 = vpop.permute.xlu0 %5701
          %5705 = vset.pattern.permute.xlu0 9
          %5706 = vperm.xlu0 %5705, %v597
          %v5707 = vpop.permute.xlu0 %5706
          %5710 = vset.pattern.permute.xlu0 9
          %5711 = vperm.xlu0 %5710, %v602
          %v5712 = vpop.permute.xlu0 %5711
          %5715 = vset.pattern.permute.xlu0 9
          %5716 = vperm.xlu0 %5715, %v607
          %v5717 = vpop.permute.xlu0 %5716
          %5720 = vset.pattern.permute.xlu0 9
          %5721 = vperm.xlu0 %5720, %v612
          %v5722 = vpop.permute.xlu0 %5721
          %5725 = vset.pattern.permute.xlu0 9
          %5726 = vperm.xlu0 %5725, %v617
          %v5727 = vpop.permute.xlu0 %5726
          %5730 = vset.pattern.permute.xlu0 9
          %5731 = vperm.xlu0 %5730, %v622
          %v5732 = vpop.permute.xlu0 %5731
          %5735 = vset.pattern.permute.xlu0 9
          %5736 = vperm.xlu0 %5735, %v627
          %v5737 = vpop.permute.xlu0 %5736
          %5740 = vset.pattern.permute.xlu0 9
          %5741 = vperm.xlu0 %5740, %v632
          %v5742 = vpop.permute.xlu0 %5741
          %5745 = vset.pattern.permute.xlu0 9
          %5746 = vperm.xlu0 %5745, %v637
          %v5747 = vpop.permute.xlu0 %5746
          %5750 = vset.pattern.permute.xlu0 9
          %5751 = vperm.xlu0 %5750, %v642
          %v5752 = vpop.permute.xlu0 %5751
          %5755 = vset.pattern.permute.xlu0 9
          %5756 = vperm.xlu0 %5755, %v647
          %v5757 = vpop.permute.xlu0 %5756
          %5760 = vset.pattern.permute.xlu0 9
          %5761 = vperm.xlu0 %5760, %v652
          %v5762 = vpop.permute.xlu0 %5761
          %5765 = vset.pattern.permute.xlu0 9
          %5766 = vperm.xlu0 %5765, %v657
          %v5767 = vpop.permute.xlu0 %5766
          %5770 = vset.pattern.permute.xlu0 9
          %5771 = vperm.xlu0 %5770, %v662
          %v5772 = vpop.permute.xlu0 %5771
          %5775 = vset.pattern.permute.xlu0 9
          %5776 = vperm.xlu0 %5775, %v667
          %v5777 = vpop.permute.xlu0 %5776
          %5780 = vset.pattern.permute.xlu0 9
          %5781 = vperm.xlu0 %5780, %v672
          %v5782 = vpop.permute.xlu0 %5781
          %5785 = vset.pattern.permute.xlu0 9
          %5786 = vperm.xlu0 %5785, %v677
          %v5787 = vpop.permute.xlu0 %5786
          %5790 = vset.pattern.permute.xlu0 9
          %5791 = vperm.xlu0 %5790, %v682
          %v5792 = vpop.permute.xlu0 %5791
          %5795 = vset.pattern.permute.xlu0 9
          %5796 = vperm.xlu0 %5795, %v687
          %v5797 = vpop.permute.xlu0 %5796
          %5800 = vset.pattern.permute.xlu0 9
          %5801 = vperm.xlu0 %5800, %v692
          %v5802 = vpop.permute.xlu0 %5801
          %5805 = vset.pattern.permute.xlu0 9
          %5806 = vperm.xlu0 %5805, %v697
          %v5807 = vpop.permute.xlu0 %5806
          %5810 = vset.pattern.permute.xlu0 9
          %5811 = vperm.xlu0 %5810, %v702
          %v5812 = vpop.permute.xlu0 %5811
          %5815 = vset.pattern.permute.xlu0 9
          %5816 = vperm.xlu0 %5815, %v707
          %v5817 = vpop.permute.xlu0 %5816
          %5820 = vset.pattern.permute.xlu0 9
          %5821 = vperm.xlu0 %5820, %v712
          %v5822 = vpop.permute.xlu0 %5821
          %5825 = vset.pattern.permute.xlu0 9
          %5826 = vperm.xlu0 %5825, %v717
          %v5827 = vpop.permute.xlu0 %5826
          %v5829 = vadd.f32 %v5637, %v5672
          %v5830 = vadd.f32 %v5638, %v5677
          %v5831 = vadd.f32 %v5639, %v5682
          %v5832 = vadd.f32 %v5640, %v5687
          %v5833 = vadd.f32 %v5641, %v5692
          %v5834 = vadd.f32 %v5642, %v5697
          %v5835 = vadd.f32 %v5643, %v5702
          %v5836 = vadd.f32 %v5644, %v5707
          %v5837 = vadd.f32 %v5645, %v5712
          %v5838 = vadd.f32 %v5646, %v5717
          %v5839 = vadd.f32 %v5647, %v5722
          %v5840 = vadd.f32 %v5648, %v5727
          %v5841 = vadd.f32 %v5649, %v5732
          %v5842 = vadd.f32 %v5650, %v5737
          %v5843 = vadd.f32 %v5651, %v5742
          %v5844 = vadd.f32 %v5652, %v5747
          %v5845 = vadd.f32 %v5653, %v5752
          %v5846 = vadd.f32 %v5654, %v5757
          %v5847 = vadd.f32 %v5655, %v5762
          %v5848 = vadd.f32 %v5656, %v5767
          %v5849 = vadd.f32 %v5657, %v5772
          %v5850 = vadd.f32 %v5658, %v5777
          %v5851 = vadd.f32 %v5659, %v5782
          %v5852 = vadd.f32 %v5660, %v5787
          %v5853 = vadd.f32 %v5661, %v5792
          %v5854 = vadd.f32 %v5662, %v5797
          %v5855 = vadd.f32 %v5663, %v5802
          %v5856 = vadd.f32 %v5664, %v5807
          %v5857 = vadd.f32 %v5665, %v5812
          %v5858 = vadd.f32 %v5666, %v5817
          %v5859 = vadd.f32 %v5667, %v5822
          %v5860 = vadd.f32 %v5668, %v5827
          %5861 = vst [vmem:[#allocation2] sm:$0xff] %v5829
          %5862 = vst [vmem:[#allocation2 + $0x8] sm:$0xff] %v5830
          %5863 = vst [vmem:[#allocation2 + $0x10] sm:$0xff] %v5831
          %5864 = vst [vmem:[#allocation2 + $0x18] sm:$0xff] %v5832
          %5865 = vst [vmem:[#allocation2 + $0x20] sm:$0xff] %v5833
          %5866 = vst [vmem:[#allocation2 + $0x28] sm:$0xff] %v5834
          %5867 = vst [vmem:[#allocation2 + $0x30] sm:$0xff] %v5835
          %5868 = vst [vmem:[#allocation2 + $0x38] sm:$0xff] %v5836
          %5869 = vst [vmem:[#allocation2 + $0x40] sm:$0xff] %v5837
          %5870 = vst [vmem:[#allocation2 + $0x48] sm:$0xff] %v5838
          %5871 = vst [vmem:[#allocation2 + $0x50] sm:$0xff] %v5839
          %5872 = vst [vmem:[#allocation2 + $0x58] sm:$0xff] %v5840
          %5873 = vst [vmem:[#allocation2 + $0x60] sm:$0xff] %v5841
          %5874 = vst [vmem:[#allocation2 + $0x68] sm:$0xff] %v5842
          %5875 = vst [vmem:[#allocation2 + $0x70] sm:$0xff] %v5843
          %5876 = vst [vmem:[#allocation2 + $0x78] sm:$0xff] %v5844
          %5877 = vst [vmem:[#allocation2 + $0x80] sm:$0xff] %v5845
          %5878 = vst [vmem:[#allocation2 + $0x88] sm:$0xff] %v5846
          %5879 = vst [vmem:[#allocation2 + $0x90] sm:$0xff] %v5847
          %5880 = vst [vmem:[#allocation2 + $0x98] sm:$0xff] %v5848
          %5881 = vst [vmem:[#allocation2 + $0xa0] sm:$0xff] %v5849
          %5882 = vst [vmem:[#allocation2 + $0xa8] sm:$0xff] %v5850
          %5883 = vst [vmem:[#allocation2 + $0xb0] sm:$0xff] %v5851
          %5884 = vst [vmem:[#allocation2 + $0xb8] sm:$0xff] %v5852
          %5885 = vst [vmem:[#allocation2 + $0xc0] sm:$0xff] %v5853
          %5886 = vst [vmem:[#allocation2 + $0xc8] sm:$0xff] %v5854
          %5887 = vst [vmem:[#allocation2 + $0xd0] sm:$0xff] %v5855
          %5888 = vst [vmem:[#allocation2 + $0xd8] sm:$0xff] %v5856
          %5889 = vst [vmem:[#allocation2 + $0xe0] sm:$0xff] %v5857
          %5890 = vst [vmem:[#allocation2 + $0xe8] sm:$0xff] %v5858
          %5891 = vst [vmem:[#allocation2 + $0xf0] sm:$0xff] %v5859
          %5892 = vst [vmem:[#allocation2 + $0xf8] sm:$0xff] %v5860
        $region56: #{wolo_attention_pallas.1} parent=51 // pred_fallthru
          _
        %v5893 = vld [vmem:[#allocation2] sm:$0xff]
        %v5894 = vld [vmem:[#allocation2 + $0x8] sm:$0xff]
        %v5895 = vld [vmem:[#allocation2 + $0x10] sm:$0xff]
        %v5896 = vld [vmem:[#allocation2 + $0x18] sm:$0xff]
        %v5897 = vld [vmem:[#allocation2 + $0x20] sm:$0xff]
        %v5898 = vld [vmem:[#allocation2 + $0x28] sm:$0xff]
        %v5899 = vld [vmem:[#allocation2 + $0x30] sm:$0xff]
        %v5900 = vld [vmem:[#allocation2 + $0x38] sm:$0xff]
        %v5901 = vld [vmem:[#allocation2 + $0x40] sm:$0xff]
        %v5902 = vld [vmem:[#allocation2 + $0x48] sm:$0xff]
        %v5903 = vld [vmem:[#allocation2 + $0x50] sm:$0xff]
        %v5904 = vld [vmem:[#allocation2 + $0x58] sm:$0xff]
        %v5905 = vld [vmem:[#allocation2 + $0x60] sm:$0xff]
        %v5906 = vld [vmem:[#allocation2 + $0x68] sm:$0xff]
        %v5907 = vld [vmem:[#allocation2 + $0x70] sm:$0xff]
        %v5908 = vld [vmem:[#allocation2 + $0x78] sm:$0xff]
        %v5909 = vld [vmem:[#allocation2 + $0x80] sm:$0xff]
        %v5910 = vld [vmem:[#allocation2 + $0x88] sm:$0xff]
        %v5911 = vld [vmem:[#allocation2 + $0x90] sm:$0xff]
        %v5912 = vld [vmem:[#allocation2 + $0x98] sm:$0xff]
        %v5913 = vld [vmem:[#allocation2 + $0xa0] sm:$0xff]
        %v5914 = vld [vmem:[#allocation2 + $0xa8] sm:$0xff]
        %v5915 = vld [vmem:[#allocation2 + $0xb0] sm:$0xff]
        %v5916 = vld [vmem:[#allocation2 + $0xb8] sm:$0xff]
        %v5917 = vld [vmem:[#allocation2 + $0xc0] sm:$0xff]
        %v5918 = vld [vmem:[#allocation2 + $0xc8] sm:$0xff]
        %v5919 = vld [vmem:[#allocation2 + $0xd0] sm:$0xff]
        %v5920 = vld [vmem:[#allocation2 + $0xd8] sm:$0xff]
        %v5921 = vld [vmem:[#allocation2 + $0xe0] sm:$0xff]
        %v5922 = vld [vmem:[#allocation2 + $0xe8] sm:$0xff]
        %v5923 = vld [vmem:[#allocation2 + $0xf0] sm:$0xff]
        %v5924 = vld [vmem:[#allocation2 + $0xf8] sm:$0xff]
        %v5925 = vld [vmem:[%s431] sm:$0xff]
        %v5926 = vld [vmem:[%s431 + $0x8] sm:$0xff]
        %v5927 = vld [vmem:[%s431 + $0x10] sm:$0xff]
        %v5928 = vld [vmem:[%s431 + $0x18] sm:$0xff]
        %v5929 = vld [vmem:[%s431 + $0x20] sm:$0xff]
        %v5930 = vld [vmem:[%s431 + $0x28] sm:$0xff]
        %v5931 = vld [vmem:[%s431 + $0x30] sm:$0xff]
        %v5932 = vld [vmem:[%s431 + $0x38] sm:$0xff]
        %v5933 = vld [vmem:[%s431 + $0x40] sm:$0xff]
        %v5934 = vld [vmem:[%s431 + $0x48] sm:$0xff]
        %v5935 = vld [vmem:[%s431 + $0x50] sm:$0xff]
        %v5936 = vld [vmem:[%s431 + $0x58] sm:$0xff]
        %v5937 = vld [vmem:[%s431 + $0x60] sm:$0xff]
        %v5938 = vld [vmem:[%s431 + $0x68] sm:$0xff]
        %v5939 = vld [vmem:[%s431 + $0x70] sm:$0xff]
        %v5940 = vld [vmem:[%s431 + $0x78] sm:$0xff]
        %v5941 = vld [vmem:[%s434] sm:$0x1]
        %v5943 = vlaneseq
        %v5944 = vshrl.u32 %v5943, 7
        %v5945 = vsub.s32 0, %v5944
        %v5946 = vrot.slane %v5941, %v5945
        %5948 = vmatprep.subr.mxu0 0.0
        %5949 = vmatpush1.msra.mxu0 %v5925
        %5950 = vmatprep.subr.mxu0 0.0
        %5951 = vmatpush1.msra.mxu0 %v5926
        %5952 = vmatprep.subr.mxu0 0.0
        %5953 = vmatpush1.msra.mxu0 %v5927
        %5954 = vmatprep.subr.mxu0 0.0
        %5955 = vmatpush1.msra.mxu0 %v5928
        %5956 = vmatprep.subr.mxu0 0.0
        %5957 = vmatpush1.msra.mxu0 %v5929
        %5958 = vmatprep.subr.mxu0 0.0
        %5959 = vmatpush1.msra.mxu0 %v5930
        %5960 = vmatprep.subr.mxu0 0.0
        %5961 = vmatpush1.msra.mxu0 %v5931
        %5962 = vmatprep.subr.mxu0 0.0
        %5963 = vmatpush1.msra.mxu0 %v5932
        %5964 = vmatprep.subr.mxu0 0.0
        %5965 = vmatpush1.msra.mxu0 %v5933
        %5966 = vmatprep.subr.mxu0 0.0
        %5967 = vmatpush1.msra.mxu0 %v5934
        %5968 = vmatprep.subr.mxu0 0.0
        %5969 = vmatpush1.msra.mxu0 %v5935
        %5970 = vmatprep.subr.mxu0 0.0
        %5971 = vmatpush1.msra.mxu0 %v5936
        %5972 = vmatprep.subr.mxu0 0.0
        %5973 = vmatpush1.msra.mxu0 %v5937
        %5974 = vmatprep.subr.mxu0 0.0
        %5975 = vmatpush1.msra.mxu0 %v5938
        %5976 = vmatprep.subr.mxu0 0.0
        %5977 = vmatpush1.msra.mxu0 %v5939
        %5978 = vmatprep.subr.mxu0 0.0
        %5979 = vmatpush1.msra.mxu0 %v5940
        %5980 = vmatprep.subr.mxu0 0.0
        %5981 = vmatpush1.msra.mxu0 0.0
        %5982 = vmatprep.subr.mxu0 0.0
        %5983 = vmatpush1.msra.mxu0 0.0
        %5984 = vmatprep.subr.mxu0 0.0
        %5985 = vmatpush1.msra.mxu0 0.0
        %5986 = vmatprep.subr.mxu0 0.0
        %5987 = vmatpush1.msra.mxu0 0.0
        %5988 = vmatprep.subr.mxu0 0.0
        %5989 = vmatpush1.msra.mxu0 0.0
        %5990 = vmatprep.subr.mxu0 0.0
        %5991 = vmatpush1.msra.mxu0 0.0
        %5992 = vmatprep.subr.mxu0 0.0
        %5993 = vmatpush1.msra.mxu0 0.0
        %5994 = vmatprep.subr.mxu0 0.0
        %5995 = vmatpush1.msra.mxu0 0.0
        %5996 = vmatprep.subr.mxu0 0.0
        %5997 = vmatpush1.msra.mxu0 0.0
        %5998 = vmatprep.subr.mxu0 0.0
        %5999 = vmatpush1.msra.mxu0 0.0
        %6000 = vmatprep.subr.mxu0 0.0
        %6001 = vmatpush1.msra.mxu0 0.0
        %6002 = vmatprep.subr.mxu0 0.0
        %6003 = vmatpush1.msra.mxu0 0.0
        %6004 = vmatprep.subr.mxu0 0.0
        %6005 = vmatpush1.msra.mxu0 0.0
        %6006 = vmatprep.subr.mxu0 0.0
        %6007 = vmatpush1.msra.mxu0 0.0
        %6008 = vmatprep.subr.mxu0 0.0
        %6009 = vmatpush1.msra.mxu0 0.0
        %6010 = vmatprep.subr.mxu0 0.0
        %6011 = vmatpush1.msra.mxu0 0.0
        %6012 = vmatprep.mubr.f32.mxu0 0.0
        %6013 = vmatmul.mubr.f32.gmra.mrb[0].mxu0 %v5893
        %v6014 = vpop.f32.mrb[0].mxu0
        %v6015 = vadd.f32 %v5946, %v6014
        %v6016 = vpop.f32.mrb[0].mxu0
        %6017 = vmatprep.mubr.f32.mxu0 0.0
        %6018 = vmatmul.mubr.f32.gmra.mrb[0].mxu0 %v5894
        %v6019 = vpop.f32.mrb[0].mxu0
        %v6020 = vadd.f32 %v5946, %v6019
        %v6021 = vpop.f32.mrb[0].mxu0
        %6022 = vmatprep.mubr.f32.mxu0 0.0
        %6023 = vmatmul.mubr.f32.gmra.mrb[0].mxu0 %v5895
        %v6024 = vpop.f32.mrb[0].mxu0
        %v6025 = vadd.f32 %v5946, %v6024
        %v6026 = vpop.f32.mrb[0].mxu0
        %6027 = vmatprep.mubr.f32.mxu0 0.0
        %6028 = vmatmul.mubr.f32.gmra.mrb[0].mxu0 %v5896
        %v6029 = vpop.f32.mrb[0].mxu0
        %v6030 = vadd.f32 %v5946, %v6029
        %v6031 = vpop.f32.mrb[0].mxu0
        %6032 = vmatprep.mubr.f32.mxu0 0.0
        %6033 = vmatmul.mubr.f32.gmra.mrb[0].mxu0 %v5897
        %v6034 = vpop.f32.mrb[0].mxu0
        %v6035 = vadd.f32 %v5946, %v6034
        %v6036 = vpop.f32.mrb[0].mxu0
        %6037 = vmatprep.mubr.f32.mxu0 0.0
        %6038 = vmatmul.mubr.f32.gmra.mrb[0].mxu0 %v5898
        %v6039 = vpop.f32.mrb[0].mxu0
        %v6040 = vadd.f32 %v5946, %v6039
        %v6041 = vpop.f32.mrb[0].mxu0
        %6042 = vmatprep.mubr.f32.mxu0 0.0
        %6043 = vmatmul.mubr.f32.gmra.mrb[0].mxu0 %v5899
        %v6044 = vpop.f32.mrb[0].mxu0
        %v6045 = vadd.f32 %v5946, %v6044
        %v6046 = vpop.f32.mrb[0].mxu0
        %6047 = vmatprep.mubr.f32.mxu0 0.0
        %6048 = vmatmul.mubr.f32.gmra.mrb[0].mxu0 %v5900
        %v6049 = vpop.f32.mrb[0].mxu0
        %v6050 = vadd.f32 %v5946, %v6049
        %v6051 = vpop.f32.mrb[0].mxu0
        %6052 = vmatprep.mubr.f32.mxu0 0.0
        %6053 = vmatmul.mubr.f32.gmra.mrb[0].mxu0 %v5901
        %v6054 = vpop.f32.mrb[0].mxu0
        %v6055 = vadd.f32 %v5946, %v6054
        %v6056 = vpop.f32.mrb[0].mxu0
        %6057 = vmatprep.mubr.f32.mxu0 0.0
        %6058 = vmatmul.mubr.f32.gmra.mrb[0].mxu0 %v5902
        %v6059 = vpop.f32.mrb[0].mxu0
        %v6060 = vadd.f32 %v5946, %v6059
        %v6061 = vpop.f32.mrb[0].mxu0
        %6062 = vmatprep.mubr.f32.mxu0 0.0
        %6063 = vmatmul.mubr.f32.gmra.mrb[0].mxu0 %v5903
        %v6064 = vpop.f32.mrb[0].mxu0
        %v6065 = vadd.f32 %v5946, %v6064
        %v6066 = vpop.f32.mrb[0].mxu0
        %6067 = vmatprep.mubr.f32.mxu0 0.0
        %6068 = vmatmul.mubr.f32.gmra.mrb[0].mxu0 %v5904
        %v6069 = vpop.f32.mrb[0].mxu0
        %v6070 = vadd.f32 %v5946, %v6069
        %v6071 = vpop.f32.mrb[0].mxu0
        %6072 = vmatprep.mubr.f32.mxu0 0.0
        %6073 = vmatmul.mubr.f32.gmra.mrb[0].mxu0 %v5905
        %v6074 = vpop.f32.mrb[0].mxu0
        %v6075 = vadd.f32 %v5946, %v6074
        %v6076 = vpop.f32.mrb[0].mxu0
        %6077 = vmatprep.mubr.f32.mxu0 0.0
        %6078 = vmatmul.mubr.f32.gmra.mrb[0].mxu0 %v5906
        %v6079 = vpop.f32.mrb[0].mxu0
        %v6080 = vadd.f32 %v5946, %v6079
        %v6081 = vpop.f32.mrb[0].mxu0
        %6082 = vmatprep.mubr.f32.mxu0 0.0
        %6083 = vmatmul.mubr.f32.gmra.mrb[0].mxu0 %v5907
        %v6084 = vpop.f32.mrb[0].mxu0
        %v6085 = vadd.f32 %v5946, %v6084
        %v6086 = vpop.f32.mrb[0].mxu0
        %6087 = vmatprep.mubr.f32.mxu0 0.0
        %6088 = vmatmul.mubr.f32.gmra.mrb[0].mxu0 %v5908
        %v6089 = vpop.f32.mrb[0].mxu0
        %v6090 = vadd.f32 %v5946, %v6089
        %v6091 = vpop.f32.mrb[0].mxu0
        %6092 = vmatprep.mubr.f32.mxu0 0.0
        %6093 = vmatmul.mubr.f32.gmra.mrb[0].mxu0 %v5909
        %v6094 = vpop.f32.mrb[0].mxu0
        %v6095 = vadd.f32 %v5946, %v6094
        %v6096 = vpop.f32.mrb[0].mxu0
        %6097 = vmatprep.mubr.f32.mxu0 0.0
        %6098 = vmatmul.mubr.f32.gmra.mrb[0].mxu0 %v5910
        %v6099 = vpop.f32.mrb[0].mxu0
        %v6100 = vadd.f32 %v5946, %v6099
        %v6101 = vpop.f32.mrb[0].mxu0
        %6102 = vmatprep.mubr.f32.mxu0 0.0
        %6103 = vmatmul.mubr.f32.gmra.mrb[0].mxu0 %v5911
        %v6104 = vpop.f32.mrb[0].mxu0
        %v6105 = vadd.f32 %v5946, %v6104
        %v6106 = vpop.f32.mrb[0].mxu0
        %6107 = vmatprep.mubr.f32.mxu0 0.0
        %6108 = vmatmul.mubr.f32.gmra.mrb[0].mxu0 %v5912
        %v6109 = vpop.f32.mrb[0].mxu0
        %v6110 = vadd.f32 %v5946, %v6109
        %v6111 = vpop.f32.mrb[0].mxu0
        %6112 = vmatprep.mubr.f32.mxu0 0.0
        %6113 = vmatmul.mubr.f32.gmra.mrb[0].mxu0 %v5913
        %v6114 = vpop.f32.mrb[0].mxu0
        %v6115 = vadd.f32 %v5946, %v6114
        %v6116 = vpop.f32.mrb[0].mxu0
        %6117 = vmatprep.mubr.f32.mxu0 0.0
        %6118 = vmatmul.mubr.f32.gmra.mrb[0].mxu0 %v5914
        %v6119 = vpop.f32.mrb[0].mxu0
        %v6120 = vadd.f32 %v5946, %v6119
        %v6121 = vpop.f32.mrb[0].mxu0
        %6122 = vmatprep.mubr.f32.mxu0 0.0
        %6123 = vmatmul.mubr.f32.gmra.mrb[0].mxu0 %v5915
        %v6124 = vpop.f32.mrb[0].mxu0
        %v6125 = vadd.f32 %v5946, %v6124
        %v6126 = vpop.f32.mrb[0].mxu0
        %6127 = vmatprep.mubr.f32.mxu0 0.0
        %6128 = vmatmul.mubr.f32.gmra.mrb[0].mxu0 %v5916
        %v6129 = vpop.f32.mrb[0].mxu0
        %v6130 = vadd.f32 %v5946, %v6129
        %v6131 = vpop.f32.mrb[0].mxu0
        %6132 = vmatprep.mubr.f32.mxu0 0.0
        %6133 = vmatmul.mubr.f32.gmra.mrb[0].mxu0 %v5917
        %v6134 = vpop.f32.mrb[0].mxu0
        %v6135 = vadd.f32 %v5946, %v6134
        %v6136 = vpop.f32.mrb[0].mxu0
        %6137 = vmatprep.mubr.f32.mxu0 0.0
        %6138 = vmatmul.mubr.f32.gmra.mrb[0].mxu0 %v5918
        %v6139 = vpop.f32.mrb[0].mxu0
        %v6140 = vadd.f32 %v5946, %v6139
        %v6141 = vpop.f32.mrb[0].mxu0
        %6142 = vmatprep.mubr.f32.mxu0 0.0
        %6143 = vmatmul.mubr.f32.gmra.mrb[0].mxu0 %v5919
        %v6144 = vpop.f32.mrb[0].mxu0
        %v6145 = vadd.f32 %v5946, %v6144
        %v6146 = vpop.f32.mrb[0].mxu0
        %6147 = vmatprep.mubr.f32.mxu0 0.0
        %6148 = vmatmul.mubr.f32.gmra.mrb[0].mxu0 %v5920
        %v6149 = vpop.f32.mrb[0].mxu0
        %v6150 = vadd.f32 %v5946, %v6149
        %v6151 = vpop.f32.mrb[0].mxu0
        %6152 = vmatprep.mubr.f32.mxu0 0.0
        %6153 = vmatmul.mubr.f32.gmra.mrb[0].mxu0 %v5921
        %v6154 = vpop.f32.mrb[0].mxu0
        %v6155 = vadd.f32 %v5946, %v6154
        %v6156 = vpop.f32.mrb[0].mxu0
        %6157 = vmatprep.mubr.f32.mxu0 0.0
        %6158 = vmatmul.mubr.f32.gmra.mrb[0].mxu0 %v5922
        %v6159 = vpop.f32.mrb[0].mxu0
        %v6160 = vadd.f32 %v5946, %v6159
        %v6161 = vpop.f32.mrb[0].mxu0
        %6162 = vmatprep.mubr.f32.mxu0 0.0
        %6163 = vmatmul.mubr.f32.gmra.mrb[0].mxu0 %v5923
        %v6164 = vpop.f32.mrb[0].mxu0
        %v6165 = vadd.f32 %v5946, %v6164
        %v6166 = vpop.f32.mrb[0].mxu0
        %6167 = vmatprep.mubr.f32.mxu0 0.0
        %6168 = vmatmul.mubr.f32.gmra.mrb[0].mxu0 %v5924
        %v6169 = vpop.f32.mrb[0].mxu0
        %v6170 = vadd.f32 %v5946, %v6169
        %v6171 = vpop.f32.mrb[0].mxu0
        %6172 = vdwg.mxu0
        %6173 = vst [vmem:[%s400] sm:$0xff] %v6015
        %6174 = vst [vmem:[%s400 + $0x8] sm:$0xff] %v6020
        %6175 = vst [vmem:[%s400 + $0x10] sm:$0xff] %v6025
        %6176 = vst [vmem:[%s400 + $0x18] sm:$0xff] %v6030
        %6177 = vst [vmem:[%s400 + $0x20] sm:$0xff] %v6035
        %6178 = vst [vmem:[%s400 + $0x28] sm:$0xff] %v6040
        %6179 = vst [vmem:[%s400 + $0x30] sm:$0xff] %v6045
        %6180 = vst [vmem:[%s400 + $0x38] sm:$0xff] %v6050
        %6181 = vst [vmem:[%s400 + $0x40] sm:$0xff] %v6055
        %6182 = vst [vmem:[%s400 + $0x48] sm:$0xff] %v6060
        %6183 = vst [vmem:[%s400 + $0x50] sm:$0xff] %v6065
        %6184 = vst [vmem:[%s400 + $0x58] sm:$0xff] %v6070
        %6185 = vst [vmem:[%s400 + $0x60] sm:$0xff] %v6075
        %6186 = vst [vmem:[%s400 + $0x68] sm:$0xff] %v6080
        %6187 = vst [vmem:[%s400 + $0x70] sm:$0xff] %v6085
        %6188 = vst [vmem:[%s400 + $0x78] sm:$0xff] %v6090
        %6189 = vst [vmem:[%s400 + $0x80] sm:$0xff] %v6095
        %6190 = vst [vmem:[%s400 + $0x88] sm:$0xff] %v6100
        %6191 = vst [vmem:[%s400 + $0x90] sm:$0xff] %v6105
        %6192 = vst [vmem:[%s400 + $0x98] sm:$0xff] %v6110
        %6193 = vst [vmem:[%s400 + $0xa0] sm:$0xff] %v6115
        %6194 = vst [vmem:[%s400 + $0xa8] sm:$0xff] %v6120
        %6195 = vst [vmem:[%s400 + $0xb0] sm:$0xff] %v6125
        %6196 = vst [vmem:[%s400 + $0xb8] sm:$0xff] %v6130
        %6197 = vst [vmem:[%s400 + $0xc0] sm:$0xff] %v6135
        %6198 = vst [vmem:[%s400 + $0xc8] sm:$0xff] %v6140
        %6199 = vst [vmem:[%s400 + $0xd0] sm:$0xff] %v6145
        %6200 = vst [vmem:[%s400 + $0xd8] sm:$0xff] %v6150
        %6201 = vst [vmem:[%s400 + $0xe0] sm:$0xff] %v6155
        %6202 = vst [vmem:[%s400 + $0xe8] sm:$0xff] %v6160
        %6203 = vst [vmem:[%s400 + $0xf0] sm:$0xff] %v6165
        %6204 = vst [vmem:[%s400 + $0xf8] sm:$0xff] %v6170
        %s6205 = sand.u32 %s250, 1
        %s6206 = scalar_lea.sflag [#allocation4], %s6205
        %s6207 = sand.u32 %s250, 1
        %s6208 = smul.addr %s6207, 256
        %s6209 = scalar_lea.vmem [#allocation3], %s6208
        // Predicated region
        $region57: #{wolo_attention_pallas.1} parent=51 // pred_check
          %p6210 = pneg %p260
        $region58: #{wolo_attention_pallas.1} parent=51 // pred_check_branch
          %6212 = sbr.rel (%p6210) target = $region60
        $region59: #{wolo_attention_pallas.1} parent=51 // pred_region
          %s6213 = smul.u32 32, %s28
          %s6215 = ssub.s32 4096, 4096
          %6216 = vsyncadd %s6206, %s6215
          %s6217 = sadd.s32 %s29, %s6213
          %s6218 = smul.addr %s27, 32
          %s6219 = sadd.s32 %s6217, %s6218
          %s6220 = smul.addr %s6219, 128
          %s6221 = scalar_lea.hbm %s8, %s6220
          %s6222 = sshll.u32 %s6209, 4
          %s6223 = int_to_ptr.vmem [resolvable:$true] %s6222
          %6228 = dma.vmem_to_hbm [thread:$0]  %s6223, 4096, %s6221, %s6206, 128, 128, 8
        $region60: #{wolo_attention_pallas.1} parent=51 // pred_fallthru
          _
      $region52: #{wolo_attention_pallas.1} parent=5 // pred_fallthru
        _
      %p6229 = scmp.le.s32.totalorder 2, %s17
      // Predicated region
      $region61: #{wolo_attention_pallas.1} parent=5 // pred_check
        %p6230 = pneg %p6229
      $region62: #{wolo_attention_pallas.1} parent=5 // pred_check_branch
        %6232 = sbr.rel (%p6230) target = $region64
      $region63: #{wolo_attention_pallas.1} parent=5 // pred_region
        %s6233 = ssub.s32 %s17, 2
        // Predicated region
        $region65: #{wolo_attention_pallas.1} parent=63 // pred_check
          %p6234 = pneg %p266
        $region66: #{wolo_attention_pallas.1} parent=63 // pred_check_branch
          %6236 = sbr.rel (%p6234) target = $region68
        $region67: #{wolo_attention_pallas.1} parent=63 // pred_region
          %s6237 = sand.u32 %s251, 1
          %s6238 = scalar_lea.sflag [#allocation4], %s6237
          %s6239 = sand.u32 %s251, 1
          %s6240 = smul.addr %s6239, 256
          %s6241 = scalar_lea.vmem [#allocation3], %s6240
          %6242 = dma.done %s6238, 4096
        $region68: #{wolo_attention_pallas.1} parent=63 // pred_fallthru
          _
      $region64: #{wolo_attention_pallas.1} parent=5 // pred_fallthru
        _
    $region6: #{wolo_attention_pallas.1} parent=1 // loop_footer
      %s21 = sadd.s32 1, %s17
    $region7: #{wolo_attention_pallas.1} parent=1 // loop_footer_branch
      %16 = sbr.rel target = $region3
    $region8: #{wolo_attention_pallas.1} parent=1 // loop_exit
      _
    %6243 = vsyncpa [#allocation4], 1
    %s6244 = scalar_lea.sflag [#allocation4], 1
    %6245 = vsyncpa %s6244, 1

</llo_original>
